<compile_context>
chip_gen: v6e
topology: v6e:2x2x1
jax: 0.10.0
libtpu: 0.0.40
codegen_flags: <defaults>
</compile_context>

<pallas_src>
import numpy as np
import jax
import jax.numpy as jnp
from jax.experimental import pallas as pl
from jax.experimental.pallas import tpu as pltpu

HIDDEN = 40               # hidden_size
CHANNELS = 14             # fc input = 2 * 9 * 14  => 14 channels
FRAME = 64                # two 32-sample windows
WIN = 32
N_HARM = 9                # count_harmonic = 8 -> keep 9 rfft bins per window
FEAT = 2 * N_HARM * CHANNELS        # 252
IN_FLAT = CHANNELS * FRAME          # 896 (lane-aligned: 7*128)
NEG_SLOPE = 0.05

# Lane-aligned (multiple-of-128) half-widths of the packed [real | imag]
# activations.  True complex widths in parentheses.
H1P = 256   # trunk layer 1 & 2 output half   (true 160)
H3P = 128   # trunk layer 3 output half       (true  80)
H4P = 128   # trunk layer 4 output half       (true  40)
HHP = 128   # fused-heads layer-1 output half (true  60)
OUT_PAD = 128   # lane-dense final output width (real cols = 3)


# ---------------------------------------------------------------------------
# Pallas kernel
# ---------------------------------------------------------------------------
def _packed_clrelu(a, half):
    """ComplexLeakyReLU on a packed [real | imag] activation of width 2*half.

    leaky_relu on the amplitude is the identity (amplitude >= 0).  For
    angle >= 0 (imag >= 0, incl. the angle == pi case) the op is the exact
    identity.  For angle < 0 (imag < 0):
        out = amp * exp(i * NEG_SLOPE * angle),   angle = -acos(r / amp)
    computed without arctan2/cos/sin: acos via the Abramowitz & Stegun
    4.4.45 approximation (|err| <= 6.7e-5 rad) and cos/sin of the small
    result angle (|theta| <= 0.05*pi) via short Taylor polynomials.
    Padded (all-zero) lanes stay exactly zero and never produce NaN/Inf.
    """
    r = a[:, :half]
    i = a[:, half:]

    n2 = r * r + i * i
    inv = jax.lax.rsqrt(n2 + 1e-30)          # finite even for n2 == 0
    amp = n2 * inv                           # |z|
    c = jnp.clip(r * inv, -1.0, 1.0)         # cos(angle)

    # acos(|c|) ~= sqrt(1-|c|) * poly(|c|)     (A&S 4.4.45)
    x = jnp.abs(c)
    poly = 1.5707288 + x * (-0.2121144 + x * (0.0742610 + x * (-0.0187293)))
    acos_abs = jnp.sqrt(1.0 - x) * poly
    acos_c = jnp.where(c < 0.0, np.pi - acos_abs, acos_abs)   # acos(c) in [0, pi]

    # negative-angle branch: angle = -acos(c);  theta = NEG_SLOPE * angle
    th = (-NEG_SLOPE) * acos_c               # theta in [-0.157, 0]
    th2 = th * th
    cos_t = 1.0 + th2 * (-0.5 + th2 * (1.0 / 24.0))
    sin_t = th * (1.0 + th2 * (-1.0 / 6.0))
    rot_r = amp * cos_t
    rot_i = amp * sin_t

    neg = i < 0.0                            # angle < 0  <=>  imag < 0
    out_r = jnp.where(neg, rot_r, r)
    out_i = jnp.where(neg, rot_i, i)
    return jnp.concatenate([out_r, out_i], axis=-1)


def fft_mlp_kernel(x_ref,
                   w1, b1, w2, b2, w3, b3, w4, b4,
                   h1, c1, h2, c2,
                   out_ref):
    # layer 1: truncated rfft (block-diagonal DFT) folded into the weights.
    a = jnp.dot(x_ref[...], w1[...], preferred_element_type=jnp.float32) + b1[...]
    a = _packed_clrelu(a, H1P)                              # (TB, 512)
    a = jnp.dot(a, w2[...], preferred_element_type=jnp.float32) + b2[...]
    a = _packed_clrelu(a, H1P)                              # (TB, 512)
    a = jnp.dot(a, w3[...], preferred_element_type=jnp.float32) + b3[...]
    a = _packed_clrelu(a, H3P)                              # (TB, 256)
    a = jnp.dot(a, w4[...], preferred_element_type=jnp.float32) + b4[...]
    a = _packed_clrelu(a, H4P)                              # (TB, 256)
    # fused heads: three first layers stacked along the output dim
    a = jnp.dot(a, h1[...], preferred_element_type=jnp.float32) + c1[...]
    a = _packed_clrelu(a, HHP)                              # (TB, 256)
    # fused heads: block-diagonal second layers, real part only, lane-padded
    y = jnp.dot(a, h2[...], preferred_element_type=jnp.float32) + c2[...]
    out_ref[...] = jax.nn.sigmoid(y)                        # (TB, 128)


# ---------------------------------------------------------------------------
# Parameter / constant construction (plain numpy / JAX glue)
# ---------------------------------------------------------------------------
def build_dft_matrices():
    """Real/imag (float64) matrices so that x_flat @ M == truncated rfft."""
    n = np.arange(WIN, dtype=np.float64)[:, None]
    k = np.arange(N_HARM, dtype=np.float64)[None, :]
    ang = 2.0 * np.pi * n * k / WIN
    dr = np.cos(ang)          # (32, 9)  real part of exp(-2*pi*i*n*k/32)
    di = -np.sin(ang)         # (32, 9)  imag part
    Mr = np.zeros((IN_FLAT, FEAT), np.float64)
    Mi = np.zeros((IN_FLAT, FEAT), np.float64)
    for c in range(CHANNELS):
        r0, f0 = c * FRAME, c * 2 * N_HARM
        Mr[r0:r0 + WIN, f0:f0 + N_HARM] = dr
        Mi[r0:r0 + WIN, f0:f0 + N_HARM] = di
        Mr[r0 + WIN:r0 + FRAME, f0 + N_HARM:f0 + 2 * N_HARM] = dr
        Mi[r0 + WIN:r0 + FRAME, f0 + N_HARM:f0 + 2 * N_HARM] = di
    return Mr, Mi


def init_complex_linear(key, fan_in, fan_out):
    k1, k2, k3, k4 = jax.random.split(key, 4)
    bound = 1.0 / np.sqrt(fan_in)
    wr = jax.random.uniform(k1, (fan_in, fan_out), jnp.float32, -bound, bound)
    wi = jax.random.uniform(k2, (fan_in, fan_out), jnp.float32, -bound, bound)
    br = jax.random.uniform(k3, (1, fan_out), jnp.float32, -bound, bound)
    bi = jax.random.uniform(k4, (1, fan_out), jnp.float32, -bound, bound)
    return wr, wi, br, bi


def init_params(key):
    trunk_dims = [(FEAT, 4 * HIDDEN), (4 * HIDDEN, 4 * HIDDEN),
                  (4 * HIDDEN, 2 * HIDDEN), (2 * HIDDEN, HIDDEN)]
    keys = jax.random.split(key, 4 + 3 * 2)
    trunk = [init_complex_linear(keys[l], *trunk_dims[l]) for l in range(4)]
    heads = []
    for h in range(3):
        l1 = init_complex_linear(keys[4 + 2 * h], HIDDEN, HIDDEN // 2)
        l2 = init_complex_linear(keys[5 + 2 * h], HIDDEN // 2, 1)
        heads.append((l1, l2))
    return {"trunk": trunk, "heads": heads}


def pack_kernel_params(params, dft):
    """Fold the DFT into layer 1, pack every complex Linear as a single real
    matmul with lane-aligned (multiple-of-128) real/imag halves, fuse the
    three heads and pad the final weight/bias to a 128-wide output."""
    f64 = lambda t: np.asarray(t, np.float64)
    Mr, Mi = dft

    def pack_cplx(wr, wi, br, bi, in_pad, out_pad):
        wr, wi, br, bi = map(f64, (wr, wi, br, bi))
        fin, fout = wr.shape
        W = np.zeros((2 * in_pad, 2 * out_pad), np.float32)
        W[:fin, :fout] = wr
        W[:fin, out_pad:out_pad + fout] = wi
        W[in_pad:in_pad + fin, :fout] = -wi
        W[in_pad:in_pad + fin, out_pad:out_pad + fout] = wr
        B = np.zeros((1, 2 * out_pad), np.float32)
        B[0, :fout] = br[0]
        B[0, out_pad:out_pad + fout] = bi[0]
        return W, B

    # --- layer 1: fold sparse block-diagonal DFT into the first complex Linear
    w1r, w1i, b1r, b1i = map(f64, params["trunk"][0])
    A_r = Mr @ w1r - Mi @ w1i                                # (896, 160)
    A_i = Mr @ w1i + Mi @ w1r
    W1 = np.zeros((IN_FLAT, 2 * H1P), np.float32)            # (896, 512)
    W1[:, :4 * HIDDEN] = A_r
    W1[:, H1P:H1P + 4 * HIDDEN] = A_i
    B1 = np.zeros((1, 2 * H1P), np.float32)
    B1[0, :4 * HIDDEN] = b1r[0]
    B1[0, H1P:H1P + 4 * HIDDEN] = b1i[0]

    W2, B2 = pack_cplx(*params["trunk"][1], H1P, H1P)        # (512, 512)
    W3, B3 = pack_cplx(*params["trunk"][2], H1P, H3P)        # (512, 256)
    W4, B4 = pack_cplx(*params["trunk"][3], H3P, H4P)        # (256, 256)

    # --- heads: stack the three first layers along the out dim (3*20 = 60)
    h1r = np.concatenate([f64(params["heads"][h][0][0]) for h in range(3)], axis=1)
    h1i = np.concatenate([f64(params["heads"][h][0][1]) for h in range(3)], axis=1)
    c1r = np.concatenate([f64(params["heads"][h][0][2]) for h in range(3)], axis=1)
    c1i = np.concatenate([f64(params["heads"][h][0][3]) for h in range(3)], axis=1)
    H1, C1 = pack_cplx(h1r, h1i, c1r, c1i, H4P, HHP)         # (256, 256)

    # --- heads: block-diagonal second layers; only the REAL part feeds sigmoid
    hw = HIDDEN // 2
    H2 = np.zeros((2 * HHP, OUT_PAD), np.float32)            # (256, 128)
    C2 = np.zeros((1, OUT_PAD), np.float32)
    for h in range(3):
        wr, wi, br, _bi = map(f64, params["heads"][h][1])
        H2[h * hw:(h + 1) * hw, h] = wr[:, 0]
        H2[HHP + h * hw:HHP + (h + 1) * hw, h] = -wi[:, 0]
        C2[0, h] = br[0, 0]

    packed = [W1, B1, W2, B2, W3, B3, W4, B4, H1, C1, H2, C2]
    return [jnp.asarray(p) for p in packed]


# ---------------------------------------------------------------------------
# Wrapper
# ---------------------------------------------------------------------------
def fft_mlp_complex_v1(x, packed_params, *, tb=None):
    B = x.shape[0]
    # torch: x.reshape(B, 14, 64) -> rfft -> reshape(B, -1).  Row-major
    # reshape, so flattening directly matches (the DFT matrices encode it).
    x_flat = jnp.asarray(x, jnp.float32).reshape(B, IN_FLAT)

    if tb is None:
        # >= 2 grid steps whenever possible so ("parallel",) can shard across
        # both v7x TensorCores; rows a multiple of 8; capped at 512 so
        # double-buffered tiles + resident weights fit v7x's 64 MiB VMEM.
        half_b = (B + 1) // 2
        tb = min(512, max(8, 8 * ((half_b + 7) // 8)))
    nb = (B + tb - 1) // tb
    Bp = nb * tb
    if Bp != B:
        # pad so the last block is full (no wasted transcendental work on
        # uninitialized VMEM rows); padded rows are dropped below.
        x_flat = jnp.pad(x_flat, ((0, Bp - B), (0, 0)))

    # Weights/biases are resident in VMEM via constant index_maps (Pallas does
    # not re-DMA a block whose index does not change between grid steps).
    def const_spec(p):
        return pl.BlockSpec(p.shape, lambda i: (0, 0))

    in_specs = [pl.BlockSpec((tb, IN_FLAT), lambda i: (i, 0))]
    in_specs += [const_spec(p) for p in packed_params]

    weight_bytes = sum(int(np.prod(p.shape)) * 4 for p in packed_params)
    flops_per_row = 2 * (IN_FLAT * 2 * H1P + (2 * H1P) * (2 * H1P)
                         + (2 * H1P) * (2 * H3P) + (2 * H3P) * (2 * H4P)
                         + (2 * H4P) * (2 * HHP) + (2 * HHP) * OUT_PAD)
    trans_per_row = 2 * (H1P + H1P + H3P + H4P + HHP) + OUT_PAD

    out = pl.pallas_call(
        fft_mlp_kernel,
        out_shape=jax.ShapeDtypeStruct((Bp, OUT_PAD), jnp.float32),
        grid_spec=pltpu.PrefetchScalarGridSpec(
            num_scalar_prefetch=0,
            grid=(nb,),
            in_specs=in_specs,
            out_specs=pl.BlockSpec((tb, OUT_PAD), lambda i: (i, 0)),
        ),
        compiler_params=pltpu.CompilerParams(
            dimension_semantics=("parallel",),        # megacore sharding on v7x
            vmem_limit_bytes=32 * 1024 * 1024,
        ),
        cost_estimate=pl.CostEstimate(
            flops=int(Bp) * int(flops_per_row),
            transcendentals=int(Bp) * int(trans_per_row),
            bytes_accessed=int(Bp) * (IN_FLAT + OUT_PAD) * 4 + weight_bytes,
        ),
    )(x_flat, *packed_params)
    return out[:B, :3]                                # drop row + lane padding


# ---------------------------------------------------------------------------
# Host-side numpy float64 reference for validation (exact math, no TPU
# matmul-precision ambiguity).
# ---------------------------------------------------------------------------
def reference_forward(x, params):
    x = np.asarray(x, np.float64)
    B = x.shape[0]
    xr = x.reshape(B, CHANNELS, FRAME)
    prev = np.fft.rfft(xr[:, :, :WIN])[:, :, :N_HARM]
    cur = np.fft.rfft(xr[:, :, WIN:])[:, :, :N_HARM]
    z = np.concatenate([prev, cur], axis=-1).reshape(B, FEAT)

    def clinear(z, p):
        wr, wi, br, bi = (np.asarray(t, np.float64) for t in p)
        return z @ (wr + 1j * wi) + (br + 1j * bi)[0]

    def clrelu(z):
        amp = np.abs(z)
        ang = np.angle(z)
        ang = np.where(ang >= 0.0, ang, NEG_SLOPE * ang)
        return amp * np.cos(ang) + 1j * (amp * np.sin(ang))

    def sigmoid(v):
        return 1.0 / (1.0 + np.exp(-v))

    for p in params["trunk"]:
        z = clrelu(clinear(z, p))
    outs = []
    for l1, l2 in params["heads"]:
        h = clrelu(clinear(z, l1))
        h = clinear(h, l2)
        outs.append(sigmoid(np.real(h)))
    return np.concatenate(outs, axis=1)


if __name__ == "__main__":
    key = jax.random.PRNGKey(0)
    kx, kp = jax.random.split(key)

    B = 16
    # module input: (batch, frame=64, channels=14)
    x = jax.random.normal(kx, (B, FRAME, CHANNELS), jnp.float32)

    params = init_params(kp)
    packed = pack_kernel_params(params, build_dft_matrices())

    # default tb -> 8 rows/tile, 2 grid steps: exercises the pipelined path
    out = jax.block_until_ready(fft_mlp_complex_v1(x, packed))

    ref = reference_forward(np.asarray(x), params)
    np.testing.assert_allclose(np.asarray(out), ref, rtol=2e-3, atol=2e-3)

    print("KERNEL_OK")
</pallas_src>

<mosaic_0001>
module attributes {stable_mosaic.version = 11 : i64} {
  func.func @fft_mlp_kernel(%arg0: i32, %arg1: memref<8x896xf32, #tpu.memory_space<vmem>>, %arg2: memref<896x512xf32, #tpu.memory_space<vmem>>, %arg3: memref<1x512xf32, #tpu.memory_space<vmem>>, %arg4: memref<512x512xf32, #tpu.memory_space<vmem>>, %arg5: memref<1x512xf32, #tpu.memory_space<vmem>>, %arg6: memref<512x256xf32, #tpu.memory_space<vmem>>, %arg7: memref<1x256xf32, #tpu.memory_space<vmem>>, %arg8: memref<256x256xf32, #tpu.memory_space<vmem>>, %arg9: memref<1x256xf32, #tpu.memory_space<vmem>>, %arg10: memref<256x256xf32, #tpu.memory_space<vmem>>, %arg11: memref<1x256xf32, #tpu.memory_space<vmem>>, %arg12: memref<256x128xf32, #tpu.memory_space<vmem>>, %arg13: memref<1x128xf32, #tpu.memory_space<vmem>>, %arg14: memref<8x128xf32, #tpu.memory_space<vmem>>) attributes {dimension_semantics = [#tpu.dimension_semantics<parallel>], iteration_bounds = array<i64: 2>, scalar_prefetch = 0 : i64, scratch_operands = 0 : i64, tpu.core_type = #tpu.core_type<tc>, window_params = [{transform_indices = @transform_0, window_bounds = array<i64: 8, 896>}, {pipeline_mode = #tpu.pipeline_mode<synchronous>, transform_indices = @transform_1, window_bounds = array<i64: 896, 512>}, {pipeline_mode = #tpu.pipeline_mode<synchronous>, transform_indices = @transform_2, window_bounds = array<i64: 1, 512>}, {pipeline_mode = #tpu.pipeline_mode<synchronous>, transform_indices = @transform_3, window_bounds = array<i64: 512, 512>}, {pipeline_mode = #tpu.pipeline_mode<synchronous>, transform_indices = @transform_4, window_bounds = array<i64: 1, 512>}, {pipeline_mode = #tpu.pipeline_mode<synchronous>, transform_indices = @transform_5, window_bounds = array<i64: 512, 256>}, {pipeline_mode = #tpu.pipeline_mode<synchronous>, transform_indices = @transform_6, window_bounds = array<i64: 1, 256>}, {pipeline_mode = #tpu.pipeline_mode<synchronous>, transform_indices = @transform_7, window_bounds = array<i64: 256, 256>}, {pipeline_mode = #tpu.pipeline_mode<synchronous>, transform_indices = @transform_8, window_bounds = array<i64: 1, 256>}, {pipeline_mode = #tpu.pipeline_mode<synchronous>, transform_indices = @transform_9, window_bounds = array<i64: 256, 256>}, {pipeline_mode = #tpu.pipeline_mode<synchronous>, transform_indices = @transform_10, window_bounds = array<i64: 1, 256>}, {pipeline_mode = #tpu.pipeline_mode<synchronous>, transform_indices = @transform_11, window_bounds = array<i64: 256, 128>}, {pipeline_mode = #tpu.pipeline_mode<synchronous>, transform_indices = @transform_12, window_bounds = array<i64: 1, 128>}, {transform_indices = @transform_13, window_bounds = array<i64: 8, 128>}]} {
    %c0 = arith.constant 0 : index
    %c0_0 = arith.constant 0 : index
    %0 = vector.load %arg1[%c0, %c0_0] : memref<8x896xf32, #tpu.memory_space<vmem>>, vector<8x896xf32>
    %c0_1 = arith.constant 0 : index
    %c0_2 = arith.constant 0 : index
    %1 = vector.load %arg2[%c0_1, %c0_2] : memref<896x512xf32, #tpu.memory_space<vmem>>, vector<896x512xf32>
    %cst = arith.constant dense<0.000000e+00> : vector<8x512xf32>
    %2 = tpu.matmul %0, %1, %cst {dimension_numbers = #tpu.dot_dimension_numbers<[1], [0], [0], [1], [0, 0, 1, 1], [], []>} : vector<8x896xf32>, vector<896x512xf32>, vector<8x512xf32> -> vector<8x512xf32>
    %c0_3 = arith.constant 0 : index
    %c0_4 = arith.constant 0 : index
    %3 = vector.load %arg3[%c0_3, %c0_4] : memref<1x512xf32, #tpu.memory_space<vmem>>, vector<1x512xf32>
    %4 = vector.broadcast %3 : vector<1x512xf32> to vector<8x512xf32>
    %5 = arith.addf %2, %4 : vector<8x512xf32>
    %6 = vector.extract_strided_slice %5 {offsets = [0, 0], sizes = [8, 256], strides = [1, 1]} : vector<8x512xf32> to vector<8x256xf32>
    %7 = vector.extract_strided_slice %5 {offsets = [0, 256], sizes = [8, 256], strides = [1, 1]} : vector<8x512xf32> to vector<8x256xf32>
    %8 = arith.mulf %6, %6 : vector<8x256xf32>
    %9 = arith.mulf %7, %7 : vector<8x256xf32>
    %10 = arith.addf %8, %9 : vector<8x256xf32>
    %cst_5 = arith.constant 1.000000e-30 : f32
    %11 = vector.broadcast %cst_5 : f32 to vector<8x256xf32>
    %12 = arith.addf %10, %11 : vector<8x256xf32>
    %13 = math.rsqrt %12 : vector<8x256xf32>
    %14 = arith.mulf %10, %13 : vector<8x256xf32>
    %15 = arith.mulf %6, %13 : vector<8x256xf32>
    %cst_6 = arith.constant -1.000000e+00 : f32
    %cst_7 = arith.constant 1.000000e+00 : f32
    %16 = vector.broadcast %cst_6 : f32 to vector<8x256xf32>
    %17 = arith.maximumf %16, %15 : vector<8x256xf32>
    %18 = vector.broadcast %cst_7 : f32 to vector<8x256xf32>
    %19 = arith.minimumf %18, %17 : vector<8x256xf32>
    %20 = math.absf %19 : vector<8x256xf32>
    %cst_8 = arith.constant -1.872930e-02 : f32
    %21 = vector.broadcast %cst_8 : f32 to vector<8x256xf32>
    %22 = arith.mulf %20, %21 : vector<8x256xf32>
    %cst_9 = arith.constant 7.426100e-02 : f32
    %23 = vector.broadcast %cst_9 : f32 to vector<8x256xf32>
    %24 = arith.addf %23, %22 : vector<8x256xf32>
    %25 = arith.mulf %20, %24 : vector<8x256xf32>
    %cst_10 = arith.constant -0.212114394 : f32
    %26 = vector.broadcast %cst_10 : f32 to vector<8x256xf32>
    %27 = arith.addf %26, %25 : vector<8x256xf32>
    %28 = arith.mulf %20, %27 : vector<8x256xf32>
    %cst_11 = arith.constant 1.57072878 : f32
    %29 = vector.broadcast %cst_11 : f32 to vector<8x256xf32>
    %30 = arith.addf %29, %28 : vector<8x256xf32>
    %cst_12 = arith.constant 1.000000e+00 : f32
    %31 = vector.broadcast %cst_12 : f32 to vector<8x256xf32>
    %32 = arith.subf %31, %20 : vector<8x256xf32>
    %33 = math.sqrt %32 : vector<8x256xf32>
    %34 = arith.mulf %33, %30 : vector<8x256xf32>
    %cst_13 = arith.constant 0.000000e+00 : f32
    %35 = vector.broadcast %cst_13 : f32 to vector<8x256xf32>
    %36 = arith.cmpf olt, %19, %35 : vector<8x256xf32>
    %cst_14 = arith.constant 3.14159274 : f32
    %37 = vector.broadcast %cst_14 : f32 to vector<8x256xf32>
    %38 = arith.subf %37, %34 : vector<8x256xf32>
    %39 = arith.select %36, %38, %34 : vector<8x256xi1>, vector<8x256xf32>
    %cst_15 = arith.constant -5.000000e-02 : f32
    %40 = vector.broadcast %cst_15 : f32 to vector<8x256xf32>
    %41 = arith.mulf %40, %39 : vector<8x256xf32>
    %42 = arith.mulf %41, %41 : vector<8x256xf32>
    %cst_16 = arith.constant 0.0416666679 : f32
    %43 = vector.broadcast %cst_16 : f32 to vector<8x256xf32>
    %44 = arith.mulf %42, %43 : vector<8x256xf32>
    %cst_17 = arith.constant -5.000000e-01 : f32
    %45 = vector.broadcast %cst_17 : f32 to vector<8x256xf32>
    %46 = arith.addf %45, %44 : vector<8x256xf32>
    %47 = arith.mulf %42, %46 : vector<8x256xf32>
    %cst_18 = arith.constant 1.000000e+00 : f32
    %48 = vector.broadcast %cst_18 : f32 to vector<8x256xf32>
    %49 = arith.addf %48, %47 : vector<8x256xf32>
    %cst_19 = arith.constant -0.166666672 : f32
    %50 = vector.broadcast %cst_19 : f32 to vector<8x256xf32>
    %51 = arith.mulf %42, %50 : vector<8x256xf32>
    %cst_20 = arith.constant 1.000000e+00 : f32
    %52 = vector.broadcast %cst_20 : f32 to vector<8x256xf32>
    %53 = arith.addf %52, %51 : vector<8x256xf32>
    %54 = arith.mulf %41, %53 : vector<8x256xf32>
    %55 = arith.mulf %14, %49 : vector<8x256xf32>
    %56 = arith.mulf %14, %54 : vector<8x256xf32>
    %cst_21 = arith.constant 0.000000e+00 : f32
    %57 = vector.broadcast %cst_21 : f32 to vector<8x256xf32>
    %58 = arith.cmpf olt, %7, %57 : vector<8x256xf32>
    %59 = arith.select %58, %55, %6 : vector<8x256xi1>, vector<8x256xf32>
    %60 = arith.select %58, %56, %7 : vector<8x256xi1>, vector<8x256xf32>
    %61 = tpu.concatenate %59, %60 in 1 : vector<8x256xf32>, vector<8x256xf32> -> vector<8x512xf32>
    %c0_22 = arith.constant 0 : index
    %c0_23 = arith.constant 0 : index
    %62 = vector.load %arg4[%c0_22, %c0_23] : memref<512x512xf32, #tpu.memory_space<vmem>>, vector<512x512xf32>
    %cst_24 = arith.constant dense<0.000000e+00> : vector<8x512xf32>
    %63 = tpu.matmul %61, %62, %cst_24 {dimension_numbers = #tpu.dot_dimension_numbers<[1], [0], [0], [1], [0, 0, 1, 1], [], []>} : vector<8x512xf32>, vector<512x512xf32>, vector<8x512xf32> -> vector<8x512xf32>
    %c0_25 = arith.constant 0 : index
    %c0_26 = arith.constant 0 : index
    %64 = vector.load %arg5[%c0_25, %c0_26] : memref<1x512xf32, #tpu.memory_space<vmem>>, vector<1x512xf32>
    %65 = vector.broadcast %64 : vector<1x512xf32> to vector<8x512xf32>
    %66 = arith.addf %63, %65 : vector<8x512xf32>
    %67 = vector.extract_strided_slice %66 {offsets = [0, 0], sizes = [8, 256], strides = [1, 1]} : vector<8x512xf32> to vector<8x256xf32>
    %68 = vector.extract_strided_slice %66 {offsets = [0, 256], sizes = [8, 256], strides = [1, 1]} : vector<8x512xf32> to vector<8x256xf32>
    %69 = arith.mulf %67, %67 : vector<8x256xf32>
    %70 = arith.mulf %68, %68 : vector<8x256xf32>
    %71 = arith.addf %69, %70 : vector<8x256xf32>
    %cst_27 = arith.constant 1.000000e-30 : f32
    %72 = vector.broadcast %cst_27 : f32 to vector<8x256xf32>
    %73 = arith.addf %71, %72 : vector<8x256xf32>
    %74 = math.rsqrt %73 : vector<8x256xf32>
    %75 = arith.mulf %71, %74 : vector<8x256xf32>
    %76 = arith.mulf %67, %74 : vector<8x256xf32>
    %cst_28 = arith.constant -1.000000e+00 : f32
    %cst_29 = arith.constant 1.000000e+00 : f32
    %77 = vector.broadcast %cst_28 : f32 to vector<8x256xf32>
    %78 = arith.maximumf %77, %76 : vector<8x256xf32>
    %79 = vector.broadcast %cst_29 : f32 to vector<8x256xf32>
    %80 = arith.minimumf %79, %78 : vector<8x256xf32>
    %81 = math.absf %80 : vector<8x256xf32>
    %cst_30 = arith.constant -1.872930e-02 : f32
    %82 = vector.broadcast %cst_30 : f32 to vector<8x256xf32>
    %83 = arith.mulf %81, %82 : vector<8x256xf32>
    %cst_31 = arith.constant 7.426100e-02 : f32
    %84 = vector.broadcast %cst_31 : f32 to vector<8x256xf32>
    %85 = arith.addf %84, %83 : vector<8x256xf32>
    %86 = arith.mulf %81, %85 : vector<8x256xf32>
    %cst_32 = arith.constant -0.212114394 : f32
    %87 = vector.broadcast %cst_32 : f32 to vector<8x256xf32>
    %88 = arith.addf %87, %86 : vector<8x256xf32>
    %89 = arith.mulf %81, %88 : vector<8x256xf32>
    %cst_33 = arith.constant 1.57072878 : f32
    %90 = vector.broadcast %cst_33 : f32 to vector<8x256xf32>
    %91 = arith.addf %90, %89 : vector<8x256xf32>
    %cst_34 = arith.constant 1.000000e+00 : f32
    %92 = vector.broadcast %cst_34 : f32 to vector<8x256xf32>
    %93 = arith.subf %92, %81 : vector<8x256xf32>
    %94 = math.sqrt %93 : vector<8x256xf32>
    %95 = arith.mulf %94, %91 : vector<8x256xf32>
    %cst_35 = arith.constant 0.000000e+00 : f32
    %96 = vector.broadcast %cst_35 : f32 to vector<8x256xf32>
    %97 = arith.cmpf olt, %80, %96 : vector<8x256xf32>
    %cst_36 = arith.constant 3.14159274 : f32
    %98 = vector.broadcast %cst_36 : f32 to vector<8x256xf32>
    %99 = arith.subf %98, %95 : vector<8x256xf32>
    %100 = arith.select %97, %99, %95 : vector<8x256xi1>, vector<8x256xf32>
    %cst_37 = arith.constant -5.000000e-02 : f32
    %101 = vector.broadcast %cst_37 : f32 to vector<8x256xf32>
    %102 = arith.mulf %101, %100 : vector<8x256xf32>
    %103 = arith.mulf %102, %102 : vector<8x256xf32>
    %cst_38 = arith.constant 0.0416666679 : f32
    %104 = vector.broadcast %cst_38 : f32 to vector<8x256xf32>
    %105 = arith.mulf %103, %104 : vector<8x256xf32>
    %cst_39 = arith.constant -5.000000e-01 : f32
    %106 = vector.broadcast %cst_39 : f32 to vector<8x256xf32>
    %107 = arith.addf %106, %105 : vector<8x256xf32>
    %108 = arith.mulf %103, %107 : vector<8x256xf32>
    %cst_40 = arith.constant 1.000000e+00 : f32
    %109 = vector.broadcast %cst_40 : f32 to vector<8x256xf32>
    %110 = arith.addf %109, %108 : vector<8x256xf32>
    %cst_41 = arith.constant -0.166666672 : f32
    %111 = vector.broadcast %cst_41 : f32 to vector<8x256xf32>
    %112 = arith.mulf %103, %111 : vector<8x256xf32>
    %cst_42 = arith.constant 1.000000e+00 : f32
    %113 = vector.broadcast %cst_42 : f32 to vector<8x256xf32>
    %114 = arith.addf %113, %112 : vector<8x256xf32>
    %115 = arith.mulf %102, %114 : vector<8x256xf32>
    %116 = arith.mulf %75, %110 : vector<8x256xf32>
    %117 = arith.mulf %75, %115 : vector<8x256xf32>
    %cst_43 = arith.constant 0.000000e+00 : f32
    %118 = vector.broadcast %cst_43 : f32 to vector<8x256xf32>
    %119 = arith.cmpf olt, %68, %118 : vector<8x256xf32>
    %120 = arith.select %119, %116, %67 : vector<8x256xi1>, vector<8x256xf32>
    %121 = arith.select %119, %117, %68 : vector<8x256xi1>, vector<8x256xf32>
    %122 = tpu.concatenate %120, %121 in 1 : vector<8x256xf32>, vector<8x256xf32> -> vector<8x512xf32>
    %c0_44 = arith.constant 0 : index
    %c0_45 = arith.constant 0 : index
    %123 = vector.load %arg6[%c0_44, %c0_45] : memref<512x256xf32, #tpu.memory_space<vmem>>, vector<512x256xf32>
    %cst_46 = arith.constant dense<0.000000e+00> : vector<8x256xf32>
    %124 = tpu.matmul %122, %123, %cst_46 {dimension_numbers = #tpu.dot_dimension_numbers<[1], [0], [0], [1], [0, 0, 1, 1], [], []>} : vector<8x512xf32>, vector<512x256xf32>, vector<8x256xf32> -> vector<8x256xf32>
    %c0_47 = arith.constant 0 : index
    %c0_48 = arith.constant 0 : index
    %125 = vector.load %arg7[%c0_47, %c0_48] : memref<1x256xf32, #tpu.memory_space<vmem>>, vector<1x256xf32>
    %126 = vector.broadcast %125 : vector<1x256xf32> to vector<8x256xf32>
    %127 = arith.addf %124, %126 : vector<8x256xf32>
    %128 = vector.extract_strided_slice %127 {offsets = [0, 0], sizes = [8, 128], strides = [1, 1]} : vector<8x256xf32> to vector<8x128xf32>
    %129 = vector.extract_strided_slice %127 {offsets = [0, 128], sizes = [8, 128], strides = [1, 1]} : vector<8x256xf32> to vector<8x128xf32>
    %130 = arith.mulf %128, %128 : vector<8x128xf32>
    %131 = arith.mulf %129, %129 : vector<8x128xf32>
    %132 = arith.addf %130, %131 : vector<8x128xf32>
    %cst_49 = arith.constant 1.000000e-30 : f32
    %133 = vector.broadcast %cst_49 : f32 to vector<8x128xf32>
    %134 = arith.addf %132, %133 : vector<8x128xf32>
    %135 = math.rsqrt %134 : vector<8x128xf32>
    %136 = arith.mulf %132, %135 : vector<8x128xf32>
    %137 = arith.mulf %128, %135 : vector<8x128xf32>
    %cst_50 = arith.constant -1.000000e+00 : f32
    %cst_51 = arith.constant 1.000000e+00 : f32
    %138 = vector.broadcast %cst_50 : f32 to vector<8x128xf32>
    %139 = arith.maximumf %138, %137 : vector<8x128xf32>
    %140 = vector.broadcast %cst_51 : f32 to vector<8x128xf32>
    %141 = arith.minimumf %140, %139 : vector<8x128xf32>
    %142 = math.absf %141 : vector<8x128xf32>
    %cst_52 = arith.constant -1.872930e-02 : f32
    %143 = vector.broadcast %cst_52 : f32 to vector<8x128xf32>
    %144 = arith.mulf %142, %143 : vector<8x128xf32>
    %cst_53 = arith.constant 7.426100e-02 : f32
    %145 = vector.broadcast %cst_53 : f32 to vector<8x128xf32>
    %146 = arith.addf %145, %144 : vector<8x128xf32>
    %147 = arith.mulf %142, %146 : vector<8x128xf32>
    %cst_54 = arith.constant -0.212114394 : f32
    %148 = vector.broadcast %cst_54 : f32 to vector<8x128xf32>
    %149 = arith.addf %148, %147 : vector<8x128xf32>
    %150 = arith.mulf %142, %149 : vector<8x128xf32>
    %cst_55 = arith.constant 1.57072878 : f32
    %151 = vector.broadcast %cst_55 : f32 to vector<8x128xf32>
    %152 = arith.addf %151, %150 : vector<8x128xf32>
    %cst_56 = arith.constant 1.000000e+00 : f32
    %153 = vector.broadcast %cst_56 : f32 to vector<8x128xf32>
    %154 = arith.subf %153, %142 : vector<8x128xf32>
    %155 = math.sqrt %154 : vector<8x128xf32>
    %156 = arith.mulf %155, %152 : vector<8x128xf32>
    %cst_57 = arith.constant 0.000000e+00 : f32
    %157 = vector.broadcast %cst_57 : f32 to vector<8x128xf32>
    %158 = arith.cmpf olt, %141, %157 : vector<8x128xf32>
    %cst_58 = arith.constant 3.14159274 : f32
    %159 = vector.broadcast %cst_58 : f32 to vector<8x128xf32>
    %160 = arith.subf %159, %156 : vector<8x128xf32>
    %161 = arith.select %158, %160, %156 : vector<8x128xi1>, vector<8x128xf32>
    %cst_59 = arith.constant -5.000000e-02 : f32
    %162 = vector.broadcast %cst_59 : f32 to vector<8x128xf32>
    %163 = arith.mulf %162, %161 : vector<8x128xf32>
    %164 = arith.mulf %163, %163 : vector<8x128xf32>
    %cst_60 = arith.constant 0.0416666679 : f32
    %165 = vector.broadcast %cst_60 : f32 to vector<8x128xf32>
    %166 = arith.mulf %164, %165 : vector<8x128xf32>
    %cst_61 = arith.constant -5.000000e-01 : f32
    %167 = vector.broadcast %cst_61 : f32 to vector<8x128xf32>
    %168 = arith.addf %167, %166 : vector<8x128xf32>
    %169 = arith.mulf %164, %168 : vector<8x128xf32>
    %cst_62 = arith.constant 1.000000e+00 : f32
    %170 = vector.broadcast %cst_62 : f32 to vector<8x128xf32>
    %171 = arith.addf %170, %169 : vector<8x128xf32>
    %cst_63 = arith.constant -0.166666672 : f32
    %172 = vector.broadcast %cst_63 : f32 to vector<8x128xf32>
    %173 = arith.mulf %164, %172 : vector<8x128xf32>
    %cst_64 = arith.constant 1.000000e+00 : f32
    %174 = vector.broadcast %cst_64 : f32 to vector<8x128xf32>
    %175 = arith.addf %174, %173 : vector<8x128xf32>
    %176 = arith.mulf %163, %175 : vector<8x128xf32>
    %177 = arith.mulf %136, %171 : vector<8x128xf32>
    %178 = arith.mulf %136, %176 : vector<8x128xf32>
    %cst_65 = arith.constant 0.000000e+00 : f32
    %179 = vector.broadcast %cst_65 : f32 to vector<8x128xf32>
    %180 = arith.cmpf olt, %129, %179 : vector<8x128xf32>
    %181 = arith.select %180, %177, %128 : vector<8x128xi1>, vector<8x128xf32>
    %182 = arith.select %180, %178, %129 : vector<8x128xi1>, vector<8x128xf32>
    %183 = tpu.concatenate %181, %182 in 1 : vector<8x128xf32>, vector<8x128xf32> -> vector<8x256xf32>
    %c0_66 = arith.constant 0 : index
    %c0_67 = arith.constant 0 : index
    %184 = vector.load %arg8[%c0_66, %c0_67] : memref<256x256xf32, #tpu.memory_space<vmem>>, vector<256x256xf32>
    %cst_68 = arith.constant dense<0.000000e+00> : vector<8x256xf32>
    %185 = tpu.matmul %183, %184, %cst_68 {dimension_numbers = #tpu.dot_dimension_numbers<[1], [0], [0], [1], [0, 0, 1, 1], [], []>} : vector<8x256xf32>, vector<256x256xf32>, vector<8x256xf32> -> vector<8x256xf32>
    %c0_69 = arith.constant 0 : index
    %c0_70 = arith.constant 0 : index
    %186 = vector.load %arg9[%c0_69, %c0_70] : memref<1x256xf32, #tpu.memory_space<vmem>>, vector<1x256xf32>
    %187 = vector.broadcast %186 : vector<1x256xf32> to vector<8x256xf32>
    %188 = arith.addf %185, %187 : vector<8x256xf32>
    %189 = vector.extract_strided_slice %188 {offsets = [0, 0], sizes = [8, 128], strides = [1, 1]} : vector<8x256xf32> to vector<8x128xf32>
    %190 = vector.extract_strided_slice %188 {offsets = [0, 128], sizes = [8, 128], strides = [1, 1]} : vector<8x256xf32> to vector<8x128xf32>
    %191 = arith.mulf %189, %189 : vector<8x128xf32>
    %192 = arith.mulf %190, %190 : vector<8x128xf32>
    %193 = arith.addf %191, %192 : vector<8x128xf32>
    %cst_71 = arith.constant 1.000000e-30 : f32
    %194 = vector.broadcast %cst_71 : f32 to vector<8x128xf32>
    %195 = arith.addf %193, %194 : vector<8x128xf32>
    %196 = math.rsqrt %195 : vector<8x128xf32>
    %197 = arith.mulf %193, %196 : vector<8x128xf32>
    %198 = arith.mulf %189, %196 : vector<8x128xf32>
    %cst_72 = arith.constant -1.000000e+00 : f32
    %cst_73 = arith.constant 1.000000e+00 : f32
    %199 = vector.broadcast %cst_72 : f32 to vector<8x128xf32>
    %200 = arith.maximumf %199, %198 : vector<8x128xf32>
    %201 = vector.broadcast %cst_73 : f32 to vector<8x128xf32>
    %202 = arith.minimumf %201, %200 : vector<8x128xf32>
    %203 = math.absf %202 : vector<8x128xf32>
    %cst_74 = arith.constant -1.872930e-02 : f32
    %204 = vector.broadcast %cst_74 : f32 to vector<8x128xf32>
    %205 = arith.mulf %203, %204 : vector<8x128xf32>
    %cst_75 = arith.constant 7.426100e-02 : f32
    %206 = vector.broadcast %cst_75 : f32 to vector<8x128xf32>
    %207 = arith.addf %206, %205 : vector<8x128xf32>
    %208 = arith.mulf %203, %207 : vector<8x128xf32>
    %cst_76 = arith.constant -0.212114394 : f32
    %209 = vector.broadcast %cst_76 : f32 to vector<8x128xf32>
    %210 = arith.addf %209, %208 : vector<8x128xf32>
    %211 = arith.mulf %203, %210 : vector<8x128xf32>
    %cst_77 = arith.constant 1.57072878 : f32
    %212 = vector.broadcast %cst_77 : f32 to vector<8x128xf32>
    %213 = arith.addf %212, %211 : vector<8x128xf32>
    %cst_78 = arith.constant 1.000000e+00 : f32
    %214 = vector.broadcast %cst_78 : f32 to vector<8x128xf32>
    %215 = arith.subf %214, %203 : vector<8x128xf32>
    %216 = math.sqrt %215 : vector<8x128xf32>
    %217 = arith.mulf %216, %213 : vector<8x128xf32>
    %cst_79 = arith.constant 0.000000e+00 : f32
    %218 = vector.broadcast %cst_79 : f32 to vector<8x128xf32>
    %219 = arith.cmpf olt, %202, %218 : vector<8x128xf32>
    %cst_80 = arith.constant 3.14159274 : f32
    %220 = vector.broadcast %cst_80 : f32 to vector<8x128xf32>
    %221 = arith.subf %220, %217 : vector<8x128xf32>
    %222 = arith.select %219, %221, %217 : vector<8x128xi1>, vector<8x128xf32>
    %cst_81 = arith.constant -5.000000e-02 : f32
    %223 = vector.broadcast %cst_81 : f32 to vector<8x128xf32>
    %224 = arith.mulf %223, %222 : vector<8x128xf32>
    %225 = arith.mulf %224, %224 : vector<8x128xf32>
    %cst_82 = arith.constant 0.0416666679 : f32
    %226 = vector.broadcast %cst_82 : f32 to vector<8x128xf32>
    %227 = arith.mulf %225, %226 : vector<8x128xf32>
    %cst_83 = arith.constant -5.000000e-01 : f32
    %228 = vector.broadcast %cst_83 : f32 to vector<8x128xf32>
    %229 = arith.addf %228, %227 : vector<8x128xf32>
    %230 = arith.mulf %225, %229 : vector<8x128xf32>
    %cst_84 = arith.constant 1.000000e+00 : f32
    %231 = vector.broadcast %cst_84 : f32 to vector<8x128xf32>
    %232 = arith.addf %231, %230 : vector<8x128xf32>
    %cst_85 = arith.constant -0.166666672 : f32
    %233 = vector.broadcast %cst_85 : f32 to vector<8x128xf32>
    %234 = arith.mulf %225, %233 : vector<8x128xf32>
    %cst_86 = arith.constant 1.000000e+00 : f32
    %235 = vector.broadcast %cst_86 : f32 to vector<8x128xf32>
    %236 = arith.addf %235, %234 : vector<8x128xf32>
    %237 = arith.mulf %224, %236 : vector<8x128xf32>
    %238 = arith.mulf %197, %232 : vector<8x128xf32>
    %239 = arith.mulf %197, %237 : vector<8x128xf32>
    %cst_87 = arith.constant 0.000000e+00 : f32
    %240 = vector.broadcast %cst_87 : f32 to vector<8x128xf32>
    %241 = arith.cmpf olt, %190, %240 : vector<8x128xf32>
    %242 = arith.select %241, %238, %189 : vector<8x128xi1>, vector<8x128xf32>
    %243 = arith.select %241, %239, %190 : vector<8x128xi1>, vector<8x128xf32>
    %244 = tpu.concatenate %242, %243 in 1 : vector<8x128xf32>, vector<8x128xf32> -> vector<8x256xf32>
    %c0_88 = arith.constant 0 : index
    %c0_89 = arith.constant 0 : index
    %245 = vector.load %arg10[%c0_88, %c0_89] : memref<256x256xf32, #tpu.memory_space<vmem>>, vector<256x256xf32>
    %cst_90 = arith.constant dense<0.000000e+00> : vector<8x256xf32>
    %246 = tpu.matmul %244, %245, %cst_90 {dimension_numbers = #tpu.dot_dimension_numbers<[1], [0], [0], [1], [0, 0, 1, 1], [], []>} : vector<8x256xf32>, vector<256x256xf32>, vector<8x256xf32> -> vector<8x256xf32>
    %c0_91 = arith.constant 0 : index
    %c0_92 = arith.constant 0 : index
    %247 = vector.load %arg11[%c0_91, %c0_92] : memref<1x256xf32, #tpu.memory_space<vmem>>, vector<1x256xf32>
    %248 = vector.broadcast %247 : vector<1x256xf32> to vector<8x256xf32>
    %249 = arith.addf %246, %248 : vector<8x256xf32>
    %250 = vector.extract_strided_slice %249 {offsets = [0, 0], sizes = [8, 128], strides = [1, 1]} : vector<8x256xf32> to vector<8x128xf32>
    %251 = vector.extract_strided_slice %249 {offsets = [0, 128], sizes = [8, 128], strides = [1, 1]} : vector<8x256xf32> to vector<8x128xf32>
    %252 = arith.mulf %250, %250 : vector<8x128xf32>
    %253 = arith.mulf %251, %251 : vector<8x128xf32>
    %254 = arith.addf %252, %253 : vector<8x128xf32>
    %cst_93 = arith.constant 1.000000e-30 : f32
    %255 = vector.broadcast %cst_93 : f32 to vector<8x128xf32>
    %256 = arith.addf %254, %255 : vector<8x128xf32>
    %257 = math.rsqrt %256 : vector<8x128xf32>
    %258 = arith.mulf %254, %257 : vector<8x128xf32>
    %259 = arith.mulf %250, %257 : vector<8x128xf32>
    %cst_94 = arith.constant -1.000000e+00 : f32
    %cst_95 = arith.constant 1.000000e+00 : f32
    %260 = vector.broadcast %cst_94 : f32 to vector<8x128xf32>
    %261 = arith.maximumf %260, %259 : vector<8x128xf32>
    %262 = vector.broadcast %cst_95 : f32 to vector<8x128xf32>
    %263 = arith.minimumf %262, %261 : vector<8x128xf32>
    %264 = math.absf %263 : vector<8x128xf32>
    %cst_96 = arith.constant -1.872930e-02 : f32
    %265 = vector.broadcast %cst_96 : f32 to vector<8x128xf32>
    %266 = arith.mulf %264, %265 : vector<8x128xf32>
    %cst_97 = arith.constant 7.426100e-02 : f32
    %267 = vector.broadcast %cst_97 : f32 to vector<8x128xf32>
    %268 = arith.addf %267, %266 : vector<8x128xf32>
    %269 = arith.mulf %264, %268 : vector<8x128xf32>
    %cst_98 = arith.constant -0.212114394 : f32
    %270 = vector.broadcast %cst_98 : f32 to vector<8x128xf32>
    %271 = arith.addf %270, %269 : vector<8x128xf32>
    %272 = arith.mulf %264, %271 : vector<8x128xf32>
    %cst_99 = arith.constant 1.57072878 : f32
    %273 = vector.broadcast %cst_99 : f32 to vector<8x128xf32>
    %274 = arith.addf %273, %272 : vector<8x128xf32>
    %cst_100 = arith.constant 1.000000e+00 : f32
    %275 = vector.broadcast %cst_100 : f32 to vector<8x128xf32>
    %276 = arith.subf %275, %264 : vector<8x128xf32>
    %277 = math.sqrt %276 : vector<8x128xf32>
    %278 = arith.mulf %277, %274 : vector<8x128xf32>
    %cst_101 = arith.constant 0.000000e+00 : f32
    %279 = vector.broadcast %cst_101 : f32 to vector<8x128xf32>
    %280 = arith.cmpf olt, %263, %279 : vector<8x128xf32>
    %cst_102 = arith.constant 3.14159274 : f32
    %281 = vector.broadcast %cst_102 : f32 to vector<8x128xf32>
    %282 = arith.subf %281, %278 : vector<8x128xf32>
    %283 = arith.select %280, %282, %278 : vector<8x128xi1>, vector<8x128xf32>
    %cst_103 = arith.constant -5.000000e-02 : f32
    %284 = vector.broadcast %cst_103 : f32 to vector<8x128xf32>
    %285 = arith.mulf %284, %283 : vector<8x128xf32>
    %286 = arith.mulf %285, %285 : vector<8x128xf32>
    %cst_104 = arith.constant 0.0416666679 : f32
    %287 = vector.broadcast %cst_104 : f32 to vector<8x128xf32>
    %288 = arith.mulf %286, %287 : vector<8x128xf32>
    %cst_105 = arith.constant -5.000000e-01 : f32
    %289 = vector.broadcast %cst_105 : f32 to vector<8x128xf32>
    %290 = arith.addf %289, %288 : vector<8x128xf32>
    %291 = arith.mulf %286, %290 : vector<8x128xf32>
    %cst_106 = arith.constant 1.000000e+00 : f32
    %292 = vector.broadcast %cst_106 : f32 to vector<8x128xf32>
    %293 = arith.addf %292, %291 : vector<8x128xf32>
    %cst_107 = arith.constant -0.166666672 : f32
    %294 = vector.broadcast %cst_107 : f32 to vector<8x128xf32>
    %295 = arith.mulf %286, %294 : vector<8x128xf32>
    %cst_108 = arith.constant 1.000000e+00 : f32
    %296 = vector.broadcast %cst_108 : f32 to vector<8x128xf32>
    %297 = arith.addf %296, %295 : vector<8x128xf32>
    %298 = arith.mulf %285, %297 : vector<8x128xf32>
    %299 = arith.mulf %258, %293 : vector<8x128xf32>
    %300 = arith.mulf %258, %298 : vector<8x128xf32>
    %cst_109 = arith.constant 0.000000e+00 : f32
    %301 = vector.broadcast %cst_109 : f32 to vector<8x128xf32>
    %302 = arith.cmpf olt, %251, %301 : vector<8x128xf32>
    %303 = arith.select %302, %299, %250 : vector<8x128xi1>, vector<8x128xf32>
    %304 = arith.select %302, %300, %251 : vector<8x128xi1>, vector<8x128xf32>
    %305 = tpu.concatenate %303, %304 in 1 : vector<8x128xf32>, vector<8x128xf32> -> vector<8x256xf32>
    %c0_110 = arith.constant 0 : index
    %c0_111 = arith.constant 0 : index
    %306 = vector.load %arg12[%c0_110, %c0_111] : memref<256x128xf32, #tpu.memory_space<vmem>>, vector<256x128xf32>
    %cst_112 = arith.constant dense<0.000000e+00> : vector<8x128xf32>
    %307 = tpu.matmul %305, %306, %cst_112 {dimension_numbers = #tpu.dot_dimension_numbers<[1], [0], [0], [1], [0, 0, 1, 1], [], []>} : vector<8x256xf32>, vector<256x128xf32>, vector<8x128xf32> -> vector<8x128xf32>
    %c0_113 = arith.constant 0 : index
    %c0_114 = arith.constant 0 : index
    %308 = vector.load %arg13[%c0_113, %c0_114] : memref<1x128xf32, #tpu.memory_space<vmem>>, vector<1x128xf32>
    %309 = vector.broadcast %308 : vector<1x128xf32> to vector<8x128xf32>
    %310 = arith.addf %307, %309 : vector<8x128xf32>
    %311 = arith.negf %310 : vector<8x128xf32>
    %312 = math.exp %311 : vector<8x128xf32>
    %cst_115 = arith.constant 1.000000e+00 : f32
    %313 = vector.broadcast %cst_115 : f32 to vector<8x128xf32>
    %314 = arith.addf %313, %312 : vector<8x128xf32>
    %315 = arith.divf %313, %314 : vector<8x128xf32>
    %c0_116 = arith.constant 0 : index
    %c0_117 = arith.constant 0 : index
    %316 = vector.load %arg14[%c0_116, %c0_117] : memref<8x128xf32, #tpu.memory_space<vmem>>, vector<8x128xf32>
    tpu.vector_store %arg14[%c0_116, %c0_117], %315 {strides = array<i32>} : memref<8x128xf32, #tpu.memory_space<vmem>>, vector<8x128xf32>,
    return
  }
  func.func @transform_0(%arg0: i32) -> (i32, i32) {
    %c0_i32 = arith.constant 0 : i32
    %c0_i32_0 = arith.constant 0 : i32
    return %arg0, %c0_i32 : i32, i32
  }
  func.func @transform_1(%arg0: i32) -> (i32, i32) {
    %c0_i32 = arith.constant 0 : i32
    %c0_i32_0 = arith.constant 0 : i32
    %c0_i32_1 = arith.constant 0 : i32
    return %c0_i32, %c0_i32_0 : i32, i32
  }
  func.func @transform_2(%arg0: i32) -> (i32, i32) {
    %c0_i32 = arith.constant 0 : i32
    %c0_i32_0 = arith.constant 0 : i32
    %c0_i32_1 = arith.constant 0 : i32
    return %c0_i32, %c0_i32_0 : i32, i32
  }
  func.func @transform_3(%arg0: i32) -> (i32, i32) {
    %c0_i32 = arith.constant 0 : i32
    %c0_i32_0 = arith.constant 0 : i32
    %c0_i32_1 = arith.constant 0 : i32
    return %c0_i32, %c0_i32_0 : i32, i32
  }
  func.func @transform_4(%arg0: i32) -> (i32, i32) {
    %c0_i32 = arith.constant 0 : i32
    %c0_i32_0 = arith.constant 0 : i32
    %c0_i32_1 = arith.constant 0 : i32
    return %c0_i32, %c0_i32_0 : i32, i32
  }
  func.func @transform_5(%arg0: i32) -> (i32, i32) {
    %c0_i32 = arith.constant 0 : i32
    %c0_i32_0 = arith.constant 0 : i32
    %c0_i32_1 = arith.constant 0 : i32
    return %c0_i32, %c0_i32_0 : i32, i32
  }
  func.func @transform_6(%arg0: i32) -> (i32, i32) {
    %c0_i32 = arith.constant 0 : i32
    %c0_i32_0 = arith.constant 0 : i32
    %c0_i32_1 = arith.constant 0 : i32
    return %c0_i32, %c0_i32_0 : i32, i32
  }
  func.func @transform_7(%arg0: i32) -> (i32, i32) {
    %c0_i32 = arith.constant 0 : i32
    %c0_i32_0 = arith.constant 0 : i32
    %c0_i32_1 = arith.constant 0 : i32
    return %c0_i32, %c0_i32_0 : i32, i32
  }
  func.func @transform_8(%arg0: i32) -> (i32, i32) {
    %c0_i32 = arith.constant 0 : i32
    %c0_i32_0 = arith.constant 0 : i32
    %c0_i32_1 = arith.constant 0 : i32
    return %c0_i32, %c0_i32_0 : i32, i32
  }
  func.func @transform_9(%arg0: i32) -> (i32, i32) {
    %c0_i32 = arith.constant 0 : i32
    %c0_i32_0 = arith.constant 0 : i32
    %c0_i32_1 = arith.constant 0 : i32
    return %c0_i32, %c0_i32_0 : i32, i32
  }
  func.func @transform_10(%arg0: i32) -> (i32, i32) {
    %c0_i32 = arith.constant 0 : i32
    %c0_i32_0 = arith.constant 0 : i32
    %c0_i32_1 = arith.constant 0 : i32
    return %c0_i32, %c0_i32_0 : i32, i32
  }
  func.func @transform_11(%arg0: i32) -> (i32, i32) {
    %c0_i32 = arith.constant 0 : i32
    %c0_i32_0 = arith.constant 0 : i32
    %c0_i32_1 = arith.constant 0 : i32
    return %c0_i32, %c0_i32_0 : i32, i32
  }
  func.func @transform_12(%arg0: i32) -> (i32, i32) {
    %c0_i32 = arith.constant 0 : i32
    %c0_i32_0 = arith.constant 0 : i32
    %c0_i32_1 = arith.constant 0 : i32
    return %c0_i32, %c0_i32_0 : i32, i32
  }
  func.func @transform_13(%arg0: i32) -> (i32, i32) {
    %c0_i32 = arith.constant 0 : i32
    %c0_i32_0 = arith.constant 0 : i32
    return %arg0, %c0_i32 : i32, i32
  }
}

</mosaic_0001>

<llo_original>
// kernel: tpu_custom_call.1
$region0: #{tpu_custom_call.1}
  #allocation0 [shape = 'u32[]', space=smem, size = 0x4, offset = 0x4, fixed_abs, tag = 'smem constant byte address 0x4 - core index']
  #allocation1 [shape = 'u32[144,128]{1,0:T(1,128)}', space=vmem, size = 0x12000, scoped, tag = 'internal scratch']
  %s0 = inlined_call_operand.hbm [shape: f32[16,896], index: 0, kind: input, shape index: {}]
  %s1 = inlined_call_operand.hbm [shape: f32[896,512], index: 1, kind: input, shape index: {}]
  %s2 = inlined_call_operand.hbm [shape: f32[1,512], index: 2, kind: input, shape index: {}]
  %s3 = inlined_call_operand.hbm [shape: f32[512,512], index: 3, kind: input, shape index: {}]
  %s4 = inlined_call_operand.hbm [shape: f32[1,512], index: 4, kind: input, shape index: {}]
  %s5 = inlined_call_operand.hbm [shape: f32[512,256], index: 5, kind: input, shape index: {}]
  %s6 = inlined_call_operand.hbm [shape: f32[1,256], index: 6, kind: input, shape index: {}]
  %s7 = inlined_call_operand.hbm [shape: f32[256,256], index: 7, kind: input, shape index: {}]
  %s8 = inlined_call_operand.hbm [shape: f32[1,256], index: 8, kind: input, shape index: {}]
  %s9 = inlined_call_operand.hbm [shape: f32[256,256], index: 9, kind: input, shape index: {}]
  %s10 = inlined_call_operand.hbm [shape: f32[1,256], index: 10, kind: input, shape index: {}]
  %s11 = inlined_call_operand.hbm [shape: f32[256,128], index: 11, kind: input, shape index: {}]
  %s12 = inlined_call_operand.hbm [shape: f32[1,128], index: 12, kind: input, shape index: {}]
  %s13 = inlined_call_operand.hbm [shape: f32[16,128], index: 13, kind: output, shape index: {}]
  %s14 = sld [smem:[#allocation0]]
  $region137: #{tpu_custom_call.1} parent=0
    _
  %s16 = ssub.s32 1, %s14
  %s17 = scalar_select 0, %s16, %s14
  $region1: #{tpu_custom_call.1} parent=0
    #allocation2 [shape = 'u8[57344]{0}', space=vmem, size = 0xe000, scoped, tag = 'input window, operand 0']
    #allocation3 [shape = 's32[2]{0}', space=sflag, size = 0x8, scoped, tag = 'scoped memory for tpu_custom_call.1']
    #allocation4 [shape = 's32[2]{0}', space=sflag, size = 0x8, scoped, tag = 'scoped memory for tpu_custom_call.1']
    #allocation5 [shape = 'u8[1835008]{0}', space=vmem, size = 0x1c0000, scoped, tag = 'input window, operand 1, single buffered']
    #allocation6 [shape = 's32[1]{0}', space=sflag, size = 0x4, scoped, tag = 'scoped memory for tpu_custom_call.1']
    #allocation7 [shape = 'u8[2048]{0}', space=vmem, size = 0x800, scoped, tag = 'input window, operand 2, single buffered']
    #allocation8 [shape = 'u8[1048576]{0}', space=vmem, size = 0x100000, scoped, tag = 'input window, operand 3, single buffered']
    #allocation9 [shape = 's32[1]{0}', space=sflag, size = 0x4, scoped, tag = 'scoped memory for tpu_custom_call.1']
    #allocation10 [shape = 'u8[2048]{0}', space=vmem, size = 0x800, scoped, tag = 'input window, operand 4, single buffered']
    #allocation11 [shape = 'u8[524288]{0}', space=vmem, size = 0x80000, scoped, tag = 'input window, operand 5, single buffered']
    #allocation12 [shape = 's32[1]{0}', space=sflag, size = 0x4, scoped, tag = 'scoped memory for tpu_custom_call.1']
    #allocation13 [shape = 'u8[1024]{0}', space=vmem, size = 0x400, scoped, tag = 'input window, operand 6, single buffered']
    #allocation14 [shape = 'u8[262144]{0}', space=vmem, size = 0x40000, scoped, tag = 'input window, operand 7, single buffered']
    #allocation15 [shape = 's32[1]{0}', space=sflag, size = 0x4, scoped, tag = 'scoped memory for tpu_custom_call.1']
    #allocation16 [shape = 'u8[1024]{0}', space=vmem, size = 0x400, scoped, tag = 'input window, operand 8, single buffered']
    #allocation17 [shape = 'u8[262144]{0}', space=vmem, size = 0x40000, scoped, tag = 'input window, operand 9, single buffered']
    #allocation18 [shape = 's32[1]{0}', space=sflag, size = 0x4, scoped, tag = 'scoped memory for tpu_custom_call.1']
    #allocation19 [shape = 'u8[1024]{0}', space=vmem, size = 0x400, scoped, tag = 'input window, operand 10, single buffered']
    #allocation20 [shape = 'u8[131072]{0}', space=vmem, size = 0x20000, scoped, tag = 'input window, operand 11, single buffered']
    #allocation21 [shape = 's32[1]{0}', space=sflag, size = 0x4, scoped, tag = 'scoped memory for tpu_custom_call.1']
    #allocation22 [shape = 'u8[512]{0}', space=vmem, size = 0x400, scoped, tag = 'input window, operand 12, single buffered']
    #allocation23 [shape = 'u8[8192]{0}', space=vmem, size = 0x2000, scoped, tag = 'output window, operand 0']
    %18 = vsyncpa [#allocation3], 0
    %s19 = scalar_lea.sflag [#allocation3], 1
    %20 = vsyncpa %s19, 0
    %21 = vsyncpa [#allocation6], 0
    %22 = vsyncpa [#allocation9], 0
    %23 = vsyncpa [#allocation12], 0
    %24 = vsyncpa [#allocation15], 0
    %25 = vsyncpa [#allocation18], 0
    %26 = vsyncpa [#allocation21], 0
    %27 = vsyncpa [#allocation4], 0
    %s28 = scalar_lea.sflag [#allocation4], 1
    %29 = vsyncpa %s28, 0
    loop: start=0, step=1, limit=4
    $region2: #{tpu_custom_call.1} parent=1 // loop_pre_header
      _
    $region3: #{tpu_custom_call.1} parent=1 // loop_header
      %s31 = sphi 0, %s35
      %p32 = scmp.ge.s32.totalorder %s31, 4
      %s41 = sphi 0, %s43
      %s44 = sphi 0, %s41
      %s45 = sphi 0, %s44
      %s61 = sphi 0, %s45
      %s65 = sphi 0, %s65
      %s67 = sphi 0, %s65
      %s68 = sphi 0, %s67
      %s82 = sphi 0, %s68
      %s86 = sphi 0, %s86
      %s88 = sphi 0, %s86
      %s89 = sphi 0, %s88
      %s103 = sphi 0, %s89
      %s107 = sphi 0, %s107
      %s109 = sphi 0, %s107
      %s110 = sphi 0, %s109
      %s124 = sphi 0, %s110
      %s128 = sphi 0, %s128
      %s130 = sphi 0, %s128
      %s131 = sphi 0, %s130
      %s145 = sphi 0, %s131
      %s149 = sphi 0, %s149
      %s151 = sphi 0, %s149
      %s152 = sphi 0, %s151
      %s166 = sphi 0, %s152
      %s170 = sphi 0, %s170
      %s172 = sphi 0, %s170
      %s173 = sphi 0, %s172
      %s187 = sphi 0, %s173
      %s191 = sphi 0, %s191
      %s193 = sphi 0, %s191
      %s194 = sphi 0, %s193
      %s208 = sphi 0, %s194
      %s212 = sphi 0, %s212
      %s214 = sphi 0, %s212
      %s215 = sphi 0, %s214
      %s229 = sphi 0, %s215
      %s233 = sphi 0, %s233
      %s235 = sphi 0, %s233
      %s236 = sphi 0, %s235
      %s250 = sphi 0, %s236
      %s254 = sphi 0, %s254
      %s256 = sphi 0, %s254
      %s257 = sphi 0, %s256
      %s271 = sphi 0, %s257
      %s275 = sphi 0, %s275
      %s277 = sphi 0, %s275
      %s278 = sphi 0, %s277
      %s292 = sphi 0, %s278
      %s296 = sphi 0, %s296
      %s298 = sphi 0, %s296
      %s299 = sphi 0, %s298
      %s313 = sphi 0, %s299
      %s319 = sphi 0, %s321
      %s322 = sphi 0, %s319
      %s323 = sphi 0, %s322
      %s339 = sphi 0, %s323
    $region4: #{tpu_custom_call.1} parent=1 // loop_header_branch
      %34 = sbr.rel (%p32) target = $region8
    $region5: #{tpu_custom_call.1} parent=1 // loop_body
      %s36 = ssub.s32 %s31, 1
      %s37 = ssub.s32 %s31, 2
      %s38 = sadd.s32 %s31, 1
      %s39 = ssub.s32 %s31, %s38
      %p40 = scmp.eq.s32.totalorder %s39, 0
      %s42 = sadd.s32 %s41, 1
      %s43 = scalar_select %p40, %s41, %s42
      %p46 = pneg %p40
      %p47 = scmp.eq.s32.totalorder %s31, 1
      %p48 = por %p46, %p47
      %p49 = scmp.ne.s32.totalorder %s41, %s44
      %p50 = scmp.eq.s32.totalorder %s31, 0
      %p51 = por %p49, %p50
      %p52 = scmp.ne.s32.totalorder %s41, %s44
      %p53 = scmp.eq.s32.totalorder %s36, 1
      %p54 = por %p52, %p53
      %p55 = scmp.ne.s32.totalorder %s44, %s45
      %p56 = scmp.eq.s32.totalorder %s36, 0
      %p57 = por %p55, %p56
      %p58 = scmp.ne.s32.totalorder %s44, %s45
      %p59 = scmp.eq.s32.totalorder %s37, 1
      %p60 = por %p58, %p59
      %p62 = scmp.ne.s32.totalorder %s45, %s61
      %p63 = scmp.eq.s32.totalorder %s37, 0
      %p64 = por %p62, %p63
      %s66 = sadd.s32 %s65, 1
      %p69 = scmp.eq.s32.totalorder %s31, 1
      %p70 = scmp.ne.s32.totalorder %s65, %s67
      %p71 = scmp.eq.s32.totalorder %s31, 0
      %p72 = por %p70, %p71
      %p73 = scmp.ne.s32.totalorder %s65, %s67
      %p74 = scmp.eq.s32.totalorder %s36, 1
      %p75 = por %p73, %p74
      %p76 = scmp.ne.s32.totalorder %s67, %s68
      %p77 = scmp.eq.s32.totalorder %s36, 0
      %p78 = por %p76, %p77
      %p79 = scmp.ne.s32.totalorder %s67, %s68
      %p80 = scmp.eq.s32.totalorder %s37, 1
      %p81 = por %p79, %p80
      %p83 = scmp.ne.s32.totalorder %s68, %s82
      %p84 = scmp.eq.s32.totalorder %s37, 0
      %p85 = por %p83, %p84
      %s87 = sadd.s32 %s86, 1
      %p90 = scmp.eq.s32.totalorder %s31, 1
      %p91 = scmp.ne.s32.totalorder %s86, %s88
      %p92 = scmp.eq.s32.totalorder %s31, 0
      %p93 = por %p91, %p92
      %p94 = scmp.ne.s32.totalorder %s86, %s88
      %p95 = scmp.eq.s32.totalorder %s36, 1
      %p96 = por %p94, %p95
      %p97 = scmp.ne.s32.totalorder %s88, %s89
      %p98 = scmp.eq.s32.totalorder %s36, 0
      %p99 = por %p97, %p98
      %p100 = scmp.ne.s32.totalorder %s88, %s89
      %p101 = scmp.eq.s32.totalorder %s37, 1
      %p102 = por %p100, %p101
      %p104 = scmp.ne.s32.totalorder %s89, %s103
      %p105 = scmp.eq.s32.totalorder %s37, 0
      %p106 = por %p104, %p105
      %s108 = sadd.s32 %s107, 1
      %p111 = scmp.eq.s32.totalorder %s31, 1
      %p112 = scmp.ne.s32.totalorder %s107, %s109
      %p113 = scmp.eq.s32.totalorder %s31, 0
      %p114 = por %p112, %p113
      %p115 = scmp.ne.s32.totalorder %s107, %s109
      %p116 = scmp.eq.s32.totalorder %s36, 1
      %p117 = por %p115, %p116
      %p118 = scmp.ne.s32.totalorder %s109, %s110
      %p119 = scmp.eq.s32.totalorder %s36, 0
      %p120 = por %p118, %p119
      %p121 = scmp.ne.s32.totalorder %s109, %s110
      %p122 = scmp.eq.s32.totalorder %s37, 1
      %p123 = por %p121, %p122
      %p125 = scmp.ne.s32.totalorder %s110, %s124
      %p126 = scmp.eq.s32.totalorder %s37, 0
      %p127 = por %p125, %p126
      %s129 = sadd.s32 %s128, 1
      %p132 = scmp.eq.s32.totalorder %s31, 1
      %p133 = scmp.ne.s32.totalorder %s128, %s130
      %p134 = scmp.eq.s32.totalorder %s31, 0
      %p135 = por %p133, %p134
      %p136 = scmp.ne.s32.totalorder %s128, %s130
      %p137 = scmp.eq.s32.totalorder %s36, 1
      %p138 = por %p136, %p137
      %p139 = scmp.ne.s32.totalorder %s130, %s131
      %p140 = scmp.eq.s32.totalorder %s36, 0
      %p141 = por %p139, %p140
      %p142 = scmp.ne.s32.totalorder %s130, %s131
      %p143 = scmp.eq.s32.totalorder %s37, 1
      %p144 = por %p142, %p143
      %p146 = scmp.ne.s32.totalorder %s131, %s145
      %p147 = scmp.eq.s32.totalorder %s37, 0
      %p148 = por %p146, %p147
      %s150 = sadd.s32 %s149, 1
      %p153 = scmp.eq.s32.totalorder %s31, 1
      %p154 = scmp.ne.s32.totalorder %s149, %s151
      %p155 = scmp.eq.s32.totalorder %s31, 0
      %p156 = por %p154, %p155
      %p157 = scmp.ne.s32.totalorder %s149, %s151
      %p158 = scmp.eq.s32.totalorder %s36, 1
      %p159 = por %p157, %p158
      %p160 = scmp.ne.s32.totalorder %s151, %s152
      %p161 = scmp.eq.s32.totalorder %s36, 0
      %p162 = por %p160, %p161
      %p163 = scmp.ne.s32.totalorder %s151, %s152
      %p164 = scmp.eq.s32.totalorder %s37, 1
      %p165 = por %p163, %p164
      %p167 = scmp.ne.s32.totalorder %s152, %s166
      %p168 = scmp.eq.s32.totalorder %s37, 0
      %p169 = por %p167, %p168
      %s171 = sadd.s32 %s170, 1
      %p174 = scmp.eq.s32.totalorder %s31, 1
      %p175 = scmp.ne.s32.totalorder %s170, %s172
      %p176 = scmp.eq.s32.totalorder %s31, 0
      %p177 = por %p175, %p176
      %p178 = scmp.ne.s32.totalorder %s170, %s172
      %p179 = scmp.eq.s32.totalorder %s36, 1
      %p180 = por %p178, %p179
      %p181 = scmp.ne.s32.totalorder %s172, %s173
      %p182 = scmp.eq.s32.totalorder %s36, 0
      %p183 = por %p181, %p182
      %p184 = scmp.ne.s32.totalorder %s172, %s173
      %p185 = scmp.eq.s32.totalorder %s37, 1
      %p186 = por %p184, %p185
      %p188 = scmp.ne.s32.totalorder %s173, %s187
      %p189 = scmp.eq.s32.totalorder %s37, 0
      %p190 = por %p188, %p189
      %s192 = sadd.s32 %s191, 1
      %p195 = scmp.eq.s32.totalorder %s31, 1
      %p196 = scmp.ne.s32.totalorder %s191, %s193
      %p197 = scmp.eq.s32.totalorder %s31, 0
      %p198 = por %p196, %p197
      %p199 = scmp.ne.s32.totalorder %s191, %s193
      %p200 = scmp.eq.s32.totalorder %s36, 1
      %p201 = por %p199, %p200
      %p202 = scmp.ne.s32.totalorder %s193, %s194
      %p203 = scmp.eq.s32.totalorder %s36, 0
      %p204 = por %p202, %p203
      %p205 = scmp.ne.s32.totalorder %s193, %s194
      %p206 = scmp.eq.s32.totalorder %s37, 1
      %p207 = por %p205, %p206
      %p209 = scmp.ne.s32.totalorder %s194, %s208
      %p210 = scmp.eq.s32.totalorder %s37, 0
      %p211 = por %p209, %p210
      %s213 = sadd.s32 %s212, 1
      %p216 = scmp.eq.s32.totalorder %s31, 1
      %p217 = scmp.ne.s32.totalorder %s212, %s214
      %p218 = scmp.eq.s32.totalorder %s31, 0
      %p219 = por %p217, %p218
      %p220 = scmp.ne.s32.totalorder %s212, %s214
      %p221 = scmp.eq.s32.totalorder %s36, 1
      %p222 = por %p220, %p221
      %p223 = scmp.ne.s32.totalorder %s214, %s215
      %p224 = scmp.eq.s32.totalorder %s36, 0
      %p225 = por %p223, %p224
      %p226 = scmp.ne.s32.totalorder %s214, %s215
      %p227 = scmp.eq.s32.totalorder %s37, 1
      %p228 = por %p226, %p227
      %p230 = scmp.ne.s32.totalorder %s215, %s229
      %p231 = scmp.eq.s32.totalorder %s37, 0
      %p232 = por %p230, %p231
      %s234 = sadd.s32 %s233, 1
      %p237 = scmp.eq.s32.totalorder %s31, 1
      %p238 = scmp.ne.s32.totalorder %s233, %s235
      %p239 = scmp.eq.s32.totalorder %s31, 0
      %p240 = por %p238, %p239
      %p241 = scmp.ne.s32.totalorder %s233, %s235
      %p242 = scmp.eq.s32.totalorder %s36, 1
      %p243 = por %p241, %p242
      %p244 = scmp.ne.s32.totalorder %s235, %s236
      %p245 = scmp.eq.s32.totalorder %s36, 0
      %p246 = por %p244, %p245
      %p247 = scmp.ne.s32.totalorder %s235, %s236
      %p248 = scmp.eq.s32.totalorder %s37, 1
      %p249 = por %p247, %p248
      %p251 = scmp.ne.s32.totalorder %s236, %s250
      %p252 = scmp.eq.s32.totalorder %s37, 0
      %p253 = por %p251, %p252
      %s255 = sadd.s32 %s254, 1
      %p258 = scmp.eq.s32.totalorder %s31, 1
      %p259 = scmp.ne.s32.totalorder %s254, %s256
      %p260 = scmp.eq.s32.totalorder %s31, 0
      %p261 = por %p259, %p260
      %p262 = scmp.ne.s32.totalorder %s254, %s256
      %p263 = scmp.eq.s32.totalorder %s36, 1
      %p264 = por %p262, %p263
      %p265 = scmp.ne.s32.totalorder %s256, %s257
      %p266 = scmp.eq.s32.totalorder %s36, 0
      %p267 = por %p265, %p266
      %p268 = scmp.ne.s32.totalorder %s256, %s257
      %p269 = scmp.eq.s32.totalorder %s37, 1
      %p270 = por %p268, %p269
      %p272 = scmp.ne.s32.totalorder %s257, %s271
      %p273 = scmp.eq.s32.totalorder %s37, 0
      %p274 = por %p272, %p273
      %s276 = sadd.s32 %s275, 1
      %p279 = scmp.eq.s32.totalorder %s31, 1
      %p280 = scmp.ne.s32.totalorder %s275, %s277
      %p281 = scmp.eq.s32.totalorder %s31, 0
      %p282 = por %p280, %p281
      %p283 = scmp.ne.s32.totalorder %s275, %s277
      %p284 = scmp.eq.s32.totalorder %s36, 1
      %p285 = por %p283, %p284
      %p286 = scmp.ne.s32.totalorder %s277, %s278
      %p287 = scmp.eq.s32.totalorder %s36, 0
      %p288 = por %p286, %p287
      %p289 = scmp.ne.s32.totalorder %s277, %s278
      %p290 = scmp.eq.s32.totalorder %s37, 1
      %p291 = por %p289, %p290
      %p293 = scmp.ne.s32.totalorder %s278, %s292
      %p294 = scmp.eq.s32.totalorder %s37, 0
      %p295 = por %p293, %p294
      %s297 = sadd.s32 %s296, 1
      %p300 = scmp.eq.s32.totalorder %s31, 1
      %p301 = scmp.ne.s32.totalorder %s296, %s298
      %p302 = scmp.eq.s32.totalorder %s31, 0
      %p303 = por %p301, %p302
      %p304 = scmp.ne.s32.totalorder %s296, %s298
      %p305 = scmp.eq.s32.totalorder %s36, 1
      %p306 = por %p304, %p305
      %p307 = scmp.ne.s32.totalorder %s298, %s299
      %p308 = scmp.eq.s32.totalorder %s36, 0
      %p309 = por %p307, %p308
      %p310 = scmp.ne.s32.totalorder %s298, %s299
      %p311 = scmp.eq.s32.totalorder %s37, 1
      %p312 = por %p310, %p311
      %p314 = scmp.ne.s32.totalorder %s299, %s313
      %p315 = scmp.eq.s32.totalorder %s37, 0
      %p316 = por %p314, %p315
      %s317 = ssub.s32 %s31, %s38
      %p318 = scmp.eq.s32.totalorder %s317, 0
      %s320 = sadd.s32 %s319, 1
      %s321 = scalar_select %p318, %s319, %s320
      %p324 = pneg %p318
      %p325 = scmp.eq.s32.totalorder %s31, 1
      %p326 = por %p324, %p325
      %p327 = scmp.ne.s32.totalorder %s319, %s322
      %p328 = scmp.eq.s32.totalorder %s31, 0
      %p329 = por %p327, %p328
      %p330 = scmp.ne.s32.totalorder %s319, %s322
      %p331 = scmp.eq.s32.totalorder %s36, 1
      %p332 = por %p330, %p331
      %p333 = scmp.ne.s32.totalorder %s322, %s323
      %p334 = scmp.eq.s32.totalorder %s36, 0
      %p335 = por %p333, %p334
      %p336 = scmp.ne.s32.totalorder %s322, %s323
      %p337 = scmp.eq.s32.totalorder %s37, 1
      %p338 = por %p336, %p337
      %p340 = scmp.ne.s32.totalorder %s323, %s339
      %p341 = scmp.eq.s32.totalorder %s37, 0
      %p342 = por %p340, %p341
      %p343 = scmp.le.s32.totalorder 1, %s31
      %p344 = scmp.lt.s32.totalorder %s31, 3
      %p345 = pnand %p343, %p344
      %p346 = pneg %p345
      // Predicated region
      $region9: #{tpu_custom_call.1} parent=5 // pred_check
        _
      $region10: #{tpu_custom_call.1} parent=5 // pred_check_branch
        %348 = sbr.rel (%p345) target = $region12
      $region11: #{tpu_custom_call.1} parent=5 // pred_region
        %s349 = ssub.s32 %s31, 1
        // Predicated region
        $region13: #{tpu_custom_call.1} parent=11 // pred_check
          %p350 = pneg %p78
        $region14: #{tpu_custom_call.1} parent=11 // pred_check_branch
          %352 = sbr.rel (%p350) target = $region16
        $region15: #{tpu_custom_call.1} parent=11 // pred_region
          %s354 = ssub.s32 57344, 57344
          %355 = vsyncadd [#allocation6], %s354
          %s356 = sshll.u32 [#allocation5], 4
          %s357 = int_to_ptr.vmem [resolvable:$true] %s356
          %362 = dma.hbm_to_vmem [thread:$0]  %s1, 57344, %s357, [#allocation6], 512, 512, 32
        $region16: #{tpu_custom_call.1} parent=11 // pred_fallthru
          _
        // Predicated region
        $region17: #{tpu_custom_call.1} parent=11 // pred_check
          %p363 = pneg %p99
        $region18: #{tpu_custom_call.1} parent=11 // pred_check_branch
          %365 = sbr.rel (%p363) target = $region20
        $region19: #{tpu_custom_call.1} parent=11 // pred_region
          %s367 = ssub.s32 64, 64
          %368 = vsyncadd [#allocation6], %s367
          %s370 = sshll.u32 [#allocation7], 4
          %s371 = int_to_ptr.vmem [resolvable:$true] %s370
          %373 = dma.hbm_to_vmem [thread:$0]  %s2, 64, %s371, [#allocation6]
        $region20: #{tpu_custom_call.1} parent=11 // pred_fallthru
          _
        // Predicated region
        $region21: #{tpu_custom_call.1} parent=11 // pred_check
          %p374 = pneg %p120
        $region22: #{tpu_custom_call.1} parent=11 // pred_check_branch
          %376 = sbr.rel (%p374) target = $region24
        $region23: #{tpu_custom_call.1} parent=11 // pred_region
          %s378 = ssub.s32 32768, 32768
          %379 = vsyncadd [#allocation9], %s378
          %s380 = sshll.u32 [#allocation8], 4
          %s381 = int_to_ptr.vmem [resolvable:$true] %s380
          %386 = dma.hbm_to_vmem [thread:$0]  %s3, 32768, %s381, [#allocation9], 512, 512, 32
        $region24: #{tpu_custom_call.1} parent=11 // pred_fallthru
          _
        // Predicated region
        $region25: #{tpu_custom_call.1} parent=11 // pred_check
          %p387 = pneg %p141
        $region26: #{tpu_custom_call.1} parent=11 // pred_check_branch
          %389 = sbr.rel (%p387) target = $region28
        $region27: #{tpu_custom_call.1} parent=11 // pred_region
          %s391 = ssub.s32 64, 64
          %392 = vsyncadd [#allocation9], %s391
          %s394 = sshll.u32 [#allocation10], 4
          %s395 = int_to_ptr.vmem [resolvable:$true] %s394
          %397 = dma.hbm_to_vmem [thread:$0]  %s4, 64, %s395, [#allocation9]
        $region28: #{tpu_custom_call.1} parent=11 // pred_fallthru
          _
        // Predicated region
        $region29: #{tpu_custom_call.1} parent=11 // pred_check
          %p398 = pneg %p162
        $region30: #{tpu_custom_call.1} parent=11 // pred_check_branch
          %400 = sbr.rel (%p398) target = $region32
        $region31: #{tpu_custom_call.1} parent=11 // pred_region
          %s402 = ssub.s32 16384, 16384
          %403 = vsyncadd [#allocation12], %s402
          %s404 = sshll.u32 [#allocation11], 4
          %s405 = int_to_ptr.vmem [resolvable:$true] %s404
          %410 = dma.hbm_to_vmem [thread:$0]  %s5, 16384, %s405, [#allocation12], 256, 256, 16
        $region32: #{tpu_custom_call.1} parent=11 // pred_fallthru
          _
        // Predicated region
        $region33: #{tpu_custom_call.1} parent=11 // pred_check
          %p411 = pneg %p183
        $region34: #{tpu_custom_call.1} parent=11 // pred_check_branch
          %413 = sbr.rel (%p411) target = $region36
        $region35: #{tpu_custom_call.1} parent=11 // pred_region
          %s415 = ssub.s32 32, 32
          %416 = vsyncadd [#allocation12], %s415
          %s418 = sshll.u32 [#allocation13], 4
          %s419 = int_to_ptr.vmem [resolvable:$true] %s418
          %421 = dma.hbm_to_vmem [thread:$0]  %s6, 32, %s419, [#allocation12]
        $region36: #{tpu_custom_call.1} parent=11 // pred_fallthru
          _
        // Predicated region
        $region37: #{tpu_custom_call.1} parent=11 // pred_check
          %p422 = pneg %p204
        $region38: #{tpu_custom_call.1} parent=11 // pred_check_branch
          %424 = sbr.rel (%p422) target = $region40
        $region39: #{tpu_custom_call.1} parent=11 // pred_region
          %s426 = ssub.s32 8192, 8192
          %427 = vsyncadd [#allocation15], %s426
          %s428 = sshll.u32 [#allocation14], 4
          %s429 = int_to_ptr.vmem [resolvable:$true] %s428
          %434 = dma.hbm_to_vmem [thread:$0]  %s7, 8192, %s429, [#allocation15], 256, 256, 16
        $region40: #{tpu_custom_call.1} parent=11 // pred_fallthru
          _
        // Predicated region
        $region41: #{tpu_custom_call.1} parent=11 // pred_check
          %p435 = pneg %p225
        $region42: #{tpu_custom_call.1} parent=11 // pred_check_branch
          %437 = sbr.rel (%p435) target = $region44
        $region43: #{tpu_custom_call.1} parent=11 // pred_region
          %s439 = ssub.s32 32, 32
          %440 = vsyncadd [#allocation15], %s439
          %s442 = sshll.u32 [#allocation16], 4
          %s443 = int_to_ptr.vmem [resolvable:$true] %s442
          %445 = dma.hbm_to_vmem [thread:$0]  %s8, 32, %s443, [#allocation15]
        $region44: #{tpu_custom_call.1} parent=11 // pred_fallthru
          _
        // Predicated region
        $region45: #{tpu_custom_call.1} parent=11 // pred_check
          %p446 = pneg %p246
        $region46: #{tpu_custom_call.1} parent=11 // pred_check_branch
          %448 = sbr.rel (%p446) target = $region48
        $region47: #{tpu_custom_call.1} parent=11 // pred_region
          %s450 = ssub.s32 8192, 8192
          %451 = vsyncadd [#allocation18], %s450
          %s452 = sshll.u32 [#allocation17], 4
          %s453 = int_to_ptr.vmem [resolvable:$true] %s452
          %458 = dma.hbm_to_vmem [thread:$0]  %s9, 8192, %s453, [#allocation18], 256, 256, 16
        $region48: #{tpu_custom_call.1} parent=11 // pred_fallthru
          _
        // Predicated region
        $region49: #{tpu_custom_call.1} parent=11 // pred_check
          %p459 = pneg %p267
        $region50: #{tpu_custom_call.1} parent=11 // pred_check_branch
          %461 = sbr.rel (%p459) target = $region52
        $region51: #{tpu_custom_call.1} parent=11 // pred_region
          %s463 = ssub.s32 32, 32
          %464 = vsyncadd [#allocation18], %s463
          %s466 = sshll.u32 [#allocation19], 4
          %s467 = int_to_ptr.vmem [resolvable:$true] %s466
          %469 = dma.hbm_to_vmem [thread:$0]  %s10, 32, %s467, [#allocation18]
        $region52: #{tpu_custom_call.1} parent=11 // pred_fallthru
          _
        // Predicated region
        $region53: #{tpu_custom_call.1} parent=11 // pred_check
          %p470 = pneg %p288
        $region54: #{tpu_custom_call.1} parent=11 // pred_check_branch
          %472 = sbr.rel (%p470) target = $region56
        $region55: #{tpu_custom_call.1} parent=11 // pred_region
          %s474 = ssub.s32 4096, 4096
          %475 = vsyncadd [#allocation21], %s474
          %s476 = sshll.u32 [#allocation20], 4
          %s477 = int_to_ptr.vmem [resolvable:$true] %s476
          %482 = dma.hbm_to_vmem [thread:$0]  %s11, 4096, %s477, [#allocation21], 128, 128, 8
        $region56: #{tpu_custom_call.1} parent=11 // pred_fallthru
          _
        // Predicated region
        $region57: #{tpu_custom_call.1} parent=11 // pred_check
          %p483 = pneg %p309
        $region58: #{tpu_custom_call.1} parent=11 // pred_check_branch
          %485 = sbr.rel (%p483) target = $region60
        $region59: #{tpu_custom_call.1} parent=11 // pred_region
          %s487 = ssub.s32 16, 16
          %488 = vsyncadd [#allocation21], %s487
          %s490 = sshll.u32 [#allocation22], 4
          %s491 = int_to_ptr.vmem [resolvable:$true] %s490
          %493 = dma.hbm_to_vmem [thread:$0]  %s12, 16, %s491, [#allocation21]
        $region60: #{tpu_custom_call.1} parent=11 // pred_fallthru
          _
      $region12: #{tpu_custom_call.1} parent=5 // pred_fallthru
        _
      %p494 = scmp.lt.s32.totalorder %s31, 2
      // Predicated region
      $region61: #{tpu_custom_call.1} parent=5 // pred_check
        %p495 = pneg %p494
      $region62: #{tpu_custom_call.1} parent=5 // pred_check_branch
        %497 = sbr.rel (%p495) target = $region64
      $region63: #{tpu_custom_call.1} parent=5 // pred_region
        // Predicated region
        $region65: #{tpu_custom_call.1} parent=63 // pred_check
          %p498 = pneg %p51
        $region66: #{tpu_custom_call.1} parent=63 // pred_check_branch
          %500 = sbr.rel (%p498) target = $region68
        $region67: #{tpu_custom_call.1} parent=63 // pred_region
          %s501 = sand.u32 %s41, 1
          %s502 = scalar_lea.sflag [#allocation3], %s501
          %s503 = sand.u32 %s41, 1
          %s504 = smul.addr %s503, 56
          %s505 = scalar_lea.vmem [#allocation2], %s504
          %s507 = ssub.s32 896, 896
          %508 = vsyncadd %s502, %s507
          %s509 = smul.addr %s31, 7
          %s510 = smul.addr %s509, 128
          %s511 = scalar_lea.hbm %s0, %s510
          %s513 = sshll.u32 %s505, 4
          %s514 = int_to_ptr.vmem [resolvable:$true] %s513
          %516 = dma.hbm_to_vmem [thread:$0]  %s511, 896, %s514, %s502
        $region68: #{tpu_custom_call.1} parent=63 // pred_fallthru
          _
      $region64: #{tpu_custom_call.1} parent=5 // pred_fallthru
        _
      %p517 = scmp.le.s32.totalorder 1, %s31
      %p518 = scmp.lt.s32.totalorder %s31, 3
      %p519 = pnand %p517, %p518
      %p520 = pneg %p519
      // Predicated region
      $region69: #{tpu_custom_call.1} parent=5 // pred_check
        _
      $region70: #{tpu_custom_call.1} parent=5 // pred_check_branch
        %522 = sbr.rel (%p519) target = $region72
      $region71: #{tpu_custom_call.1} parent=5 // pred_region
        %s523 = ssub.s32 %s31, 1
        %s524 = sand.u32 %s44, 1
        %s525 = scalar_lea.sflag [#allocation3], %s524
        %s526 = sand.u32 %s44, 1
        %s527 = smul.addr %s526, 56
        %s528 = scalar_lea.vmem [#allocation2], %s527
        // Predicated region
        $region73: #{tpu_custom_call.1} parent=71 // pred_check
          %p529 = pneg %p57
        $region74: #{tpu_custom_call.1} parent=71 // pred_check_branch
          %531 = sbr.rel (%p529) target = $region76
        $region75: #{tpu_custom_call.1} parent=71 // pred_region
          %532 = dma.done %s525, 896
        $region76: #{tpu_custom_call.1} parent=71 // pred_fallthru
          _
        // Predicated region
        $region77: #{tpu_custom_call.1} parent=71 // pred_check
          %p533 = pneg %p78
        $region78: #{tpu_custom_call.1} parent=71 // pred_check_branch
          %535 = sbr.rel (%p533) target = $region80
        $region79: #{tpu_custom_call.1} parent=71 // pred_region
          %536 = dma.done [#allocation6], 57344
        $region80: #{tpu_custom_call.1} parent=71 // pred_fallthru
          _
        // Predicated region
        $region81: #{tpu_custom_call.1} parent=71 // pred_check
          %p537 = pneg %p99
        $region82: #{tpu_custom_call.1} parent=71 // pred_check_branch
          %539 = sbr.rel (%p537) target = $region84
        $region83: #{tpu_custom_call.1} parent=71 // pred_region
          %540 = dma.done [#allocation6], 64
        $region84: #{tpu_custom_call.1} parent=71 // pred_fallthru
          _
        // Predicated region
        $region85: #{tpu_custom_call.1} parent=71 // pred_check
          %p541 = pneg %p120
        $region86: #{tpu_custom_call.1} parent=71 // pred_check_branch
          %543 = sbr.rel (%p541) target = $region88
        $region87: #{tpu_custom_call.1} parent=71 // pred_region
          %544 = dma.done [#allocation9], 32768
        $region88: #{tpu_custom_call.1} parent=71 // pred_fallthru
          _
        // Predicated region
        $region89: #{tpu_custom_call.1} parent=71 // pred_check
          %p545 = pneg %p141
        $region90: #{tpu_custom_call.1} parent=71 // pred_check_branch
          %547 = sbr.rel (%p545) target = $region92
        $region91: #{tpu_custom_call.1} parent=71 // pred_region
          %548 = dma.done [#allocation9], 64
        $region92: #{tpu_custom_call.1} parent=71 // pred_fallthru
          _
        // Predicated region
        $region93: #{tpu_custom_call.1} parent=71 // pred_check
          %p549 = pneg %p162
        $region94: #{tpu_custom_call.1} parent=71 // pred_check_branch
          %551 = sbr.rel (%p549) target = $region96
        $region95: #{tpu_custom_call.1} parent=71 // pred_region
          %552 = dma.done [#allocation12], 16384
        $region96: #{tpu_custom_call.1} parent=71 // pred_fallthru
          _
        // Predicated region
        $region97: #{tpu_custom_call.1} parent=71 // pred_check
          %p553 = pneg %p183
        $region98: #{tpu_custom_call.1} parent=71 // pred_check_branch
          %555 = sbr.rel (%p553) target = $region100
        $region99: #{tpu_custom_call.1} parent=71 // pred_region
          %556 = dma.done [#allocation12], 32
        $region100: #{tpu_custom_call.1} parent=71 // pred_fallthru
          _
        // Predicated region
        $region101: #{tpu_custom_call.1} parent=71 // pred_check
          %p557 = pneg %p204
        $region102: #{tpu_custom_call.1} parent=71 // pred_check_branch
          %559 = sbr.rel (%p557) target = $region104
        $region103: #{tpu_custom_call.1} parent=71 // pred_region
          %560 = dma.done [#allocation15], 8192
        $region104: #{tpu_custom_call.1} parent=71 // pred_fallthru
          _
        // Predicated region
        $region105: #{tpu_custom_call.1} parent=71 // pred_check
          %p561 = pneg %p225
        $region106: #{tpu_custom_call.1} parent=71 // pred_check_branch
          %563 = sbr.rel (%p561) target = $region108
        $region107: #{tpu_custom_call.1} parent=71 // pred_region
          %564 = dma.done [#allocation15], 32
        $region108: #{tpu_custom_call.1} parent=71 // pred_fallthru
          _
        // Predicated region
        $region109: #{tpu_custom_call.1} parent=71 // pred_check
          %p565 = pneg %p246
        $region110: #{tpu_custom_call.1} parent=71 // pred_check_branch
          %567 = sbr.rel (%p565) target = $region112
        $region111: #{tpu_custom_call.1} parent=71 // pred_region
          %568 = dma.done [#allocation18], 8192
        $region112: #{tpu_custom_call.1} parent=71 // pred_fallthru
          _
        // Predicated region
        $region113: #{tpu_custom_call.1} parent=71 // pred_check
          %p569 = pneg %p267
        $region114: #{tpu_custom_call.1} parent=71 // pred_check_branch
          %571 = sbr.rel (%p569) target = $region116
        $region115: #{tpu_custom_call.1} parent=71 // pred_region
          %572 = dma.done [#allocation18], 32
        $region116: #{tpu_custom_call.1} parent=71 // pred_fallthru
          _
        // Predicated region
        $region117: #{tpu_custom_call.1} parent=71 // pred_check
          %p573 = pneg %p288
        $region118: #{tpu_custom_call.1} parent=71 // pred_check_branch
          %575 = sbr.rel (%p573) target = $region120
        $region119: #{tpu_custom_call.1} parent=71 // pred_region
          %576 = dma.done [#allocation21], 4096
        $region120: #{tpu_custom_call.1} parent=71 // pred_fallthru
          _
        // Predicated region
        $region121: #{tpu_custom_call.1} parent=71 // pred_check
          %p577 = pneg %p309
        $region122: #{tpu_custom_call.1} parent=71 // pred_check_branch
          %579 = sbr.rel (%p577) target = $region124
        $region123: #{tpu_custom_call.1} parent=71 // pred_region
          %580 = dma.done [#allocation21], 16
        $region124: #{tpu_custom_call.1} parent=71 // pred_fallthru
          _
        %s581 = sand.u32 %s44, 1
        %s582 = scalar_lea.sflag [#allocation3], %s581
        %s583 = sand.u32 %s44, 1
        %s584 = smul.addr %s583, 56
        %s585 = scalar_lea.vmem [#allocation2], %s584
        %p586 = pneg %p57
        %p587 = pneg %p54
        %p588 = pneg %p78
        %p589 = pneg %p75
        %p590 = pneg %p99
        %p591 = pneg %p96
        %p592 = pneg %p120
        %p593 = pneg %p117
        %p594 = pneg %p141
        %p595 = pneg %p138
        %p596 = pneg %p162
        %p597 = pneg %p159
        %p598 = pneg %p183
        %p599 = pneg %p180
        %p600 = pneg %p204
        %p601 = pneg %p201
        %p602 = pneg %p225
        %p603 = pneg %p222
        %p604 = pneg %p246
        %p605 = pneg %p243
        %p606 = pneg %p267
        %p607 = pneg %p264
        %p608 = pneg %p288
        %p609 = pneg %p285
        %p610 = pneg %p309
        %p611 = pneg %p306
        %p612 = pneg %p335
        %p613 = pneg %p332
        %s614 = sand.u32 %s322, 1
        %s615 = scalar_lea.sflag [#allocation4], %s614
        %s616 = sand.u32 %s322, 1
        %s617 = smul.addr %s616, 8
        %s618 = scalar_lea.vmem [#allocation23], %s617
        %v619 = vld [vmem:[%s528] sm:$0xff]
        %v620 = vld [vmem:[%s528 + $0x8] sm:$0xff]
        %v621 = vld [vmem:[%s528 + $0x10] sm:$0xff]
        %v622 = vld [vmem:[%s528 + $0x18] sm:$0xff]
        %v623 = vld [vmem:[%s528 + $0x20] sm:$0xff]
        %v624 = vld [vmem:[%s528 + $0x28] sm:$0xff]
        %v625 = vld [vmem:[%s528 + $0x30] sm:$0xff]
        %v626 = vld [vmem:[#allocation5] sm:$0xff]
        %v627 = vld [vmem:[#allocation5 + $0x8] sm:$0xff]
        %v628 = vld [vmem:[#allocation5 + $0x10] sm:$0xff]
        %v629 = vld [vmem:[#allocation5 + $0x18] sm:$0xff]
        %v630 = vld [vmem:[#allocation5 + $0x20] sm:$0xff]
        %v631 = vld [vmem:[#allocation5 + $0x28] sm:$0xff]
        %v632 = vld [vmem:[#allocation5 + $0x30] sm:$0xff]
        %v633 = vld [vmem:[#allocation5 + $0x38] sm:$0xff]
        %v634 = vld [vmem:[#allocation5 + $0x40] sm:$0xff]
        %v635 = vld [vmem:[#allocation5 + $0x48] sm:$0xff]
        %v636 = vld [vmem:[#allocation5 + $0x50] sm:$0xff]
        %v637 = vld [vmem:[#allocation5 + $0x58] sm:$0xff]
        %v638 = vld [vmem:[#allocation5 + $0x60] sm:$0xff]
        %v639 = vld [vmem:[#allocation5 + $0x68] sm:$0xff]
        %v640 = vld [vmem:[#allocation5 + $0x70] sm:$0xff]
        %v641 = vld [vmem:[#allocation5 + $0x78] sm:$0xff]
        %v642 = vld [vmem:[#allocation5 + $0x80] sm:$0xff]
        %v643 = vld [vmem:[#allocation5 + $0x88] sm:$0xff]
        %v644 = vld [vmem:[#allocation5 + $0x90] sm:$0xff]
        %v645 = vld [vmem:[#allocation5 + $0x98] sm:$0xff]
        %v646 = vld [vmem:[#allocation5 + $0xa0] sm:$0xff]
        %v647 = vld [vmem:[#allocation5 + $0xa8] sm:$0xff]
        %v648 = vld [vmem:[#allocation5 + $0xb0] sm:$0xff]
        %v649 = vld [vmem:[#allocation5 + $0xb8] sm:$0xff]
        %v650 = vld [vmem:[#allocation5 + $0xc0] sm:$0xff]
        %v651 = vld [vmem:[#allocation5 + $0xc8] sm:$0xff]
        %v652 = vld [vmem:[#allocation5 + $0xd0] sm:$0xff]
        %v653 = vld [vmem:[#allocation5 + $0xd8] sm:$0xff]
        %v654 = vld [vmem:[#allocation5 + $0xe0] sm:$0xff]
        %v655 = vld [vmem:[#allocation5 + $0xe8] sm:$0xff]
        %v656 = vld [vmem:[#allocation5 + $0xf0] sm:$0xff]
        %v657 = vld [vmem:[#allocation5 + $0xf8] sm:$0xff]
        %v658 = vld [vmem:[#allocation5 + $0x100] sm:$0xff]
        %v659 = vld [vmem:[#allocation5 + $0x108] sm:$0xff]
        %v660 = vld [vmem:[#allocation5 + $0x110] sm:$0xff]
        %v661 = vld [vmem:[#allocation5 + $0x118] sm:$0xff]
        %v662 = vld [vmem:[#allocation5 + $0x120] sm:$0xff]
        %v663 = vld [vmem:[#allocation5 + $0x128] sm:$0xff]
        %v664 = vld [vmem:[#allocation5 + $0x130] sm:$0xff]
        %v665 = vld [vmem:[#allocation5 + $0x138] sm:$0xff]
        %v666 = vld [vmem:[#allocation5 + $0x140] sm:$0xff]
        %v667 = vld [vmem:[#allocation5 + $0x148] sm:$0xff]
        %v668 = vld [vmem:[#allocation5 + $0x150] sm:$0xff]
        %v669 = vld [vmem:[#allocation5 + $0x158] sm:$0xff]
        %v670 = vld [vmem:[#allocation5 + $0x160] sm:$0xff]
        %v671 = vld [vmem:[#allocation5 + $0x168] sm:$0xff]
        %v672 = vld [vmem:[#allocation5 + $0x170] sm:$0xff]
        %v673 = vld [vmem:[#allocation5 + $0x178] sm:$0xff]
        %v674 = vld [vmem:[#allocation5 + $0x180] sm:$0xff]
        %v675 = vld [vmem:[#allocation5 + $0x188] sm:$0xff]
        %v676 = vld [vmem:[#allocation5 + $0x190] sm:$0xff]
        %v677 = vld [vmem:[#allocation5 + $0x198] sm:$0xff]
        %v678 = vld [vmem:[#allocation5 + $0x1a0] sm:$0xff]
        %v679 = vld [vmem:[#allocation5 + $0x1a8] sm:$0xff]
        %v680 = vld [vmem:[#allocation5 + $0x1b0] sm:$0xff]
        %v681 = vld [vmem:[#allocation5 + $0x1b8] sm:$0xff]
        %v682 = vld [vmem:[#allocation5 + $0x1c0] sm:$0xff]
        %v683 = vld [vmem:[#allocation5 + $0x1c8] sm:$0xff]
        %v684 = vld [vmem:[#allocation5 + $0x1d0] sm:$0xff]
        %v685 = vld [vmem:[#allocation5 + $0x1d8] sm:$0xff]
        %v686 = vld [vmem:[#allocation5 + $0x1e0] sm:$0xff]
        %v687 = vld [vmem:[#allocation5 + $0x1e8] sm:$0xff]
        %v688 = vld [vmem:[#allocation5 + $0x1f0] sm:$0xff]
        %v689 = vld [vmem:[#allocation5 + $0x1f8] sm:$0xff]
        %v690 = vld [vmem:[#allocation5 + $0x200] sm:$0xff]
        %v691 = vld [vmem:[#allocation5 + $0x208] sm:$0xff]
        %v692 = vld [vmem:[#allocation5 + $0x210] sm:$0xff]
        %v693 = vld [vmem:[#allocation5 + $0x218] sm:$0xff]
        %v694 = vld [vmem:[#allocation5 + $0x220] sm:$0xff]
        %v695 = vld [vmem:[#allocation5 + $0x228] sm:$0xff]
        %v696 = vld [vmem:[#allocation5 + $0x230] sm:$0xff]
        %v697 = vld [vmem:[#allocation5 + $0x238] sm:$0xff]
        %v698 = vld [vmem:[#allocation5 + $0x240] sm:$0xff]
        %v699 = vld [vmem:[#allocation5 + $0x248] sm:$0xff]
        %v700 = vld [vmem:[#allocation5 + $0x250] sm:$0xff]
        %v701 = vld [vmem:[#allocation5 + $0x258] sm:$0xff]
        %v702 = vld [vmem:[#allocation5 + $0x260] sm:$0xff]
        %v703 = vld [vmem:[#allocation5 + $0x268] sm:$0xff]
        %v704 = vld [vmem:[#allocation5 + $0x270] sm:$0xff]
        %v705 = vld [vmem:[#allocation5 + $0x278] sm:$0xff]
        %v706 = vld [vmem:[#allocation5 + $0x280] sm:$0xff]
        %v707 = vld [vmem:[#allocation5 + $0x288] sm:$0xff]
        %v708 = vld [vmem:[#allocation5 + $0x290] sm:$0xff]
        %v709 = vld [vmem:[#allocation5 + $0x298] sm:$0xff]
        %v710 = vld [vmem:[#allocation5 + $0x2a0] sm:$0xff]
        %v711 = vld [vmem:[#allocation5 + $0x2a8] sm:$0xff]
        %v712 = vld [vmem:[#allocation5 + $0x2b0] sm:$0xff]
        %v713 = vld [vmem:[#allocation5 + $0x2b8] sm:$0xff]
        %v714 = vld [vmem:[#allocation5 + $0x2c0] sm:$0xff]
        %v715 = vld [vmem:[#allocation5 + $0x2c8] sm:$0xff]
        %v716 = vld [vmem:[#allocation5 + $0x2d0] sm:$0xff]
        %v717 = vld [vmem:[#allocation5 + $0x2d8] sm:$0xff]
        %v718 = vld [vmem:[#allocation5 + $0x2e0] sm:$0xff]
        %v719 = vld [vmem:[#allocation5 + $0x2e8] sm:$0xff]
        %v720 = vld [vmem:[#allocation5 + $0x2f0] sm:$0xff]
        %v721 = vld [vmem:[#allocation5 + $0x2f8] sm:$0xff]
        %v722 = vld [vmem:[#allocation5 + $0x300] sm:$0xff]
        %v723 = vld [vmem:[#allocation5 + $0x308] sm:$0xff]
        %v724 = vld [vmem:[#allocation5 + $0x310] sm:$0xff]
        %v725 = vld [vmem:[#allocation5 + $0x318] sm:$0xff]
        %v726 = vld [vmem:[#allocation5 + $0x320] sm:$0xff]
        %v727 = vld [vmem:[#allocation5 + $0x328] sm:$0xff]
        %v728 = vld [vmem:[#allocation5 + $0x330] sm:$0xff]
        %v729 = vld [vmem:[#allocation5 + $0x338] sm:$0xff]
        %v730 = vld [vmem:[#allocation5 + $0x340] sm:$0xff]
        %v731 = vld [vmem:[#allocation5 + $0x348] sm:$0xff]
        %v732 = vld [vmem:[#allocation5 + $0x350] sm:$0xff]
        %v733 = vld [vmem:[#allocation5 + $0x358] sm:$0xff]
        %v734 = vld [vmem:[#allocation5 + $0x360] sm:$0xff]
        %v735 = vld [vmem:[#allocation5 + $0x368] sm:$0xff]
        %v736 = vld [vmem:[#allocation5 + $0x370] sm:$0xff]
        %v737 = vld [vmem:[#allocation5 + $0x378] sm:$0xff]
        %v738 = vld [vmem:[#allocation5 + $0x380] sm:$0xff]
        %v739 = vld [vmem:[#allocation5 + $0x388] sm:$0xff]
        %v740 = vld [vmem:[#allocation5 + $0x390] sm:$0xff]
        %v741 = vld [vmem:[#allocation5 + $0x398] sm:$0xff]
        %v742 = vld [vmem:[#allocation5 + $0x3a0] sm:$0xff]
        %v743 = vld [vmem:[#allocation5 + $0x3a8] sm:$0xff]
        %v744 = vld [vmem:[#allocation5 + $0x3b0] sm:$0xff]
        %v745 = vld [vmem:[#allocation5 + $0x3b8] sm:$0xff]
        %v746 = vld [vmem:[#allocation5 + $0x3c0] sm:$0xff]
        %v747 = vld [vmem:[#allocation5 + $0x3c8] sm:$0xff]
        %v748 = vld [vmem:[#allocation5 + $0x3d0] sm:$0xff]
        %v749 = vld [vmem:[#allocation5 + $0x3d8] sm:$0xff]
        %v750 = vld [vmem:[#allocation5 + $0x3e0] sm:$0xff]
        %v751 = vld [vmem:[#allocation5 + $0x3e8] sm:$0xff]
        %v752 = vld [vmem:[#allocation5 + $0x3f0] sm:$0xff]
        %v753 = vld [vmem:[#allocation5 + $0x3f8] sm:$0xff]
        %v754 = vld [vmem:[#allocation5 + $0x400] sm:$0xff]
        %v755 = vld [vmem:[#allocation5 + $0x408] sm:$0xff]
        %v756 = vld [vmem:[#allocation5 + $0x410] sm:$0xff]
        %v757 = vld [vmem:[#allocation5 + $0x418] sm:$0xff]
        %v758 = vld [vmem:[#allocation5 + $0x420] sm:$0xff]
        %v759 = vld [vmem:[#allocation5 + $0x428] sm:$0xff]
        %v760 = vld [vmem:[#allocation5 + $0x430] sm:$0xff]
        %v761 = vld [vmem:[#allocation5 + $0x438] sm:$0xff]
        %v762 = vld [vmem:[#allocation5 + $0x440] sm:$0xff]
        %v763 = vld [vmem:[#allocation5 + $0x448] sm:$0xff]
        %v764 = vld [vmem:[#allocation5 + $0x450] sm:$0xff]
        %v765 = vld [vmem:[#allocation5 + $0x458] sm:$0xff]
        %v766 = vld [vmem:[#allocation5 + $0x460] sm:$0xff]
        %v767 = vld [vmem:[#allocation5 + $0x468] sm:$0xff]
        %v768 = vld [vmem:[#allocation5 + $0x470] sm:$0xff]
        %v769 = vld [vmem:[#allocation5 + $0x478] sm:$0xff]
        %v770 = vld [vmem:[#allocation5 + $0x480] sm:$0xff]
        %v771 = vld [vmem:[#allocation5 + $0x488] sm:$0xff]
        %v772 = vld [vmem:[#allocation5 + $0x490] sm:$0xff]
        %v773 = vld [vmem:[#allocation5 + $0x498] sm:$0xff]
        %v774 = vld [vmem:[#allocation5 + $0x4a0] sm:$0xff]
        %v775 = vld [vmem:[#allocation5 + $0x4a8] sm:$0xff]
        %v776 = vld [vmem:[#allocation5 + $0x4b0] sm:$0xff]
        %v777 = vld [vmem:[#allocation5 + $0x4b8] sm:$0xff]
        %v778 = vld [vmem:[#allocation5 + $0x4c0] sm:$0xff]
        %v779 = vld [vmem:[#allocation5 + $0x4c8] sm:$0xff]
        %v780 = vld [vmem:[#allocation5 + $0x4d0] sm:$0xff]
        %v781 = vld [vmem:[#allocation5 + $0x4d8] sm:$0xff]
        %v782 = vld [vmem:[#allocation5 + $0x4e0] sm:$0xff]
        %v783 = vld [vmem:[#allocation5 + $0x4e8] sm:$0xff]
        %v784 = vld [vmem:[#allocation5 + $0x4f0] sm:$0xff]
        %v785 = vld [vmem:[#allocation5 + $0x4f8] sm:$0xff]
        %v786 = vld [vmem:[#allocation5 + $0x500] sm:$0xff]
        %v787 = vld [vmem:[#allocation5 + $0x508] sm:$0xff]
        %v788 = vld [vmem:[#allocation5 + $0x510] sm:$0xff]
        %v789 = vld [vmem:[#allocation5 + $0x518] sm:$0xff]
        %v790 = vld [vmem:[#allocation5 + $0x520] sm:$0xff]
        %v791 = vld [vmem:[#allocation5 + $0x528] sm:$0xff]
        %v792 = vld [vmem:[#allocation5 + $0x530] sm:$0xff]
        %v793 = vld [vmem:[#allocation5 + $0x538] sm:$0xff]
        %v794 = vld [vmem:[#allocation5 + $0x540] sm:$0xff]
        %v795 = vld [vmem:[#allocation5 + $0x548] sm:$0xff]
        %v796 = vld [vmem:[#allocation5 + $0x550] sm:$0xff]
        %v797 = vld [vmem:[#allocation5 + $0x558] sm:$0xff]
        %v798 = vld [vmem:[#allocation5 + $0x560] sm:$0xff]
        %v799 = vld [vmem:[#allocation5 + $0x568] sm:$0xff]
        %v800 = vld [vmem:[#allocation5 + $0x570] sm:$0xff]
        %v801 = vld [vmem:[#allocation5 + $0x578] sm:$0xff]
        %v802 = vld [vmem:[#allocation5 + $0x580] sm:$0xff]
        %v803 = vld [vmem:[#allocation5 + $0x588] sm:$0xff]
        %v804 = vld [vmem:[#allocation5 + $0x590] sm:$0xff]
        %v805 = vld [vmem:[#allocation5 + $0x598] sm:$0xff]
        %v806 = vld [vmem:[#allocation5 + $0x5a0] sm:$0xff]
        %v807 = vld [vmem:[#allocation5 + $0x5a8] sm:$0xff]
        %v808 = vld [vmem:[#allocation5 + $0x5b0] sm:$0xff]
        %v809 = vld [vmem:[#allocation5 + $0x5b8] sm:$0xff]
        %v810 = vld [vmem:[#allocation5 + $0x5c0] sm:$0xff]
        %v811 = vld [vmem:[#allocation5 + $0x5c8] sm:$0xff]
        %v812 = vld [vmem:[#allocation5 + $0x5d0] sm:$0xff]
        %v813 = vld [vmem:[#allocation5 + $0x5d8] sm:$0xff]
        %v814 = vld [vmem:[#allocation5 + $0x5e0] sm:$0xff]
        %v815 = vld [vmem:[#allocation5 + $0x5e8] sm:$0xff]
        %v816 = vld [vmem:[#allocation5 + $0x5f0] sm:$0xff]
        %v817 = vld [vmem:[#allocation5 + $0x5f8] sm:$0xff]
        %v818 = vld [vmem:[#allocation5 + $0x600] sm:$0xff]
        %v819 = vld [vmem:[#allocation5 + $0x608] sm:$0xff]
        %v820 = vld [vmem:[#allocation5 + $0x610] sm:$0xff]
        %v821 = vld [vmem:[#allocation5 + $0x618] sm:$0xff]
        %v822 = vld [vmem:[#allocation5 + $0x620] sm:$0xff]
        %v823 = vld [vmem:[#allocation5 + $0x628] sm:$0xff]
        %v824 = vld [vmem:[#allocation5 + $0x630] sm:$0xff]
        %v825 = vld [vmem:[#allocation5 + $0x638] sm:$0xff]
        %v826 = vld [vmem:[#allocation5 + $0x640] sm:$0xff]
        %v827 = vld [vmem:[#allocation5 + $0x648] sm:$0xff]
        %v828 = vld [vmem:[#allocation5 + $0x650] sm:$0xff]
        %v829 = vld [vmem:[#allocation5 + $0x658] sm:$0xff]
        %v830 = vld [vmem:[#allocation5 + $0x660] sm:$0xff]
        %v831 = vld [vmem:[#allocation5 + $0x668] sm:$0xff]
        %v832 = vld [vmem:[#allocation5 + $0x670] sm:$0xff]
        %v833 = vld [vmem:[#allocation5 + $0x678] sm:$0xff]
        %v834 = vld [vmem:[#allocation5 + $0x680] sm:$0xff]
        %v835 = vld [vmem:[#allocation5 + $0x688] sm:$0xff]
        %v836 = vld [vmem:[#allocation5 + $0x690] sm:$0xff]
        %v837 = vld [vmem:[#allocation5 + $0x698] sm:$0xff]
        %v838 = vld [vmem:[#allocation5 + $0x6a0] sm:$0xff]
        %v839 = vld [vmem:[#allocation5 + $0x6a8] sm:$0xff]
        %v840 = vld [vmem:[#allocation5 + $0x6b0] sm:$0xff]
        %v841 = vld [vmem:[#allocation5 + $0x6b8] sm:$0xff]
        %v842 = vld [vmem:[#allocation5 + $0x6c0] sm:$0xff]
        %v843 = vld [vmem:[#allocation5 + $0x6c8] sm:$0xff]
        %v844 = vld [vmem:[#allocation5 + $0x6d0] sm:$0xff]
        %v845 = vld [vmem:[#allocation5 + $0x6d8] sm:$0xff]
        %v846 = vld [vmem:[#allocation5 + $0x6e0] sm:$0xff]
        %v847 = vld [vmem:[#allocation5 + $0x6e8] sm:$0xff]
        %v848 = vld [vmem:[#allocation5 + $0x6f0] sm:$0xff]
        %v849 = vld [vmem:[#allocation5 + $0x6f8] sm:$0xff]
        %v850 = vld [vmem:[#allocation5 + $0x700] sm:$0xff]
        %v851 = vld [vmem:[#allocation5 + $0x708] sm:$0xff]
        %v852 = vld [vmem:[#allocation5 + $0x710] sm:$0xff]
        %v853 = vld [vmem:[#allocation5 + $0x718] sm:$0xff]
        %v854 = vld [vmem:[#allocation5 + $0x720] sm:$0xff]
        %v855 = vld [vmem:[#allocation5 + $0x728] sm:$0xff]
        %v856 = vld [vmem:[#allocation5 + $0x730] sm:$0xff]
        %v857 = vld [vmem:[#allocation5 + $0x738] sm:$0xff]
        %v858 = vld [vmem:[#allocation5 + $0x740] sm:$0xff]
        %v859 = vld [vmem:[#allocation5 + $0x748] sm:$0xff]
        %v860 = vld [vmem:[#allocation5 + $0x750] sm:$0xff]
        %v861 = vld [vmem:[#allocation5 + $0x758] sm:$0xff]
        %v862 = vld [vmem:[#allocation5 + $0x760] sm:$0xff]
        %v863 = vld [vmem:[#allocation5 + $0x768] sm:$0xff]
        %v864 = vld [vmem:[#allocation5 + $0x770] sm:$0xff]
        %v865 = vld [vmem:[#allocation5 + $0x778] sm:$0xff]
        %v866 = vld [vmem:[#allocation5 + $0x780] sm:$0xff]
        %v867 = vld [vmem:[#allocation5 + $0x788] sm:$0xff]
        %v868 = vld [vmem:[#allocation5 + $0x790] sm:$0xff]
        %v869 = vld [vmem:[#allocation5 + $0x798] sm:$0xff]
        %v870 = vld [vmem:[#allocation5 + $0x7a0] sm:$0xff]
        %v871 = vld [vmem:[#allocation5 + $0x7a8] sm:$0xff]
        %v872 = vld [vmem:[#allocation5 + $0x7b0] sm:$0xff]
        %v873 = vld [vmem:[#allocation5 + $0x7b8] sm:$0xff]
        %v874 = vld [vmem:[#allocation5 + $0x7c0] sm:$0xff]
        %v875 = vld [vmem:[#allocation5 + $0x7c8] sm:$0xff]
        %v876 = vld [vmem:[#allocation5 + $0x7d0] sm:$0xff]
        %v877 = vld [vmem:[#allocation5 + $0x7d8] sm:$0xff]
        %v878 = vld [vmem:[#allocation5 + $0x7e0] sm:$0xff]
        %v879 = vld [vmem:[#allocation5 + $0x7e8] sm:$0xff]
        %v880 = vld [vmem:[#allocation5 + $0x7f0] sm:$0xff]
        %v881 = vld [vmem:[#allocation5 + $0x7f8] sm:$0xff]
        %v882 = vld [vmem:[#allocation5 + $0x800] sm:$0xff]
        %v883 = vld [vmem:[#allocation5 + $0x808] sm:$0xff]
        %v884 = vld [vmem:[#allocation5 + $0x810] sm:$0xff]
        %v885 = vld [vmem:[#allocation5 + $0x818] sm:$0xff]
        %v886 = vld [vmem:[#allocation5 + $0x820] sm:$0xff]
        %v887 = vld [vmem:[#allocation5 + $0x828] sm:$0xff]
        %v888 = vld [vmem:[#allocation5 + $0x830] sm:$0xff]
        %v889 = vld [vmem:[#allocation5 + $0x838] sm:$0xff]
        %v890 = vld [vmem:[#allocation5 + $0x840] sm:$0xff]
        %v891 = vld [vmem:[#allocation5 + $0x848] sm:$0xff]
        %v892 = vld [vmem:[#allocation5 + $0x850] sm:$0xff]
        %v893 = vld [vmem:[#allocation5 + $0x858] sm:$0xff]
        %v894 = vld [vmem:[#allocation5 + $0x860] sm:$0xff]
        %v895 = vld [vmem:[#allocation5 + $0x868] sm:$0xff]
        %v896 = vld [vmem:[#allocation5 + $0x870] sm:$0xff]
        %v897 = vld [vmem:[#allocation5 + $0x878] sm:$0xff]
        %v898 = vld [vmem:[#allocation5 + $0x880] sm:$0xff]
        %v899 = vld [vmem:[#allocation5 + $0x888] sm:$0xff]
        %v900 = vld [vmem:[#allocation5 + $0x890] sm:$0xff]
        %v901 = vld [vmem:[#allocation5 + $0x898] sm:$0xff]
        %v902 = vld [vmem:[#allocation5 + $0x8a0] sm:$0xff]
        %v903 = vld [vmem:[#allocation5 + $0x8a8] sm:$0xff]
        %v904 = vld [vmem:[#allocation5 + $0x8b0] sm:$0xff]
        %v905 = vld [vmem:[#allocation5 + $0x8b8] sm:$0xff]
        %v906 = vld [vmem:[#allocation5 + $0x8c0] sm:$0xff]
        %v907 = vld [vmem:[#allocation5 + $0x8c8] sm:$0xff]
        %v908 = vld [vmem:[#allocation5 + $0x8d0] sm:$0xff]
        %v909 = vld [vmem:[#allocation5 + $0x8d8] sm:$0xff]
        %v910 = vld [vmem:[#allocation5 + $0x8e0] sm:$0xff]
        %v911 = vld [vmem:[#allocation5 + $0x8e8] sm:$0xff]
        %v912 = vld [vmem:[#allocation5 + $0x8f0] sm:$0xff]
        %v913 = vld [vmem:[#allocation5 + $0x8f8] sm:$0xff]
        %v914 = vld [vmem:[#allocation5 + $0x900] sm:$0xff]
        %v915 = vld [vmem:[#allocation5 + $0x908] sm:$0xff]
        %v916 = vld [vmem:[#allocation5 + $0x910] sm:$0xff]
        %v917 = vld [vmem:[#allocation5 + $0x918] sm:$0xff]
        %v918 = vld [vmem:[#allocation5 + $0x920] sm:$0xff]
        %v919 = vld [vmem:[#allocation5 + $0x928] sm:$0xff]
        %v920 = vld [vmem:[#allocation5 + $0x930] sm:$0xff]
        %v921 = vld [vmem:[#allocation5 + $0x938] sm:$0xff]
        %v922 = vld [vmem:[#allocation5 + $0x940] sm:$0xff]
        %v923 = vld [vmem:[#allocation5 + $0x948] sm:$0xff]
        %v924 = vld [vmem:[#allocation5 + $0x950] sm:$0xff]
        %v925 = vld [vmem:[#allocation5 + $0x958] sm:$0xff]
        %v926 = vld [vmem:[#allocation5 + $0x960] sm:$0xff]
        %v927 = vld [vmem:[#allocation5 + $0x968] sm:$0xff]
        %v928 = vld [vmem:[#allocation5 + $0x970] sm:$0xff]
        %v929 = vld [vmem:[#allocation5 + $0x978] sm:$0xff]
        %v930 = vld [vmem:[#allocation5 + $0x980] sm:$0xff]
        %v931 = vld [vmem:[#allocation5 + $0x988] sm:$0xff]
        %v932 = vld [vmem:[#allocation5 + $0x990] sm:$0xff]
        %v933 = vld [vmem:[#allocation5 + $0x998] sm:$0xff]
        %v934 = vld [vmem:[#allocation5 + $0x9a0] sm:$0xff]
        %v935 = vld [vmem:[#allocation5 + $0x9a8] sm:$0xff]
        %v936 = vld [vmem:[#allocation5 + $0x9b0] sm:$0xff]
        %v937 = vld [vmem:[#allocation5 + $0x9b8] sm:$0xff]
        %v938 = vld [vmem:[#allocation5 + $0x9c0] sm:$0xff]
        %v939 = vld [vmem:[#allocation5 + $0x9c8] sm:$0xff]
        %v940 = vld [vmem:[#allocation5 + $0x9d0] sm:$0xff]
        %v941 = vld [vmem:[#allocation5 + $0x9d8] sm:$0xff]
        %v942 = vld [vmem:[#allocation5 + $0x9e0] sm:$0xff]
        %v943 = vld [vmem:[#allocation5 + $0x9e8] sm:$0xff]
        %v944 = vld [vmem:[#allocation5 + $0x9f0] sm:$0xff]
        %v945 = vld [vmem:[#allocation5 + $0x9f8] sm:$0xff]
        %v946 = vld [vmem:[#allocation5 + $0xa00] sm:$0xff]
        %v947 = vld [vmem:[#allocation5 + $0xa08] sm:$0xff]
        %v948 = vld [vmem:[#allocation5 + $0xa10] sm:$0xff]
        %v949 = vld [vmem:[#allocation5 + $0xa18] sm:$0xff]
        %v950 = vld [vmem:[#allocation5 + $0xa20] sm:$0xff]
        %v951 = vld [vmem:[#allocation5 + $0xa28] sm:$0xff]
        %v952 = vld [vmem:[#allocation5 + $0xa30] sm:$0xff]
        %v953 = vld [vmem:[#allocation5 + $0xa38] sm:$0xff]
        %v954 = vld [vmem:[#allocation5 + $0xa40] sm:$0xff]
        %v955 = vld [vmem:[#allocation5 + $0xa48] sm:$0xff]
        %v956 = vld [vmem:[#allocation5 + $0xa50] sm:$0xff]
        %v957 = vld [vmem:[#allocation5 + $0xa58] sm:$0xff]
        %v958 = vld [vmem:[#allocation5 + $0xa60] sm:$0xff]
        %v959 = vld [vmem:[#allocation5 + $0xa68] sm:$0xff]
        %v960 = vld [vmem:[#allocation5 + $0xa70] sm:$0xff]
        %v961 = vld [vmem:[#allocation5 + $0xa78] sm:$0xff]
        %v962 = vld [vmem:[#allocation5 + $0xa80] sm:$0xff]
        %v963 = vld [vmem:[#allocation5 + $0xa88] sm:$0xff]
        %v964 = vld [vmem:[#allocation5 + $0xa90] sm:$0xff]
        %v965 = vld [vmem:[#allocation5 + $0xa98] sm:$0xff]
        %v966 = vld [vmem:[#allocation5 + $0xaa0] sm:$0xff]
        %v967 = vld [vmem:[#allocation5 + $0xaa8] sm:$0xff]
        %v968 = vld [vmem:[#allocation5 + $0xab0] sm:$0xff]
        %v969 = vld [vmem:[#allocation5 + $0xab8] sm:$0xff]
        %v970 = vld [vmem:[#allocation5 + $0xac0] sm:$0xff]
        %v971 = vld [vmem:[#allocation5 + $0xac8] sm:$0xff]
        %v972 = vld [vmem:[#allocation5 + $0xad0] sm:$0xff]
        %v973 = vld [vmem:[#allocation5 + $0xad8] sm:$0xff]
        %v974 = vld [vmem:[#allocation5 + $0xae0] sm:$0xff]
        %v975 = vld [vmem:[#allocation5 + $0xae8] sm:$0xff]
        %v976 = vld [vmem:[#allocation5 + $0xaf0] sm:$0xff]
        %v977 = vld [vmem:[#allocation5 + $0xaf8] sm:$0xff]
        %v978 = vld [vmem:[#allocation5 + $0xb00] sm:$0xff]
        %v979 = vld [vmem:[#allocation5 + $0xb08] sm:$0xff]
        %v980 = vld [vmem:[#allocation5 + $0xb10] sm:$0xff]
        %v981 = vld [vmem:[#allocation5 + $0xb18] sm:$0xff]
        %v982 = vld [vmem:[#allocation5 + $0xb20] sm:$0xff]
        %v983 = vld [vmem:[#allocation5 + $0xb28] sm:$0xff]
        %v984 = vld [vmem:[#allocation5 + $0xb30] sm:$0xff]
        %v985 = vld [vmem:[#allocation5 + $0xb38] sm:$0xff]
        %v986 = vld [vmem:[#allocation5 + $0xb40] sm:$0xff]
        %v987 = vld [vmem:[#allocation5 + $0xb48] sm:$0xff]
        %v988 = vld [vmem:[#allocation5 + $0xb50] sm:$0xff]
        %v989 = vld [vmem:[#allocation5 + $0xb58] sm:$0xff]
        %v990 = vld [vmem:[#allocation5 + $0xb60] sm:$0xff]
        %v991 = vld [vmem:[#allocation5 + $0xb68] sm:$0xff]
        %v992 = vld [vmem:[#allocation5 + $0xb70] sm:$0xff]
        %v993 = vld [vmem:[#allocation5 + $0xb78] sm:$0xff]
        %v994 = vld [vmem:[#allocation5 + $0xb80] sm:$0xff]
        %v995 = vld [vmem:[#allocation5 + $0xb88] sm:$0xff]
        %v996 = vld [vmem:[#allocation5 + $0xb90] sm:$0xff]
        %v997 = vld [vmem:[#allocation5 + $0xb98] sm:$0xff]
        %v998 = vld [vmem:[#allocation5 + $0xba0] sm:$0xff]
        %v999 = vld [vmem:[#allocation5 + $0xba8] sm:$0xff]
        %v1000 = vld [vmem:[#allocation5 + $0xbb0] sm:$0xff]
        %v1001 = vld [vmem:[#allocation5 + $0xbb8] sm:$0xff]
        %v1002 = vld [vmem:[#allocation5 + $0xbc0] sm:$0xff]
        %v1003 = vld [vmem:[#allocation5 + $0xbc8] sm:$0xff]
        %v1004 = vld [vmem:[#allocation5 + $0xbd0] sm:$0xff]
        %v1005 = vld [vmem:[#allocation5 + $0xbd8] sm:$0xff]
        %v1006 = vld [vmem:[#allocation5 + $0xbe0] sm:$0xff]
        %v1007 = vld [vmem:[#allocation5 + $0xbe8] sm:$0xff]
        %v1008 = vld [vmem:[#allocation5 + $0xbf0] sm:$0xff]
        %v1009 = vld [vmem:[#allocation5 + $0xbf8] sm:$0xff]
        %v1010 = vld [vmem:[#allocation5 + $0xc00] sm:$0xff]
        %v1011 = vld [vmem:[#allocation5 + $0xc08] sm:$0xff]
        %v1012 = vld [vmem:[#allocation5 + $0xc10] sm:$0xff]
        %v1013 = vld [vmem:[#allocation5 + $0xc18] sm:$0xff]
        %v1014 = vld [vmem:[#allocation5 + $0xc20] sm:$0xff]
        %v1015 = vld [vmem:[#allocation5 + $0xc28] sm:$0xff]
        %v1016 = vld [vmem:[#allocation5 + $0xc30] sm:$0xff]
        %v1017 = vld [vmem:[#allocation5 + $0xc38] sm:$0xff]
        %v1018 = vld [vmem:[#allocation5 + $0xc40] sm:$0xff]
        %v1019 = vld [vmem:[#allocation5 + $0xc48] sm:$0xff]
        %v1020 = vld [vmem:[#allocation5 + $0xc50] sm:$0xff]
        %v1021 = vld [vmem:[#allocation5 + $0xc58] sm:$0xff]
        %v1022 = vld [vmem:[#allocation5 + $0xc60] sm:$0xff]
        %v1023 = vld [vmem:[#allocation5 + $0xc68] sm:$0xff]
        %v1024 = vld [vmem:[#allocation5 + $0xc70] sm:$0xff]
        %v1025 = vld [vmem:[#allocation5 + $0xc78] sm:$0xff]
        %v1026 = vld [vmem:[#allocation5 + $0xc80] sm:$0xff]
        %v1027 = vld [vmem:[#allocation5 + $0xc88] sm:$0xff]
        %v1028 = vld [vmem:[#allocation5 + $0xc90] sm:$0xff]
        %v1029 = vld [vmem:[#allocation5 + $0xc98] sm:$0xff]
        %v1030 = vld [vmem:[#allocation5 + $0xca0] sm:$0xff]
        %v1031 = vld [vmem:[#allocation5 + $0xca8] sm:$0xff]
        %v1032 = vld [vmem:[#allocation5 + $0xcb0] sm:$0xff]
        %v1033 = vld [vmem:[#allocation5 + $0xcb8] sm:$0xff]
        %v1034 = vld [vmem:[#allocation5 + $0xcc0] sm:$0xff]
        %v1035 = vld [vmem:[#allocation5 + $0xcc8] sm:$0xff]
        %v1036 = vld [vmem:[#allocation5 + $0xcd0] sm:$0xff]
        %v1037 = vld [vmem:[#allocation5 + $0xcd8] sm:$0xff]
        %v1038 = vld [vmem:[#allocation5 + $0xce0] sm:$0xff]
        %v1039 = vld [vmem:[#allocation5 + $0xce8] sm:$0xff]
        %v1040 = vld [vmem:[#allocation5 + $0xcf0] sm:$0xff]
        %v1041 = vld [vmem:[#allocation5 + $0xcf8] sm:$0xff]
        %v1042 = vld [vmem:[#allocation5 + $0xd00] sm:$0xff]
        %v1043 = vld [vmem:[#allocation5 + $0xd08] sm:$0xff]
        %v1044 = vld [vmem:[#allocation5 + $0xd10] sm:$0xff]
        %v1045 = vld [vmem:[#allocation5 + $0xd18] sm:$0xff]
        %v1046 = vld [vmem:[#allocation5 + $0xd20] sm:$0xff]
        %v1047 = vld [vmem:[#allocation5 + $0xd28] sm:$0xff]
        %v1048 = vld [vmem:[#allocation5 + $0xd30] sm:$0xff]
        %v1049 = vld [vmem:[#allocation5 + $0xd38] sm:$0xff]
        %v1050 = vld [vmem:[#allocation5 + $0xd40] sm:$0xff]
        %v1051 = vld [vmem:[#allocation5 + $0xd48] sm:$0xff]
        %v1052 = vld [vmem:[#allocation5 + $0xd50] sm:$0xff]
        %v1053 = vld [vmem:[#allocation5 + $0xd58] sm:$0xff]
        %v1054 = vld [vmem:[#allocation5 + $0xd60] sm:$0xff]
        %v1055 = vld [vmem:[#allocation5 + $0xd68] sm:$0xff]
        %v1056 = vld [vmem:[#allocation5 + $0xd70] sm:$0xff]
        %v1057 = vld [vmem:[#allocation5 + $0xd78] sm:$0xff]
        %v1058 = vld [vmem:[#allocation5 + $0xd80] sm:$0xff]
        %v1059 = vld [vmem:[#allocation5 + $0xd88] sm:$0xff]
        %v1060 = vld [vmem:[#allocation5 + $0xd90] sm:$0xff]
        %v1061 = vld [vmem:[#allocation5 + $0xd98] sm:$0xff]
        %v1062 = vld [vmem:[#allocation5 + $0xda0] sm:$0xff]
        %v1063 = vld [vmem:[#allocation5 + $0xda8] sm:$0xff]
        %v1064 = vld [vmem:[#allocation5 + $0xdb0] sm:$0xff]
        %v1065 = vld [vmem:[#allocation5 + $0xdb8] sm:$0xff]
        %v1066 = vld [vmem:[#allocation5 + $0xdc0] sm:$0xff]
        %v1067 = vld [vmem:[#allocation5 + $0xdc8] sm:$0xff]
        %v1068 = vld [vmem:[#allocation5 + $0xdd0] sm:$0xff]
        %v1069 = vld [vmem:[#allocation5 + $0xdd8] sm:$0xff]
        %v1070 = vld [vmem:[#allocation5 + $0xde0] sm:$0xff]
        %v1071 = vld [vmem:[#allocation5 + $0xde8] sm:$0xff]
        %v1072 = vld [vmem:[#allocation5 + $0xdf0] sm:$0xff]
        %v1073 = vld [vmem:[#allocation5 + $0xdf8] sm:$0xff]
        %v1074 = vld [vmem:[#allocation7] sm:$0xf]
        %v1076 = vlaneseq
        %v1077 = vshrl.u32 %v1076, 7
        %v1078 = vsub.s32 0, %v1077
        %v1079 = vrot.slane %v1074, %v1078
        %v1080 = vlaneseq
        %v1081 = vshrl.u32 %v1080, 7
        %v1082 = vsub.s32 1, %v1081
        %v1083 = vrot.slane %v1074, %v1082
        %v1084 = vlaneseq
        %v1085 = vshrl.u32 %v1084, 7
        %v1086 = vsub.s32 2, %v1085
        %v1087 = vrot.slane %v1074, %v1086
        %v1088 = vlaneseq
        %v1089 = vshrl.u32 %v1088, 7
        %v1090 = vsub.s32 3, %v1089
        %v1091 = vrot.slane %v1074, %v1090
        %1096 = vmatprep.subr.mxu0 %v687
        %1097 = vmatpush1.msra.mxu0 %v686
        %1098 = vmatprep.subr.mxu0 %v683
        %1099 = vmatpush1.msra.mxu0 %v682
        %1100 = vmatprep.subr.mxu0 %v679
        %1101 = vmatpush1.msra.mxu0 %v678
        %1102 = vmatprep.subr.mxu0 %v675
        %1103 = vmatpush1.msra.mxu0 %v674
        %1104 = vmatprep.subr.mxu0 %v671
        %1105 = vmatpush1.msra.mxu0 %v670
        %1106 = vmatprep.subr.mxu0 %v667
        %1107 = vmatpush1.msra.mxu0 %v666
        %1108 = vmatprep.subr.mxu0 %v663
        %1109 = vmatpush1.msra.mxu0 %v662
        %1110 = vmatprep.subr.mxu0 %v659
        %1111 = vmatpush1.msra.mxu0 %v658
        %1112 = vmatprep.subr.mxu0 %v655
        %1113 = vmatpush1.msra.mxu0 %v654
        %1114 = vmatprep.subr.mxu0 %v651
        %1115 = vmatpush1.msra.mxu0 %v650
        %1116 = vmatprep.subr.mxu0 %v647
        %1117 = vmatpush1.msra.mxu0 %v646
        %1118 = vmatprep.subr.mxu0 %v643
        %1119 = vmatpush1.msra.mxu0 %v642
        %1120 = vmatprep.subr.mxu0 %v639
        %1121 = vmatpush1.msra.mxu0 %v638
        %1122 = vmatprep.subr.mxu0 %v635
        %1123 = vmatpush1.msra.mxu0 %v634
        %1124 = vmatprep.subr.mxu0 %v631
        %1125 = vmatpush1.msra.mxu0 %v630
        %1126 = vmatprep.subr.mxu0 %v627
        %1127 = vmatpush1.msra.mxu0 %v626
        %1128 = vmatprep.subr.mxu0 %v751
        %1129 = vmatpush2.msra.mxu0 %v750
        %1130 = vmatprep.subr.mxu0 %v747
        %1131 = vmatpush2.msra.mxu0 %v746
        %1132 = vmatprep.subr.mxu0 %v743
        %1133 = vmatpush2.msra.mxu0 %v742
        %1134 = vmatprep.subr.mxu0 %v739
        %1135 = vmatpush2.msra.mxu0 %v738
        %1136 = vmatprep.subr.mxu0 %v735
        %1137 = vmatpush2.msra.mxu0 %v734
        %1138 = vmatprep.subr.mxu0 %v731
        %1139 = vmatpush2.msra.mxu0 %v730
        %1140 = vmatprep.subr.mxu0 %v727
        %1141 = vmatpush2.msra.mxu0 %v726
        %1142 = vmatprep.subr.mxu0 %v723
        %1143 = vmatpush2.msra.mxu0 %v722
        %1144 = vmatprep.subr.mxu0 %v719
        %1145 = vmatpush2.msra.mxu0 %v718
        %1146 = vmatprep.subr.mxu0 %v715
        %1147 = vmatpush2.msra.mxu0 %v714
        %1148 = vmatprep.subr.mxu0 %v711
        %1149 = vmatpush2.msra.mxu0 %v710
        %1150 = vmatprep.subr.mxu0 %v707
        %1151 = vmatpush2.msra.mxu0 %v706
        %1152 = vmatprep.subr.mxu0 %v703
        %1153 = vmatpush2.msra.mxu0 %v702
        %1154 = vmatprep.subr.mxu0 %v699
        %1155 = vmatpush2.msra.mxu0 %v698
        %1156 = vmatprep.subr.mxu0 %v695
        %1157 = vmatpush2.msra.mxu0 %v694
        %1158 = vmatprep.subr.mxu0 %v691
        %1159 = vmatpush2.msra.mxu0 %v690
        %1160 = vmatprep.mubr.f32.mxu0 %v620
        %1161 = vmatmul.mubr.f32.gmra.mxu0 %v619
        %v1162 = vpop.f32.mrf.mxu0
        %v1163 = vadd.f32 %v1079, %v1162
        %v1164 = vpop.f32.mrf.mxu0
        %v1165 = vadd.f32 %v1083, %v1164
        %1166 = vdwg.mxu0
        %1167 = vmatprep.subr.mxu0 %v815
        %1168 = vmatpush1.msra.mxu0 %v814
        %1169 = vmatprep.subr.mxu0 %v811
        %1170 = vmatpush1.msra.mxu0 %v810
        %1171 = vmatprep.subr.mxu0 %v807
        %1172 = vmatpush1.msra.mxu0 %v806
        %1173 = vmatprep.subr.mxu0 %v803
        %1174 = vmatpush1.msra.mxu0 %v802
        %1175 = vmatprep.subr.mxu0 %v799
        %1176 = vmatpush1.msra.mxu0 %v798
        %1177 = vmatprep.subr.mxu0 %v795
        %1178 = vmatpush1.msra.mxu0 %v794
        %1179 = vmatprep.subr.mxu0 %v791
        %1180 = vmatpush1.msra.mxu0 %v790
        %1181 = vmatprep.subr.mxu0 %v787
        %1182 = vmatpush1.msra.mxu0 %v786
        %1183 = vmatprep.subr.mxu0 %v783
        %1184 = vmatpush1.msra.mxu0 %v782
        %1185 = vmatprep.subr.mxu0 %v779
        %1186 = vmatpush1.msra.mxu0 %v778
        %1187 = vmatprep.subr.mxu0 %v775
        %1188 = vmatpush1.msra.mxu0 %v774
        %1189 = vmatprep.subr.mxu0 %v771
        %1190 = vmatpush1.msra.mxu0 %v770
        %1191 = vmatprep.subr.mxu0 %v767
        %1192 = vmatpush1.msra.mxu0 %v766
        %1193 = vmatprep.subr.mxu0 %v763
        %1194 = vmatpush1.msra.mxu0 %v762
        %1195 = vmatprep.subr.mxu0 %v759
        %1196 = vmatpush1.msra.mxu0 %v758
        %1197 = vmatprep.subr.mxu0 %v755
        %1198 = vmatpush1.msra.mxu0 %v754
        %1199 = vmatprep.subr.mxu0 %v879
        %1200 = vmatpush2.msra.mxu0 %v878
        %1201 = vmatprep.subr.mxu0 %v875
        %1202 = vmatpush2.msra.mxu0 %v874
        %1203 = vmatprep.subr.mxu0 %v871
        %1204 = vmatpush2.msra.mxu0 %v870
        %1205 = vmatprep.subr.mxu0 %v867
        %1206 = vmatpush2.msra.mxu0 %v866
        %1207 = vmatprep.subr.mxu0 %v863
        %1208 = vmatpush2.msra.mxu0 %v862
        %1209 = vmatprep.subr.mxu0 %v859
        %1210 = vmatpush2.msra.mxu0 %v858
        %1211 = vmatprep.subr.mxu0 %v855
        %1212 = vmatpush2.msra.mxu0 %v854
        %1213 = vmatprep.subr.mxu0 %v851
        %1214 = vmatpush2.msra.mxu0 %v850
        %1215 = vmatprep.subr.mxu0 %v847
        %1216 = vmatpush2.msra.mxu0 %v846
        %1217 = vmatprep.subr.mxu0 %v843
        %1218 = vmatpush2.msra.mxu0 %v842
        %1219 = vmatprep.subr.mxu0 %v839
        %1220 = vmatpush2.msra.mxu0 %v838
        %1221 = vmatprep.subr.mxu0 %v835
        %1222 = vmatpush2.msra.mxu0 %v834
        %1223 = vmatprep.subr.mxu0 %v831
        %1224 = vmatpush2.msra.mxu0 %v830
        %1225 = vmatprep.subr.mxu0 %v827
        %1226 = vmatpush2.msra.mxu0 %v826
        %1227 = vmatprep.subr.mxu0 %v823
        %1228 = vmatpush2.msra.mxu0 %v822
        %1229 = vmatprep.subr.mxu0 %v819
        %1230 = vmatpush2.msra.mxu0 %v818
        %1231 = vmatprep.mubr.f32.mxu0 %v622
        %1232 = vmatmul.mubr.f32.gmra.mxu0 %v621
        %v1233 = vpop.f32.mrf.mxu0
        %v1234 = vadd.f32 %v1163, %v1233
        %v1235 = vpop.f32.mrf.mxu0
        %v1236 = vadd.f32 %v1165, %v1235
        %1237 = vdwg.mxu0
        %1238 = vmatprep.subr.mxu0 %v943
        %1239 = vmatpush1.msra.mxu0 %v942
        %1240 = vmatprep.subr.mxu0 %v939
        %1241 = vmatpush1.msra.mxu0 %v938
        %1242 = vmatprep.subr.mxu0 %v935
        %1243 = vmatpush1.msra.mxu0 %v934
        %1244 = vmatprep.subr.mxu0 %v931
        %1245 = vmatpush1.msra.mxu0 %v930
        %1246 = vmatprep.subr.mxu0 %v927
        %1247 = vmatpush1.msra.mxu0 %v926
        %1248 = vmatprep.subr.mxu0 %v923
        %1249 = vmatpush1.msra.mxu0 %v922
        %1250 = vmatprep.subr.mxu0 %v919
        %1251 = vmatpush1.msra.mxu0 %v918
        %1252 = vmatprep.subr.mxu0 %v915
        %1253 = vmatpush1.msra.mxu0 %v914
        %1254 = vmatprep.subr.mxu0 %v911
        %1255 = vmatpush1.msra.mxu0 %v910
        %1256 = vmatprep.subr.mxu0 %v907
        %1257 = vmatpush1.msra.mxu0 %v906
        %1258 = vmatprep.subr.mxu0 %v903
        %1259 = vmatpush1.msra.mxu0 %v902
        %1260 = vmatprep.subr.mxu0 %v899
        %1261 = vmatpush1.msra.mxu0 %v898
        %1262 = vmatprep.subr.mxu0 %v895
        %1263 = vmatpush1.msra.mxu0 %v894
        %1264 = vmatprep.subr.mxu0 %v891
        %1265 = vmatpush1.msra.mxu0 %v890
        %1266 = vmatprep.subr.mxu0 %v887
        %1267 = vmatpush1.msra.mxu0 %v886
        %1268 = vmatprep.subr.mxu0 %v883
        %1269 = vmatpush1.msra.mxu0 %v882
        %1270 = vmatprep.subr.mxu0 %v1007
        %1271 = vmatpush2.msra.mxu0 %v1006
        %1272 = vmatprep.subr.mxu0 %v1003
        %1273 = vmatpush2.msra.mxu0 %v1002
        %1274 = vmatprep.subr.mxu0 %v999
        %1275 = vmatpush2.msra.mxu0 %v998
        %1276 = vmatprep.subr.mxu0 %v995
        %1277 = vmatpush2.msra.mxu0 %v994
        %1278 = vmatprep.subr.mxu0 %v991
        %1279 = vmatpush2.msra.mxu0 %v990
        %1280 = vmatprep.subr.mxu0 %v987
        %1281 = vmatpush2.msra.mxu0 %v986
        %1282 = vmatprep.subr.mxu0 %v983
        %1283 = vmatpush2.msra.mxu0 %v982
        %1284 = vmatprep.subr.mxu0 %v979
        %1285 = vmatpush2.msra.mxu0 %v978
        %1286 = vmatprep.subr.mxu0 %v975
        %1287 = vmatpush2.msra.mxu0 %v974
        %1288 = vmatprep.subr.mxu0 %v971
        %1289 = vmatpush2.msra.mxu0 %v970
        %1290 = vmatprep.subr.mxu0 %v967
        %1291 = vmatpush2.msra.mxu0 %v966
        %1292 = vmatprep.subr.mxu0 %v963
        %1293 = vmatpush2.msra.mxu0 %v962
        %1294 = vmatprep.subr.mxu0 %v959
        %1295 = vmatpush2.msra.mxu0 %v958
        %1296 = vmatprep.subr.mxu0 %v955
        %1297 = vmatpush2.msra.mxu0 %v954
        %1298 = vmatprep.subr.mxu0 %v951
        %1299 = vmatpush2.msra.mxu0 %v950
        %1300 = vmatprep.subr.mxu0 %v947
        %1301 = vmatpush2.msra.mxu0 %v946
        %1302 = vmatprep.mubr.f32.mxu0 %v624
        %1303 = vmatmul.mubr.f32.gmra.mxu0 %v623
        %v1304 = vpop.f32.mrf.mxu0
        %v1305 = vadd.f32 %v1234, %v1304
        %v1306 = vpop.f32.mrf.mxu0
        %v1307 = vadd.f32 %v1236, %v1306
        %1308 = vdwg.mxu0
        %1309 = vmatprep.subr.mxu0 %v1071
        %1310 = vmatpush1.msra.mxu0 %v1070
        %1311 = vmatprep.subr.mxu0 %v1067
        %1312 = vmatpush1.msra.mxu0 %v1066
        %1313 = vmatprep.subr.mxu0 %v1063
        %1314 = vmatpush1.msra.mxu0 %v1062
        %1315 = vmatprep.subr.mxu0 %v1059
        %1316 = vmatpush1.msra.mxu0 %v1058
        %1317 = vmatprep.subr.mxu0 %v1055
        %1318 = vmatpush1.msra.mxu0 %v1054
        %1319 = vmatprep.subr.mxu0 %v1051
        %1320 = vmatpush1.msra.mxu0 %v1050
        %1321 = vmatprep.subr.mxu0 %v1047
        %1322 = vmatpush1.msra.mxu0 %v1046
        %1323 = vmatprep.subr.mxu0 %v1043
        %1324 = vmatpush1.msra.mxu0 %v1042
        %1325 = vmatprep.subr.mxu0 %v1039
        %1326 = vmatpush1.msra.mxu0 %v1038
        %1327 = vmatprep.subr.mxu0 %v1035
        %1328 = vmatpush1.msra.mxu0 %v1034
        %1329 = vmatprep.subr.mxu0 %v1031
        %1330 = vmatpush1.msra.mxu0 %v1030
        %1331 = vmatprep.subr.mxu0 %v1027
        %1332 = vmatpush1.msra.mxu0 %v1026
        %1333 = vmatprep.subr.mxu0 %v1023
        %1334 = vmatpush1.msra.mxu0 %v1022
        %1335 = vmatprep.subr.mxu0 %v1019
        %1336 = vmatpush1.msra.mxu0 %v1018
        %1337 = vmatprep.subr.mxu0 %v1015
        %1338 = vmatpush1.msra.mxu0 %v1014
        %1339 = vmatprep.subr.mxu0 %v1011
        %1340 = vmatpush1.msra.mxu0 %v1010
        %1341 = vmatprep.subr.mxu0 0.0
        %1342 = vmatpush2.msra.mxu0 0.0
        %1343 = vmatprep.subr.mxu0 0.0
        %1344 = vmatpush2.msra.mxu0 0.0
        %1345 = vmatprep.subr.mxu0 0.0
        %1346 = vmatpush2.msra.mxu0 0.0
        %1347 = vmatprep.subr.mxu0 0.0
        %1348 = vmatpush2.msra.mxu0 0.0
        %1349 = vmatprep.subr.mxu0 0.0
        %1350 = vmatpush2.msra.mxu0 0.0
        %1351 = vmatprep.subr.mxu0 0.0
        %1352 = vmatpush2.msra.mxu0 0.0
        %1353 = vmatprep.subr.mxu0 0.0
        %1354 = vmatpush2.msra.mxu0 0.0
        %1355 = vmatprep.subr.mxu0 0.0
        %1356 = vmatpush2.msra.mxu0 0.0
        %1357 = vmatprep.subr.mxu0 0.0
        %1358 = vmatpush2.msra.mxu0 0.0
        %1359 = vmatprep.subr.mxu0 0.0
        %1360 = vmatpush2.msra.mxu0 0.0
        %1361 = vmatprep.subr.mxu0 0.0
        %1362 = vmatpush2.msra.mxu0 0.0
        %1363 = vmatprep.subr.mxu0 0.0
        %1364 = vmatpush2.msra.mxu0 0.0
        %1365 = vmatprep.subr.mxu0 0.0
        %1366 = vmatpush2.msra.mxu0 0.0
        %1367 = vmatprep.subr.mxu0 0.0
        %1368 = vmatpush2.msra.mxu0 0.0
        %1369 = vmatprep.subr.mxu0 0.0
        %1370 = vmatpush2.msra.mxu0 0.0
        %1371 = vmatprep.subr.mxu0 0.0
        %1372 = vmatpush2.msra.mxu0 0.0
        %1373 = vmatprep.mubr.f32.mxu0 0.0
        %1374 = vmatmul.mubr.f32.gmra.mxu0 %v625
        %v1375 = vpop.f32.mrf.mxu0
        %v1376 = vadd.f32 %v1305, %v1375
        %v1377 = vpop.f32.mrf.mxu0
        %v1378 = vadd.f32 %v1307, %v1377
        %1379 = vdwg.mxu0
        %1380 = vmatprep.subr.mxu0 %v689
        %1381 = vmatpush1.msra.mxu0 %v688
        %1382 = vmatprep.subr.mxu0 %v685
        %1383 = vmatpush1.msra.mxu0 %v684
        %1384 = vmatprep.subr.mxu0 %v681
        %1385 = vmatpush1.msra.mxu0 %v680
        %1386 = vmatprep.subr.mxu0 %v677
        %1387 = vmatpush1.msra.mxu0 %v676
        %1388 = vmatprep.subr.mxu0 %v673
        %1389 = vmatpush1.msra.mxu0 %v672
        %1390 = vmatprep.subr.mxu0 %v669
        %1391 = vmatpush1.msra.mxu0 %v668
        %1392 = vmatprep.subr.mxu0 %v665
        %1393 = vmatpush1.msra.mxu0 %v664
        %1394 = vmatprep.subr.mxu0 %v661
        %1395 = vmatpush1.msra.mxu0 %v660
        %1396 = vmatprep.subr.mxu0 %v657
        %1397 = vmatpush1.msra.mxu0 %v656
        %1398 = vmatprep.subr.mxu0 %v653
        %1399 = vmatpush1.msra.mxu0 %v652
        %1400 = vmatprep.subr.mxu0 %v649
        %1401 = vmatpush1.msra.mxu0 %v648
        %1402 = vmatprep.subr.mxu0 %v645
        %1403 = vmatpush1.msra.mxu0 %v644
        %1404 = vmatprep.subr.mxu0 %v641
        %1405 = vmatpush1.msra.mxu0 %v640
        %1406 = vmatprep.subr.mxu0 %v637
        %1407 = vmatpush1.msra.mxu0 %v636
        %1408 = vmatprep.subr.mxu0 %v633
        %1409 = vmatpush1.msra.mxu0 %v632
        %1410 = vmatprep.subr.mxu0 %v629
        %1411 = vmatpush1.msra.mxu0 %v628
        %1412 = vmatprep.subr.mxu0 %v753
        %1413 = vmatpush2.msra.mxu0 %v752
        %1414 = vmatprep.subr.mxu0 %v749
        %1415 = vmatpush2.msra.mxu0 %v748
        %1416 = vmatprep.subr.mxu0 %v745
        %1417 = vmatpush2.msra.mxu0 %v744
        %1418 = vmatprep.subr.mxu0 %v741
        %1419 = vmatpush2.msra.mxu0 %v740
        %1420 = vmatprep.subr.mxu0 %v737
        %1421 = vmatpush2.msra.mxu0 %v736
        %1422 = vmatprep.subr.mxu0 %v733
        %1423 = vmatpush2.msra.mxu0 %v732
        %1424 = vmatprep.subr.mxu0 %v729
        %1425 = vmatpush2.msra.mxu0 %v728
        %1426 = vmatprep.subr.mxu0 %v725
        %1427 = vmatpush2.msra.mxu0 %v724
        %1428 = vmatprep.subr.mxu0 %v721
        %1429 = vmatpush2.msra.mxu0 %v720
        %1430 = vmatprep.subr.mxu0 %v717
        %1431 = vmatpush2.msra.mxu0 %v716
        %1432 = vmatprep.subr.mxu0 %v713
        %1433 = vmatpush2.msra.mxu0 %v712
        %1434 = vmatprep.subr.mxu0 %v709
        %1435 = vmatpush2.msra.mxu0 %v708
        %1436 = vmatprep.subr.mxu0 %v705
        %1437 = vmatpush2.msra.mxu0 %v704
        %1438 = vmatprep.subr.mxu0 %v701
        %1439 = vmatpush2.msra.mxu0 %v700
        %1440 = vmatprep.subr.mxu0 %v697
        %1441 = vmatpush2.msra.mxu0 %v696
        %1442 = vmatprep.subr.mxu0 %v693
        %1443 = vmatpush2.msra.mxu0 %v692
        %1444 = vmatprep.mubr.f32.mxu0 %v620
        %1445 = vmatmul.mubr.f32.gmra.mxu0 %v619
        %v1446 = vpop.f32.mrf.mxu0
        %v1447 = vadd.f32 %v1087, %v1446
        %v1448 = vpop.f32.mrf.mxu0
        %v1449 = vadd.f32 %v1091, %v1448
        %1450 = vdwg.mxu0
        %1451 = vmatprep.subr.mxu0 %v817
        %1452 = vmatpush1.msra.mxu0 %v816
        %1453 = vmatprep.subr.mxu0 %v813
        %1454 = vmatpush1.msra.mxu0 %v812
        %1455 = vmatprep.subr.mxu0 %v809
        %1456 = vmatpush1.msra.mxu0 %v808
        %1457 = vmatprep.subr.mxu0 %v805
        %1458 = vmatpush1.msra.mxu0 %v804
        %1459 = vmatprep.subr.mxu0 %v801
        %1460 = vmatpush1.msra.mxu0 %v800
        %1461 = vmatprep.subr.mxu0 %v797
        %1462 = vmatpush1.msra.mxu0 %v796
        %1463 = vmatprep.subr.mxu0 %v793
        %1464 = vmatpush1.msra.mxu0 %v792
        %1465 = vmatprep.subr.mxu0 %v789
        %1466 = vmatpush1.msra.mxu0 %v788
        %1467 = vmatprep.subr.mxu0 %v785
        %1468 = vmatpush1.msra.mxu0 %v784
        %1469 = vmatprep.subr.mxu0 %v781
        %1470 = vmatpush1.msra.mxu0 %v780
        %1471 = vmatprep.subr.mxu0 %v777
        %1472 = vmatpush1.msra.mxu0 %v776
        %1473 = vmatprep.subr.mxu0 %v773
        %1474 = vmatpush1.msra.mxu0 %v772
        %1475 = vmatprep.subr.mxu0 %v769
        %1476 = vmatpush1.msra.mxu0 %v768
        %1477 = vmatprep.subr.mxu0 %v765
        %1478 = vmatpush1.msra.mxu0 %v764
        %1479 = vmatprep.subr.mxu0 %v761
        %1480 = vmatpush1.msra.mxu0 %v760
        %1481 = vmatprep.subr.mxu0 %v757
        %1482 = vmatpush1.msra.mxu0 %v756
        %1483 = vmatprep.subr.mxu0 %v881
        %1484 = vmatpush2.msra.mxu0 %v880
        %1485 = vmatprep.subr.mxu0 %v877
        %1486 = vmatpush2.msra.mxu0 %v876
        %1487 = vmatprep.subr.mxu0 %v873
        %1488 = vmatpush2.msra.mxu0 %v872
        %1489 = vmatprep.subr.mxu0 %v869
        %1490 = vmatpush2.msra.mxu0 %v868
        %1491 = vmatprep.subr.mxu0 %v865
        %1492 = vmatpush2.msra.mxu0 %v864
        %1493 = vmatprep.subr.mxu0 %v861
        %1494 = vmatpush2.msra.mxu0 %v860
        %1495 = vmatprep.subr.mxu0 %v857
        %1496 = vmatpush2.msra.mxu0 %v856
        %1497 = vmatprep.subr.mxu0 %v853
        %1498 = vmatpush2.msra.mxu0 %v852
        %1499 = vmatprep.subr.mxu0 %v849
        %1500 = vmatpush2.msra.mxu0 %v848
        %1501 = vmatprep.subr.mxu0 %v845
        %1502 = vmatpush2.msra.mxu0 %v844
        %1503 = vmatprep.subr.mxu0 %v841
        %1504 = vmatpush2.msra.mxu0 %v840
        %1505 = vmatprep.subr.mxu0 %v837
        %1506 = vmatpush2.msra.mxu0 %v836
        %1507 = vmatprep.subr.mxu0 %v833
        %1508 = vmatpush2.msra.mxu0 %v832
        %1509 = vmatprep.subr.mxu0 %v829
        %1510 = vmatpush2.msra.mxu0 %v828
        %1511 = vmatprep.subr.mxu0 %v825
        %1512 = vmatpush2.msra.mxu0 %v824
        %1513 = vmatprep.subr.mxu0 %v821
        %1514 = vmatpush2.msra.mxu0 %v820
        %1515 = vmatprep.mubr.f32.mxu0 %v622
        %1516 = vmatmul.mubr.f32.gmra.mxu0 %v621
        %v1517 = vpop.f32.mrf.mxu0
        %v1518 = vadd.f32 %v1447, %v1517
        %v1519 = vpop.f32.mrf.mxu0
        %v1520 = vadd.f32 %v1449, %v1519
        %1521 = vdwg.mxu0
        %1522 = vmatprep.subr.mxu0 %v945
        %1523 = vmatpush1.msra.mxu0 %v944
        %1524 = vmatprep.subr.mxu0 %v941
        %1525 = vmatpush1.msra.mxu0 %v940
        %1526 = vmatprep.subr.mxu0 %v937
        %1527 = vmatpush1.msra.mxu0 %v936
        %1528 = vmatprep.subr.mxu0 %v933
        %1529 = vmatpush1.msra.mxu0 %v932
        %1530 = vmatprep.subr.mxu0 %v929
        %1531 = vmatpush1.msra.mxu0 %v928
        %1532 = vmatprep.subr.mxu0 %v925
        %1533 = vmatpush1.msra.mxu0 %v924
        %1534 = vmatprep.subr.mxu0 %v921
        %1535 = vmatpush1.msra.mxu0 %v920
        %1536 = vmatprep.subr.mxu0 %v917
        %1537 = vmatpush1.msra.mxu0 %v916
        %1538 = vmatprep.subr.mxu0 %v913
        %1539 = vmatpush1.msra.mxu0 %v912
        %1540 = vmatprep.subr.mxu0 %v909
        %1541 = vmatpush1.msra.mxu0 %v908
        %1542 = vmatprep.subr.mxu0 %v905
        %1543 = vmatpush1.msra.mxu0 %v904
        %1544 = vmatprep.subr.mxu0 %v901
        %1545 = vmatpush1.msra.mxu0 %v900
        %1546 = vmatprep.subr.mxu0 %v897
        %1547 = vmatpush1.msra.mxu0 %v896
        %1548 = vmatprep.subr.mxu0 %v893
        %1549 = vmatpush1.msra.mxu0 %v892
        %1550 = vmatprep.subr.mxu0 %v889
        %1551 = vmatpush1.msra.mxu0 %v888
        %1552 = vmatprep.subr.mxu0 %v885
        %1553 = vmatpush1.msra.mxu0 %v884
        %1554 = vmatprep.subr.mxu0 %v1009
        %1555 = vmatpush2.msra.mxu0 %v1008
        %1556 = vmatprep.subr.mxu0 %v1005
        %1557 = vmatpush2.msra.mxu0 %v1004
        %1558 = vmatprep.subr.mxu0 %v1001
        %1559 = vmatpush2.msra.mxu0 %v1000
        %1560 = vmatprep.subr.mxu0 %v997
        %1561 = vmatpush2.msra.mxu0 %v996
        %1562 = vmatprep.subr.mxu0 %v993
        %1563 = vmatpush2.msra.mxu0 %v992
        %1564 = vmatprep.subr.mxu0 %v989
        %1565 = vmatpush2.msra.mxu0 %v988
        %1566 = vmatprep.subr.mxu0 %v985
        %1567 = vmatpush2.msra.mxu0 %v984
        %1568 = vmatprep.subr.mxu0 %v981
        %1569 = vmatpush2.msra.mxu0 %v980
        %1570 = vmatprep.subr.mxu0 %v977
        %1571 = vmatpush2.msra.mxu0 %v976
        %1572 = vmatprep.subr.mxu0 %v973
        %1573 = vmatpush2.msra.mxu0 %v972
        %1574 = vmatprep.subr.mxu0 %v969
        %1575 = vmatpush2.msra.mxu0 %v968
        %1576 = vmatprep.subr.mxu0 %v965
        %1577 = vmatpush2.msra.mxu0 %v964
        %1578 = vmatprep.subr.mxu0 %v961
        %1579 = vmatpush2.msra.mxu0 %v960
        %1580 = vmatprep.subr.mxu0 %v957
        %1581 = vmatpush2.msra.mxu0 %v956
        %1582 = vmatprep.subr.mxu0 %v953
        %1583 = vmatpush2.msra.mxu0 %v952
        %1584 = vmatprep.subr.mxu0 %v949
        %1585 = vmatpush2.msra.mxu0 %v948
        %1586 = vmatprep.mubr.f32.mxu0 %v624
        %1587 = vmatmul.mubr.f32.gmra.mxu0 %v623
        %v1588 = vpop.f32.mrf.mxu0
        %v1589 = vadd.f32 %v1518, %v1588
        %v1590 = vpop.f32.mrf.mxu0
        %v1591 = vadd.f32 %v1520, %v1590
        %1592 = vdwg.mxu0
        %1593 = vmatprep.subr.mxu0 %v1073
        %1594 = vmatpush1.msra.mxu0 %v1072
        %1595 = vmatprep.subr.mxu0 %v1069
        %1596 = vmatpush1.msra.mxu0 %v1068
        %1597 = vmatprep.subr.mxu0 %v1065
        %1598 = vmatpush1.msra.mxu0 %v1064
        %1599 = vmatprep.subr.mxu0 %v1061
        %1600 = vmatpush1.msra.mxu0 %v1060
        %1601 = vmatprep.subr.mxu0 %v1057
        %1602 = vmatpush1.msra.mxu0 %v1056
        %1603 = vmatprep.subr.mxu0 %v1053
        %1604 = vmatpush1.msra.mxu0 %v1052
        %1605 = vmatprep.subr.mxu0 %v1049
        %1606 = vmatpush1.msra.mxu0 %v1048
        %1607 = vmatprep.subr.mxu0 %v1045
        %1608 = vmatpush1.msra.mxu0 %v1044
        %1609 = vmatprep.subr.mxu0 %v1041
        %1610 = vmatpush1.msra.mxu0 %v1040
        %1611 = vmatprep.subr.mxu0 %v1037
        %1612 = vmatpush1.msra.mxu0 %v1036
        %1613 = vmatprep.subr.mxu0 %v1033
        %1614 = vmatpush1.msra.mxu0 %v1032
        %1615 = vmatprep.subr.mxu0 %v1029
        %1616 = vmatpush1.msra.mxu0 %v1028
        %1617 = vmatprep.subr.mxu0 %v1025
        %1618 = vmatpush1.msra.mxu0 %v1024
        %1619 = vmatprep.subr.mxu0 %v1021
        %1620 = vmatpush1.msra.mxu0 %v1020
        %1621 = vmatprep.subr.mxu0 %v1017
        %1622 = vmatpush1.msra.mxu0 %v1016
        %1623 = vmatprep.subr.mxu0 %v1013
        %1624 = vmatpush1.msra.mxu0 %v1012
        %1625 = vmatprep.subr.mxu0 0.0
        %1626 = vmatpush2.msra.mxu0 0.0
        %1627 = vmatprep.subr.mxu0 0.0
        %1628 = vmatpush2.msra.mxu0 0.0
        %1629 = vmatprep.subr.mxu0 0.0
        %1630 = vmatpush2.msra.mxu0 0.0
        %1631 = vmatprep.subr.mxu0 0.0
        %1632 = vmatpush2.msra.mxu0 0.0
        %1633 = vmatprep.subr.mxu0 0.0
        %1634 = vmatpush2.msra.mxu0 0.0
        %1635 = vmatprep.subr.mxu0 0.0
        %1636 = vmatpush2.msra.mxu0 0.0
        %1637 = vmatprep.subr.mxu0 0.0
        %1638 = vmatpush2.msra.mxu0 0.0
        %1639 = vmatprep.subr.mxu0 0.0
        %1640 = vmatpush2.msra.mxu0 0.0
        %1641 = vmatprep.subr.mxu0 0.0
        %1642 = vmatpush2.msra.mxu0 0.0
        %1643 = vmatprep.subr.mxu0 0.0
        %1644 = vmatpush2.msra.mxu0 0.0
        %1645 = vmatprep.subr.mxu0 0.0
        %1646 = vmatpush2.msra.mxu0 0.0
        %1647 = vmatprep.subr.mxu0 0.0
        %1648 = vmatpush2.msra.mxu0 0.0
        %1649 = vmatprep.subr.mxu0 0.0
        %1650 = vmatpush2.msra.mxu0 0.0
        %1651 = vmatprep.subr.mxu0 0.0
        %1652 = vmatpush2.msra.mxu0 0.0
        %1653 = vmatprep.subr.mxu0 0.0
        %1654 = vmatpush2.msra.mxu0 0.0
        %1655 = vmatprep.subr.mxu0 0.0
        %1656 = vmatpush2.msra.mxu0 0.0
        %1657 = vmatprep.mubr.f32.mxu0 0.0
        %1658 = vmatmul.mubr.f32.gmra.mxu0 %v625
        %v1659 = vpop.f32.mrf.mxu0
        %v1660 = vadd.f32 %v1589, %v1659
        %v1661 = vpop.f32.mrf.mxu0
        %v1662 = vadd.f32 %v1591, %v1661
        %1663 = vdwg.mxu0
        %v1664 = vmul.f32 %v1376, %v1376
        %v1665 = vmul.f32 %v1378, %v1378
        %v1666 = vmul.f32 %v1660, %v1660
        %v1667 = vmul.f32 %v1662, %v1662
        %v1668 = vadd.f32 %v1664, %v1666
        %v1669 = vadd.f32 %v1665, %v1667
        %v1670 = vadd.f32 %v1668, 1e-30
        %v1671 = vadd.f32 %v1669, 1e-30
        %v1672 = vrsqrt.pop %v1670
        %v1673 = vrsqrt.pop %v1671
        %v1674 = vmul.f32 %v1668, %v1672
        %v1675 = vmul.f32 %v1669, %v1673
        %v1676 = vmul.f32 %v1376, %v1672
        %v1677 = vmul.f32 %v1378, %v1673
        %v1678 = vmax.f32 %v1676, -1.0
        %v1679 = vmax.f32 %v1677, -1.0
        %v1680 = vmin.f32 %v1678, 1.0
        %v1681 = vmin.f32 %v1679, 1.0
        %v1682 = vand.u32 2147483647, %v1680
        %v1683 = vand.u32 2147483647, %v1681
        %v1684 = vmul.f32 %v1682, -0.0187293
        %v1685 = vmul.f32 %v1683, -0.0187293
        %v1686 = vadd.f32 %v1684, 0.074261
        %v1687 = vadd.f32 %v1685, 0.074261
        %v1688 = vmul.f32 %v1682, %v1686
        %v1689 = vmul.f32 %v1683, %v1687
        %v1690 = vadd.f32 %v1688, -0.2121144
        %v1691 = vadd.f32 %v1689, -0.2121144
        %v1692 = vmul.f32 %v1682, %v1690
        %v1693 = vmul.f32 %v1683, %v1691
        %v1694 = vadd.f32 %v1692, 1.5707288
        %v1695 = vadd.f32 %v1693, 1.5707288
        %v1696 = vsub.f32 1.0, %v1682
        %v1697 = vsub.f32 1.0, %v1683
        %v1698 = vrsqrt.pop %v1696
        %v1699 = vmul.f32 %v1696, %v1698
        %vm1700 = vcmp.eq.f32.partialorder %v1696, inf
        %v1701 = vsel %vm1700, %v1696, %v1699
        %vm1702 = vcmp.eq.f32.partialorder %v1696, 0.0
        %v1703 = vand.u32 %v1696, 2147483648
        %v1704 = vsel %vm1702, %v1703, %v1701
        %v1705 = vrsqrt.pop %v1697
        %v1706 = vmul.f32 %v1697, %v1705
        %vm1707 = vcmp.eq.f32.partialorder %v1697, inf
        %v1708 = vsel %vm1707, %v1697, %v1706
        %vm1709 = vcmp.eq.f32.partialorder %v1697, 0.0
        %v1710 = vand.u32 %v1697, 2147483648
        %v1711 = vsel %vm1709, %v1710, %v1708
        %v1712 = vmul.f32 %v1704, %v1694
        %v1713 = vmul.f32 %v1711, %v1695
        %vm1714 = vcmp.lt.f32.partialorder %v1680, 0.0
        %vm1715 = vcmp.lt.f32.partialorder %v1681, 0.0
        %v1716 = vsub.f32 3.1415927, %v1712
        %v1717 = vsub.f32 3.1415927, %v1713
        %v1718 = vsel %vm1714, %v1716, %v1712
        %v1719 = vsel %vm1715, %v1717, %v1713
        %v1720 = vmul.f32 %v1718, -0.05
        %v1721 = vmul.f32 %v1719, -0.05
        %v1722 = vmul.f32 %v1720, %v1720
        %v1723 = vmul.f32 %v1721, %v1721
        %v1724 = vmul.f32 %v1722, 0.041666668
        %v1725 = vmul.f32 %v1723, 0.041666668
        %v1726 = vadd.f32 %v1724, -0.5
        %v1727 = vadd.f32 %v1725, -0.5
        %v1728 = vmul.f32 %v1722, %v1726
        %v1729 = vmul.f32 %v1723, %v1727
        %v1730 = vadd.f32 %v1728, 1.0
        %v1731 = vadd.f32 %v1729, 1.0
        %v1732 = vmul.f32 %v1722, -0.16666667
        %v1733 = vmul.f32 %v1723, -0.16666667
        %v1734 = vadd.f32 %v1732, 1.0
        %v1735 = vadd.f32 %v1733, 1.0
        %v1736 = vmul.f32 %v1720, %v1734
        %v1737 = vmul.f32 %v1721, %v1735
        %v1738 = vmul.f32 %v1674, %v1730
        %v1739 = vmul.f32 %v1675, %v1731
        %v1740 = vmul.f32 %v1674, %v1736
        %v1741 = vmul.f32 %v1675, %v1737
        %vm1742 = vcmp.lt.f32.partialorder %v1660, 0.0
        %vm1743 = vcmp.lt.f32.partialorder %v1662, 0.0
        %v1744 = vsel %vm1742, %v1738, %v1376
        %v1745 = vsel %vm1743, %v1739, %v1378
        %v1746 = vsel %vm1742, %v1740, %v1660
        %v1747 = vsel %vm1743, %v1741, %v1662
        %v1748 = vld [vmem:[#allocation8] sm:$0xff]
        %v1749 = vld [vmem:[#allocation8 + $0x8] sm:$0xff]
        %v1750 = vld [vmem:[#allocation8 + $0x10] sm:$0xff]
        %v1751 = vld [vmem:[#allocation8 + $0x18] sm:$0xff]
        %v1752 = vld [vmem:[#allocation8 + $0x20] sm:$0xff]
        %v1753 = vld [vmem:[#allocation8 + $0x28] sm:$0xff]
        %v1754 = vld [vmem:[#allocation8 + $0x30] sm:$0xff]
        %v1755 = vld [vmem:[#allocation8 + $0x38] sm:$0xff]
        %v1756 = vld [vmem:[#allocation8 + $0x40] sm:$0xff]
        %v1757 = vld [vmem:[#allocation8 + $0x48] sm:$0xff]
        %v1758 = vld [vmem:[#allocation8 + $0x50] sm:$0xff]
        %v1759 = vld [vmem:[#allocation8 + $0x58] sm:$0xff]
        %v1760 = vld [vmem:[#allocation8 + $0x60] sm:$0xff]
        %v1761 = vld [vmem:[#allocation8 + $0x68] sm:$0xff]
        %v1762 = vld [vmem:[#allocation8 + $0x70] sm:$0xff]
        %v1763 = vld [vmem:[#allocation8 + $0x78] sm:$0xff]
        %v1764 = vld [vmem:[#allocation8 + $0x80] sm:$0xff]
        %v1765 = vld [vmem:[#allocation8 + $0x88] sm:$0xff]
        %v1766 = vld [vmem:[#allocation8 + $0x90] sm:$0xff]
        %v1767 = vld [vmem:[#allocation8 + $0x98] sm:$0xff]
        %v1768 = vld [vmem:[#allocation8 + $0xa0] sm:$0xff]
        %v1769 = vld [vmem:[#allocation8 + $0xa8] sm:$0xff]
        %v1770 = vld [vmem:[#allocation8 + $0xb0] sm:$0xff]
        %v1771 = vld [vmem:[#allocation8 + $0xb8] sm:$0xff]
        %v1772 = vld [vmem:[#allocation8 + $0xc0] sm:$0xff]
        %v1773 = vld [vmem:[#allocation8 + $0xc8] sm:$0xff]
        %v1774 = vld [vmem:[#allocation8 + $0xd0] sm:$0xff]
        %v1775 = vld [vmem:[#allocation8 + $0xd8] sm:$0xff]
        %v1776 = vld [vmem:[#allocation8 + $0xe0] sm:$0xff]
        %v1777 = vld [vmem:[#allocation8 + $0xe8] sm:$0xff]
        %v1778 = vld [vmem:[#allocation8 + $0xf0] sm:$0xff]
        %v1779 = vld [vmem:[#allocation8 + $0xf8] sm:$0xff]
        %v1780 = vld [vmem:[#allocation8 + $0x100] sm:$0xff]
        %v1781 = vld [vmem:[#allocation8 + $0x108] sm:$0xff]
        %v1782 = vld [vmem:[#allocation8 + $0x110] sm:$0xff]
        %v1783 = vld [vmem:[#allocation8 + $0x118] sm:$0xff]
        %v1784 = vld [vmem:[#allocation8 + $0x120] sm:$0xff]
        %v1785 = vld [vmem:[#allocation8 + $0x128] sm:$0xff]
        %v1786 = vld [vmem:[#allocation8 + $0x130] sm:$0xff]
        %v1787 = vld [vmem:[#allocation8 + $0x138] sm:$0xff]
        %v1788 = vld [vmem:[#allocation8 + $0x140] sm:$0xff]
        %v1789 = vld [vmem:[#allocation8 + $0x148] sm:$0xff]
        %v1790 = vld [vmem:[#allocation8 + $0x150] sm:$0xff]
        %v1791 = vld [vmem:[#allocation8 + $0x158] sm:$0xff]
        %v1792 = vld [vmem:[#allocation8 + $0x160] sm:$0xff]
        %v1793 = vld [vmem:[#allocation8 + $0x168] sm:$0xff]
        %v1794 = vld [vmem:[#allocation8 + $0x170] sm:$0xff]
        %v1795 = vld [vmem:[#allocation8 + $0x178] sm:$0xff]
        %v1796 = vld [vmem:[#allocation8 + $0x180] sm:$0xff]
        %v1797 = vld [vmem:[#allocation8 + $0x188] sm:$0xff]
        %v1798 = vld [vmem:[#allocation8 + $0x190] sm:$0xff]
        %v1799 = vld [vmem:[#allocation8 + $0x198] sm:$0xff]
        %v1800 = vld [vmem:[#allocation8 + $0x1a0] sm:$0xff]
        %v1801 = vld [vmem:[#allocation8 + $0x1a8] sm:$0xff]
        %v1802 = vld [vmem:[#allocation8 + $0x1b0] sm:$0xff]
        %v1803 = vld [vmem:[#allocation8 + $0x1b8] sm:$0xff]
        %v1804 = vld [vmem:[#allocation8 + $0x1c0] sm:$0xff]
        %v1805 = vld [vmem:[#allocation8 + $0x1c8] sm:$0xff]
        %v1806 = vld [vmem:[#allocation8 + $0x1d0] sm:$0xff]
        %v1807 = vld [vmem:[#allocation8 + $0x1d8] sm:$0xff]
        %v1808 = vld [vmem:[#allocation8 + $0x1e0] sm:$0xff]
        %v1809 = vld [vmem:[#allocation8 + $0x1e8] sm:$0xff]
        %v1810 = vld [vmem:[#allocation8 + $0x1f0] sm:$0xff]
        %v1811 = vld [vmem:[#allocation8 + $0x1f8] sm:$0xff]
        %v1812 = vld [vmem:[#allocation8 + $0x200] sm:$0xff]
        %v1813 = vld [vmem:[#allocation8 + $0x208] sm:$0xff]
        %v1814 = vld [vmem:[#allocation8 + $0x210] sm:$0xff]
        %v1815 = vld [vmem:[#allocation8 + $0x218] sm:$0xff]
        %v1816 = vld [vmem:[#allocation8 + $0x220] sm:$0xff]
        %v1817 = vld [vmem:[#allocation8 + $0x228] sm:$0xff]
        %v1818 = vld [vmem:[#allocation8 + $0x230] sm:$0xff]
        %v1819 = vld [vmem:[#allocation8 + $0x238] sm:$0xff]
        %v1820 = vld [vmem:[#allocation8 + $0x240] sm:$0xff]
        %v1821 = vld [vmem:[#allocation8 + $0x248] sm:$0xff]
        %v1822 = vld [vmem:[#allocation8 + $0x250] sm:$0xff]
        %v1823 = vld [vmem:[#allocation8 + $0x258] sm:$0xff]
        %v1824 = vld [vmem:[#allocation8 + $0x260] sm:$0xff]
        %v1825 = vld [vmem:[#allocation8 + $0x268] sm:$0xff]
        %v1826 = vld [vmem:[#allocation8 + $0x270] sm:$0xff]
        %v1827 = vld [vmem:[#allocation8 + $0x278] sm:$0xff]
        %v1828 = vld [vmem:[#allocation8 + $0x280] sm:$0xff]
        %v1829 = vld [vmem:[#allocation8 + $0x288] sm:$0xff]
        %v1830 = vld [vmem:[#allocation8 + $0x290] sm:$0xff]
        %v1831 = vld [vmem:[#allocation8 + $0x298] sm:$0xff]
        %v1832 = vld [vmem:[#allocation8 + $0x2a0] sm:$0xff]
        %v1833 = vld [vmem:[#allocation8 + $0x2a8] sm:$0xff]
        %v1834 = vld [vmem:[#allocation8 + $0x2b0] sm:$0xff]
        %v1835 = vld [vmem:[#allocation8 + $0x2b8] sm:$0xff]
        %v1836 = vld [vmem:[#allocation8 + $0x2c0] sm:$0xff]
        %v1837 = vld [vmem:[#allocation8 + $0x2c8] sm:$0xff]
        %v1838 = vld [vmem:[#allocation8 + $0x2d0] sm:$0xff]
        %v1839 = vld [vmem:[#allocation8 + $0x2d8] sm:$0xff]
        %v1840 = vld [vmem:[#allocation8 + $0x2e0] sm:$0xff]
        %v1841 = vld [vmem:[#allocation8 + $0x2e8] sm:$0xff]
        %v1842 = vld [vmem:[#allocation8 + $0x2f0] sm:$0xff]
        %v1843 = vld [vmem:[#allocation8 + $0x2f8] sm:$0xff]
        %v1844 = vld [vmem:[#allocation8 + $0x300] sm:$0xff]
        %v1845 = vld [vmem:[#allocation8 + $0x308] sm:$0xff]
        %v1846 = vld [vmem:[#allocation8 + $0x310] sm:$0xff]
        %v1847 = vld [vmem:[#allocation8 + $0x318] sm:$0xff]
        %v1848 = vld [vmem:[#allocation8 + $0x320] sm:$0xff]
        %v1849 = vld [vmem:[#allocation8 + $0x328] sm:$0xff]
        %v1850 = vld [vmem:[#allocation8 + $0x330] sm:$0xff]
        %v1851 = vld [vmem:[#allocation8 + $0x338] sm:$0xff]
        %v1852 = vld [vmem:[#allocation8 + $0x340] sm:$0xff]
        %v1853 = vld [vmem:[#allocation8 + $0x348] sm:$0xff]
        %v1854 = vld [vmem:[#allocation8 + $0x350] sm:$0xff]
        %v1855 = vld [vmem:[#allocation8 + $0x358] sm:$0xff]
        %v1856 = vld [vmem:[#allocation8 + $0x360] sm:$0xff]
        %v1857 = vld [vmem:[#allocation8 + $0x368] sm:$0xff]
        %v1858 = vld [vmem:[#allocation8 + $0x370] sm:$0xff]
        %v1859 = vld [vmem:[#allocation8 + $0x378] sm:$0xff]
        %v1860 = vld [vmem:[#allocation8 + $0x380] sm:$0xff]
        %v1861 = vld [vmem:[#allocation8 + $0x388] sm:$0xff]
        %v1862 = vld [vmem:[#allocation8 + $0x390] sm:$0xff]
        %v1863 = vld [vmem:[#allocation8 + $0x398] sm:$0xff]
        %v1864 = vld [vmem:[#allocation8 + $0x3a0] sm:$0xff]
        %v1865 = vld [vmem:[#allocation8 + $0x3a8] sm:$0xff]
        %v1866 = vld [vmem:[#allocation8 + $0x3b0] sm:$0xff]
        %v1867 = vld [vmem:[#allocation8 + $0x3b8] sm:$0xff]
        %v1868 = vld [vmem:[#allocation8 + $0x3c0] sm:$0xff]
        %v1869 = vld [vmem:[#allocation8 + $0x3c8] sm:$0xff]
        %v1870 = vld [vmem:[#allocation8 + $0x3d0] sm:$0xff]
        %v1871 = vld [vmem:[#allocation8 + $0x3d8] sm:$0xff]
        %v1872 = vld [vmem:[#allocation8 + $0x3e0] sm:$0xff]
        %v1873 = vld [vmem:[#allocation8 + $0x3e8] sm:$0xff]
        %v1874 = vld [vmem:[#allocation8 + $0x3f0] sm:$0xff]
        %v1875 = vld [vmem:[#allocation8 + $0x3f8] sm:$0xff]
        %v1876 = vld [vmem:[#allocation8 + $0x400] sm:$0xff]
        %v1877 = vld [vmem:[#allocation8 + $0x408] sm:$0xff]
        %v1878 = vld [vmem:[#allocation8 + $0x410] sm:$0xff]
        %v1879 = vld [vmem:[#allocation8 + $0x418] sm:$0xff]
        %v1880 = vld [vmem:[#allocation8 + $0x420] sm:$0xff]
        %v1881 = vld [vmem:[#allocation8 + $0x428] sm:$0xff]
        %v1882 = vld [vmem:[#allocation8 + $0x430] sm:$0xff]
        %v1883 = vld [vmem:[#allocation8 + $0x438] sm:$0xff]
        %v1884 = vld [vmem:[#allocation8 + $0x440] sm:$0xff]
        %v1885 = vld [vmem:[#allocation8 + $0x448] sm:$0xff]
        %v1886 = vld [vmem:[#allocation8 + $0x450] sm:$0xff]
        %v1887 = vld [vmem:[#allocation8 + $0x458] sm:$0xff]
        %v1888 = vld [vmem:[#allocation8 + $0x460] sm:$0xff]
        %v1889 = vld [vmem:[#allocation8 + $0x468] sm:$0xff]
        %v1890 = vld [vmem:[#allocation8 + $0x470] sm:$0xff]
        %v1891 = vld [vmem:[#allocation8 + $0x478] sm:$0xff]
        %v1892 = vld [vmem:[#allocation8 + $0x480] sm:$0xff]
        %v1893 = vld [vmem:[#allocation8 + $0x488] sm:$0xff]
        %v1894 = vld [vmem:[#allocation8 + $0x490] sm:$0xff]
        %v1895 = vld [vmem:[#allocation8 + $0x498] sm:$0xff]
        %v1896 = vld [vmem:[#allocation8 + $0x4a0] sm:$0xff]
        %v1897 = vld [vmem:[#allocation8 + $0x4a8] sm:$0xff]
        %v1898 = vld [vmem:[#allocation8 + $0x4b0] sm:$0xff]
        %v1899 = vld [vmem:[#allocation8 + $0x4b8] sm:$0xff]
        %v1900 = vld [vmem:[#allocation8 + $0x4c0] sm:$0xff]
        %v1901 = vld [vmem:[#allocation8 + $0x4c8] sm:$0xff]
        %v1902 = vld [vmem:[#allocation8 + $0x4d0] sm:$0xff]
        %v1903 = vld [vmem:[#allocation8 + $0x4d8] sm:$0xff]
        %v1904 = vld [vmem:[#allocation8 + $0x4e0] sm:$0xff]
        %v1905 = vld [vmem:[#allocation8 + $0x4e8] sm:$0xff]
        %v1906 = vld [vmem:[#allocation8 + $0x4f0] sm:$0xff]
        %v1907 = vld [vmem:[#allocation8 + $0x4f8] sm:$0xff]
        %v1908 = vld [vmem:[#allocation8 + $0x500] sm:$0xff]
        %v1909 = vld [vmem:[#allocation8 + $0x508] sm:$0xff]
        %v1910 = vld [vmem:[#allocation8 + $0x510] sm:$0xff]
        %v1911 = vld [vmem:[#allocation8 + $0x518] sm:$0xff]
        %v1912 = vld [vmem:[#allocation8 + $0x520] sm:$0xff]
        %v1913 = vld [vmem:[#allocation8 + $0x528] sm:$0xff]
        %v1914 = vld [vmem:[#allocation8 + $0x530] sm:$0xff]
        %v1915 = vld [vmem:[#allocation8 + $0x538] sm:$0xff]
        %v1916 = vld [vmem:[#allocation8 + $0x540] sm:$0xff]
        %v1917 = vld [vmem:[#allocation8 + $0x548] sm:$0xff]
        %v1918 = vld [vmem:[#allocation8 + $0x550] sm:$0xff]
        %v1919 = vld [vmem:[#allocation8 + $0x558] sm:$0xff]
        %v1920 = vld [vmem:[#allocation8 + $0x560] sm:$0xff]
        %v1921 = vld [vmem:[#allocation8 + $0x568] sm:$0xff]
        %v1922 = vld [vmem:[#allocation8 + $0x570] sm:$0xff]
        %v1923 = vld [vmem:[#allocation8 + $0x578] sm:$0xff]
        %v1924 = vld [vmem:[#allocation8 + $0x580] sm:$0xff]
        %v1925 = vld [vmem:[#allocation8 + $0x588] sm:$0xff]
        %v1926 = vld [vmem:[#allocation8 + $0x590] sm:$0xff]
        %v1927 = vld [vmem:[#allocation8 + $0x598] sm:$0xff]
        %v1928 = vld [vmem:[#allocation8 + $0x5a0] sm:$0xff]
        %v1929 = vld [vmem:[#allocation8 + $0x5a8] sm:$0xff]
        %v1930 = vld [vmem:[#allocation8 + $0x5b0] sm:$0xff]
        %v1931 = vld [vmem:[#allocation8 + $0x5b8] sm:$0xff]
        %v1932 = vld [vmem:[#allocation8 + $0x5c0] sm:$0xff]
        %v1933 = vld [vmem:[#allocation8 + $0x5c8] sm:$0xff]
        %v1934 = vld [vmem:[#allocation8 + $0x5d0] sm:$0xff]
        %v1935 = vld [vmem:[#allocation8 + $0x5d8] sm:$0xff]
        %v1936 = vld [vmem:[#allocation8 + $0x5e0] sm:$0xff]
        %v1937 = vld [vmem:[#allocation8 + $0x5e8] sm:$0xff]
        %v1938 = vld [vmem:[#allocation8 + $0x5f0] sm:$0xff]
        %v1939 = vld [vmem:[#allocation8 + $0x5f8] sm:$0xff]
        %v1940 = vld [vmem:[#allocation8 + $0x600] sm:$0xff]
        %v1941 = vld [vmem:[#allocation8 + $0x608] sm:$0xff]
        %v1942 = vld [vmem:[#allocation8 + $0x610] sm:$0xff]
        %v1943 = vld [vmem:[#allocation8 + $0x618] sm:$0xff]
        %v1944 = vld [vmem:[#allocation8 + $0x620] sm:$0xff]
        %v1945 = vld [vmem:[#allocation8 + $0x628] sm:$0xff]
        %v1946 = vld [vmem:[#allocation8 + $0x630] sm:$0xff]
        %v1947 = vld [vmem:[#allocation8 + $0x638] sm:$0xff]
        %v1948 = vld [vmem:[#allocation8 + $0x640] sm:$0xff]
        %v1949 = vld [vmem:[#allocation8 + $0x648] sm:$0xff]
        %v1950 = vld [vmem:[#allocation8 + $0x650] sm:$0xff]
        %v1951 = vld [vmem:[#allocation8 + $0x658] sm:$0xff]
        %v1952 = vld [vmem:[#allocation8 + $0x660] sm:$0xff]
        %v1953 = vld [vmem:[#allocation8 + $0x668] sm:$0xff]
        %v1954 = vld [vmem:[#allocation8 + $0x670] sm:$0xff]
        %v1955 = vld [vmem:[#allocation8 + $0x678] sm:$0xff]
        %v1956 = vld [vmem:[#allocation8 + $0x680] sm:$0xff]
        %v1957 = vld [vmem:[#allocation8 + $0x688] sm:$0xff]
        %v1958 = vld [vmem:[#allocation8 + $0x690] sm:$0xff]
        %v1959 = vld [vmem:[#allocation8 + $0x698] sm:$0xff]
        %v1960 = vld [vmem:[#allocation8 + $0x6a0] sm:$0xff]
        %v1961 = vld [vmem:[#allocation8 + $0x6a8] sm:$0xff]
        %v1962 = vld [vmem:[#allocation8 + $0x6b0] sm:$0xff]
        %v1963 = vld [vmem:[#allocation8 + $0x6b8] sm:$0xff]
        %v1964 = vld [vmem:[#allocation8 + $0x6c0] sm:$0xff]
        %v1965 = vld [vmem:[#allocation8 + $0x6c8] sm:$0xff]
        %v1966 = vld [vmem:[#allocation8 + $0x6d0] sm:$0xff]
        %v1967 = vld [vmem:[#allocation8 + $0x6d8] sm:$0xff]
        %v1968 = vld [vmem:[#allocation8 + $0x6e0] sm:$0xff]
        %v1969 = vld [vmem:[#allocation8 + $0x6e8] sm:$0xff]
        %v1970 = vld [vmem:[#allocation8 + $0x6f0] sm:$0xff]
        %v1971 = vld [vmem:[#allocation8 + $0x6f8] sm:$0xff]
        %v1972 = vld [vmem:[#allocation8 + $0x700] sm:$0xff]
        %v1973 = vld [vmem:[#allocation8 + $0x708] sm:$0xff]
        %v1974 = vld [vmem:[#allocation8 + $0x710] sm:$0xff]
        %v1975 = vld [vmem:[#allocation8 + $0x718] sm:$0xff]
        %v1976 = vld [vmem:[#allocation8 + $0x720] sm:$0xff]
        %v1977 = vld [vmem:[#allocation8 + $0x728] sm:$0xff]
        %v1978 = vld [vmem:[#allocation8 + $0x730] sm:$0xff]
        %v1979 = vld [vmem:[#allocation8 + $0x738] sm:$0xff]
        %v1980 = vld [vmem:[#allocation8 + $0x740] sm:$0xff]
        %v1981 = vld [vmem:[#allocation8 + $0x748] sm:$0xff]
        %v1982 = vld [vmem:[#allocation8 + $0x750] sm:$0xff]
        %v1983 = vld [vmem:[#allocation8 + $0x758] sm:$0xff]
        %v1984 = vld [vmem:[#allocation8 + $0x760] sm:$0xff]
        %v1985 = vld [vmem:[#allocation8 + $0x768] sm:$0xff]
        %v1986 = vld [vmem:[#allocation8 + $0x770] sm:$0xff]
        %v1987 = vld [vmem:[#allocation8 + $0x778] sm:$0xff]
        %v1988 = vld [vmem:[#allocation8 + $0x780] sm:$0xff]
        %v1989 = vld [vmem:[#allocation8 + $0x788] sm:$0xff]
        %v1990 = vld [vmem:[#allocation8 + $0x790] sm:$0xff]
        %v1991 = vld [vmem:[#allocation8 + $0x798] sm:$0xff]
        %v1992 = vld [vmem:[#allocation8 + $0x7a0] sm:$0xff]
        %v1993 = vld [vmem:[#allocation8 + $0x7a8] sm:$0xff]
        %v1994 = vld [vmem:[#allocation8 + $0x7b0] sm:$0xff]
        %v1995 = vld [vmem:[#allocation8 + $0x7b8] sm:$0xff]
        %v1996 = vld [vmem:[#allocation8 + $0x7c0] sm:$0xff]
        %v1997 = vld [vmem:[#allocation8 + $0x7c8] sm:$0xff]
        %v1998 = vld [vmem:[#allocation8 + $0x7d0] sm:$0xff]
        %v1999 = vld [vmem:[#allocation8 + $0x7d8] sm:$0xff]
        %v2000 = vld [vmem:[#allocation8 + $0x7e0] sm:$0xff]
        %v2001 = vld [vmem:[#allocation8 + $0x7e8] sm:$0xff]
        %v2002 = vld [vmem:[#allocation8 + $0x7f0] sm:$0xff]
        %v2003 = vld [vmem:[#allocation8 + $0x7f8] sm:$0xff]
        %v2004 = vld [vmem:[#allocation10] sm:$0xf]
        %v2006 = vlaneseq
        %v2007 = vshrl.u32 %v2006, 7
        %v2008 = vsub.s32 0, %v2007
        %v2009 = vrot.slane %v2004, %v2008
        %v2010 = vlaneseq
        %v2011 = vshrl.u32 %v2010, 7
        %v2012 = vsub.s32 1, %v2011
        %v2013 = vrot.slane %v2004, %v2012
        %v2014 = vlaneseq
        %v2015 = vshrl.u32 %v2014, 7
        %v2016 = vsub.s32 2, %v2015
        %v2017 = vrot.slane %v2004, %v2016
        %v2018 = vlaneseq
        %v2019 = vshrl.u32 %v2018, 7
        %v2020 = vsub.s32 3, %v2019
        %v2021 = vrot.slane %v2004, %v2020
        %2026 = vmatprep.subr.mxu0 %v1809
        %2027 = vmatpush1.msra.mxu0 %v1808
        %2028 = vmatprep.subr.mxu0 %v1805
        %2029 = vmatpush1.msra.mxu0 %v1804
        %2030 = vmatprep.subr.mxu0 %v1801
        %2031 = vmatpush1.msra.mxu0 %v1800
        %2032 = vmatprep.subr.mxu0 %v1797
        %2033 = vmatpush1.msra.mxu0 %v1796
        %2034 = vmatprep.subr.mxu0 %v1793
        %2035 = vmatpush1.msra.mxu0 %v1792
        %2036 = vmatprep.subr.mxu0 %v1789
        %2037 = vmatpush1.msra.mxu0 %v1788
        %2038 = vmatprep.subr.mxu0 %v1785
        %2039 = vmatpush1.msra.mxu0 %v1784
        %2040 = vmatprep.subr.mxu0 %v1781
        %2041 = vmatpush1.msra.mxu0 %v1780
        %2042 = vmatprep.subr.mxu0 %v1777
        %2043 = vmatpush1.msra.mxu0 %v1776
        %2044 = vmatprep.subr.mxu0 %v1773
        %2045 = vmatpush1.msra.mxu0 %v1772
        %2046 = vmatprep.subr.mxu0 %v1769
        %2047 = vmatpush1.msra.mxu0 %v1768
        %2048 = vmatprep.subr.mxu0 %v1765
        %2049 = vmatpush1.msra.mxu0 %v1764
        %2050 = vmatprep.subr.mxu0 %v1761
        %2051 = vmatpush1.msra.mxu0 %v1760
        %2052 = vmatprep.subr.mxu0 %v1757
        %2053 = vmatpush1.msra.mxu0 %v1756
        %2054 = vmatprep.subr.mxu0 %v1753
        %2055 = vmatpush1.msra.mxu0 %v1752
        %2056 = vmatprep.subr.mxu0 %v1749
        %2057 = vmatpush1.msra.mxu0 %v1748
        %2058 = vmatprep.subr.mxu0 %v1873
        %2059 = vmatpush2.msra.mxu0 %v1872
        %2060 = vmatprep.subr.mxu0 %v1869
        %2061 = vmatpush2.msra.mxu0 %v1868
        %2062 = vmatprep.subr.mxu0 %v1865
        %2063 = vmatpush2.msra.mxu0 %v1864
        %2064 = vmatprep.subr.mxu0 %v1861
        %2065 = vmatpush2.msra.mxu0 %v1860
        %2066 = vmatprep.subr.mxu0 %v1857
        %2067 = vmatpush2.msra.mxu0 %v1856
        %2068 = vmatprep.subr.mxu0 %v1853
        %2069 = vmatpush2.msra.mxu0 %v1852
        %2070 = vmatprep.subr.mxu0 %v1849
        %2071 = vmatpush2.msra.mxu0 %v1848
        %2072 = vmatprep.subr.mxu0 %v1845
        %2073 = vmatpush2.msra.mxu0 %v1844
        %2074 = vmatprep.subr.mxu0 %v1841
        %2075 = vmatpush2.msra.mxu0 %v1840
        %2076 = vmatprep.subr.mxu0 %v1837
        %2077 = vmatpush2.msra.mxu0 %v1836
        %2078 = vmatprep.subr.mxu0 %v1833
        %2079 = vmatpush2.msra.mxu0 %v1832
        %2080 = vmatprep.subr.mxu0 %v1829
        %2081 = vmatpush2.msra.mxu0 %v1828
        %2082 = vmatprep.subr.mxu0 %v1825
        %2083 = vmatpush2.msra.mxu0 %v1824
        %2084 = vmatprep.subr.mxu0 %v1821
        %2085 = vmatpush2.msra.mxu0 %v1820
        %2086 = vmatprep.subr.mxu0 %v1817
        %2087 = vmatpush2.msra.mxu0 %v1816
        %2088 = vmatprep.subr.mxu0 %v1813
        %2089 = vmatpush2.msra.mxu0 %v1812
        %2090 = vmatprep.mubr.f32.mxu0 %v1745
        %2091 = vmatmul.mubr.f32.gmra.mxu0 %v1744
        %v2092 = vpop.f32.mrf.mxu0
        %v2093 = vadd.f32 %v2009, %v2092
        %v2094 = vpop.f32.mrf.mxu0
        %v2095 = vadd.f32 %v2013, %v2094
        %2096 = vdwg.mxu0
        %2097 = vmatprep.subr.mxu0 %v1937
        %2098 = vmatpush1.msra.mxu0 %v1936
        %2099 = vmatprep.subr.mxu0 %v1933
        %2100 = vmatpush1.msra.mxu0 %v1932
        %2101 = vmatprep.subr.mxu0 %v1929
        %2102 = vmatpush1.msra.mxu0 %v1928
        %2103 = vmatprep.subr.mxu0 %v1925
        %2104 = vmatpush1.msra.mxu0 %v1924
        %2105 = vmatprep.subr.mxu0 %v1921
        %2106 = vmatpush1.msra.mxu0 %v1920
        %2107 = vmatprep.subr.mxu0 %v1917
        %2108 = vmatpush1.msra.mxu0 %v1916
        %2109 = vmatprep.subr.mxu0 %v1913
        %2110 = vmatpush1.msra.mxu0 %v1912
        %2111 = vmatprep.subr.mxu0 %v1909
        %2112 = vmatpush1.msra.mxu0 %v1908
        %2113 = vmatprep.subr.mxu0 %v1905
        %2114 = vmatpush1.msra.mxu0 %v1904
        %2115 = vmatprep.subr.mxu0 %v1901
        %2116 = vmatpush1.msra.mxu0 %v1900
        %2117 = vmatprep.subr.mxu0 %v1897
        %2118 = vmatpush1.msra.mxu0 %v1896
        %2119 = vmatprep.subr.mxu0 %v1893
        %2120 = vmatpush1.msra.mxu0 %v1892
        %2121 = vmatprep.subr.mxu0 %v1889
        %2122 = vmatpush1.msra.mxu0 %v1888
        %2123 = vmatprep.subr.mxu0 %v1885
        %2124 = vmatpush1.msra.mxu0 %v1884
        %2125 = vmatprep.subr.mxu0 %v1881
        %2126 = vmatpush1.msra.mxu0 %v1880
        %2127 = vmatprep.subr.mxu0 %v1877
        %2128 = vmatpush1.msra.mxu0 %v1876
        %2129 = vmatprep.subr.mxu0 %v2001
        %2130 = vmatpush2.msra.mxu0 %v2000
        %2131 = vmatprep.subr.mxu0 %v1997
        %2132 = vmatpush2.msra.mxu0 %v1996
        %2133 = vmatprep.subr.mxu0 %v1993
        %2134 = vmatpush2.msra.mxu0 %v1992
        %2135 = vmatprep.subr.mxu0 %v1989
        %2136 = vmatpush2.msra.mxu0 %v1988
        %2137 = vmatprep.subr.mxu0 %v1985
        %2138 = vmatpush2.msra.mxu0 %v1984
        %2139 = vmatprep.subr.mxu0 %v1981
        %2140 = vmatpush2.msra.mxu0 %v1980
        %2141 = vmatprep.subr.mxu0 %v1977
        %2142 = vmatpush2.msra.mxu0 %v1976
        %2143 = vmatprep.subr.mxu0 %v1973
        %2144 = vmatpush2.msra.mxu0 %v1972
        %2145 = vmatprep.subr.mxu0 %v1969
        %2146 = vmatpush2.msra.mxu0 %v1968
        %2147 = vmatprep.subr.mxu0 %v1965
        %2148 = vmatpush2.msra.mxu0 %v1964
        %2149 = vmatprep.subr.mxu0 %v1961
        %2150 = vmatpush2.msra.mxu0 %v1960
        %2151 = vmatprep.subr.mxu0 %v1957
        %2152 = vmatpush2.msra.mxu0 %v1956
        %2153 = vmatprep.subr.mxu0 %v1953
        %2154 = vmatpush2.msra.mxu0 %v1952
        %2155 = vmatprep.subr.mxu0 %v1949
        %2156 = vmatpush2.msra.mxu0 %v1948
        %2157 = vmatprep.subr.mxu0 %v1945
        %2158 = vmatpush2.msra.mxu0 %v1944
        %2159 = vmatprep.subr.mxu0 %v1941
        %2160 = vmatpush2.msra.mxu0 %v1940
        %2161 = vmatprep.mubr.f32.mxu0 %v1747
        %2162 = vmatmul.mubr.f32.gmra.mxu0 %v1746
        %v2163 = vpop.f32.mrf.mxu0
        %v2164 = vadd.f32 %v2093, %v2163
        %v2165 = vpop.f32.mrf.mxu0
        %v2166 = vadd.f32 %v2095, %v2165
        %2167 = vdwg.mxu0
        %2168 = vmatprep.subr.mxu0 %v1811
        %2169 = vmatpush1.msra.mxu0 %v1810
        %2170 = vmatprep.subr.mxu0 %v1807
        %2171 = vmatpush1.msra.mxu0 %v1806
        %2172 = vmatprep.subr.mxu0 %v1803
        %2173 = vmatpush1.msra.mxu0 %v1802
        %2174 = vmatprep.subr.mxu0 %v1799
        %2175 = vmatpush1.msra.mxu0 %v1798
        %2176 = vmatprep.subr.mxu0 %v1795
        %2177 = vmatpush1.msra.mxu0 %v1794
        %2178 = vmatprep.subr.mxu0 %v1791
        %2179 = vmatpush1.msra.mxu0 %v1790
        %2180 = vmatprep.subr.mxu0 %v1787
        %2181 = vmatpush1.msra.mxu0 %v1786
        %2182 = vmatprep.subr.mxu0 %v1783
        %2183 = vmatpush1.msra.mxu0 %v1782
        %2184 = vmatprep.subr.mxu0 %v1779
        %2185 = vmatpush1.msra.mxu0 %v1778
        %2186 = vmatprep.subr.mxu0 %v1775
        %2187 = vmatpush1.msra.mxu0 %v1774
        %2188 = vmatprep.subr.mxu0 %v1771
        %2189 = vmatpush1.msra.mxu0 %v1770
        %2190 = vmatprep.subr.mxu0 %v1767
        %2191 = vmatpush1.msra.mxu0 %v1766
        %2192 = vmatprep.subr.mxu0 %v1763
        %2193 = vmatpush1.msra.mxu0 %v1762
        %2194 = vmatprep.subr.mxu0 %v1759
        %2195 = vmatpush1.msra.mxu0 %v1758
        %2196 = vmatprep.subr.mxu0 %v1755
        %2197 = vmatpush1.msra.mxu0 %v1754
        %2198 = vmatprep.subr.mxu0 %v1751
        %2199 = vmatpush1.msra.mxu0 %v1750
        %2200 = vmatprep.subr.mxu0 %v1875
        %2201 = vmatpush2.msra.mxu0 %v1874
        %2202 = vmatprep.subr.mxu0 %v1871
        %2203 = vmatpush2.msra.mxu0 %v1870
        %2204 = vmatprep.subr.mxu0 %v1867
        %2205 = vmatpush2.msra.mxu0 %v1866
        %2206 = vmatprep.subr.mxu0 %v1863
        %2207 = vmatpush2.msra.mxu0 %v1862
        %2208 = vmatprep.subr.mxu0 %v1859
        %2209 = vmatpush2.msra.mxu0 %v1858
        %2210 = vmatprep.subr.mxu0 %v1855
        %2211 = vmatpush2.msra.mxu0 %v1854
        %2212 = vmatprep.subr.mxu0 %v1851
        %2213 = vmatpush2.msra.mxu0 %v1850
        %2214 = vmatprep.subr.mxu0 %v1847
        %2215 = vmatpush2.msra.mxu0 %v1846
        %2216 = vmatprep.subr.mxu0 %v1843
        %2217 = vmatpush2.msra.mxu0 %v1842
        %2218 = vmatprep.subr.mxu0 %v1839
        %2219 = vmatpush2.msra.mxu0 %v1838
        %2220 = vmatprep.subr.mxu0 %v1835
        %2221 = vmatpush2.msra.mxu0 %v1834
        %2222 = vmatprep.subr.mxu0 %v1831
        %2223 = vmatpush2.msra.mxu0 %v1830
        %2224 = vmatprep.subr.mxu0 %v1827
        %2225 = vmatpush2.msra.mxu0 %v1826
        %2226 = vmatprep.subr.mxu0 %v1823
        %2227 = vmatpush2.msra.mxu0 %v1822
        %2228 = vmatprep.subr.mxu0 %v1819
        %2229 = vmatpush2.msra.mxu0 %v1818
        %2230 = vmatprep.subr.mxu0 %v1815
        %2231 = vmatpush2.msra.mxu0 %v1814
        %2232 = vmatprep.mubr.f32.mxu0 %v1745
        %2233 = vmatmul.mubr.f32.gmra.mxu0 %v1744
        %v2234 = vpop.f32.mrf.mxu0
        %v2235 = vadd.f32 %v2017, %v2234
        %v2236 = vpop.f32.mrf.mxu0
        %v2237 = vadd.f32 %v2021, %v2236
        %2238 = vdwg.mxu0
        %2239 = vmatprep.subr.mxu0 %v1939
        %2240 = vmatpush1.msra.mxu0 %v1938
        %2241 = vmatprep.subr.mxu0 %v1935
        %2242 = vmatpush1.msra.mxu0 %v1934
        %2243 = vmatprep.subr.mxu0 %v1931
        %2244 = vmatpush1.msra.mxu0 %v1930
        %2245 = vmatprep.subr.mxu0 %v1927
        %2246 = vmatpush1.msra.mxu0 %v1926
        %2247 = vmatprep.subr.mxu0 %v1923
        %2248 = vmatpush1.msra.mxu0 %v1922
        %2249 = vmatprep.subr.mxu0 %v1919
        %2250 = vmatpush1.msra.mxu0 %v1918
        %2251 = vmatprep.subr.mxu0 %v1915
        %2252 = vmatpush1.msra.mxu0 %v1914
        %2253 = vmatprep.subr.mxu0 %v1911
        %2254 = vmatpush1.msra.mxu0 %v1910
        %2255 = vmatprep.subr.mxu0 %v1907
        %2256 = vmatpush1.msra.mxu0 %v1906
        %2257 = vmatprep.subr.mxu0 %v1903
        %2258 = vmatpush1.msra.mxu0 %v1902
        %2259 = vmatprep.subr.mxu0 %v1899
        %2260 = vmatpush1.msra.mxu0 %v1898
        %2261 = vmatprep.subr.mxu0 %v1895
        %2262 = vmatpush1.msra.mxu0 %v1894
        %2263 = vmatprep.subr.mxu0 %v1891
        %2264 = vmatpush1.msra.mxu0 %v1890
        %2265 = vmatprep.subr.mxu0 %v1887
        %2266 = vmatpush1.msra.mxu0 %v1886
        %2267 = vmatprep.subr.mxu0 %v1883
        %2268 = vmatpush1.msra.mxu0 %v1882
        %2269 = vmatprep.subr.mxu0 %v1879
        %2270 = vmatpush1.msra.mxu0 %v1878
        %2271 = vmatprep.subr.mxu0 %v2003
        %2272 = vmatpush2.msra.mxu0 %v2002
        %2273 = vmatprep.subr.mxu0 %v1999
        %2274 = vmatpush2.msra.mxu0 %v1998
        %2275 = vmatprep.subr.mxu0 %v1995
        %2276 = vmatpush2.msra.mxu0 %v1994
        %2277 = vmatprep.subr.mxu0 %v1991
        %2278 = vmatpush2.msra.mxu0 %v1990
        %2279 = vmatprep.subr.mxu0 %v1987
        %2280 = vmatpush2.msra.mxu0 %v1986
        %2281 = vmatprep.subr.mxu0 %v1983
        %2282 = vmatpush2.msra.mxu0 %v1982
        %2283 = vmatprep.subr.mxu0 %v1979
        %2284 = vmatpush2.msra.mxu0 %v1978
        %2285 = vmatprep.subr.mxu0 %v1975
        %2286 = vmatpush2.msra.mxu0 %v1974
        %2287 = vmatprep.subr.mxu0 %v1971
        %2288 = vmatpush2.msra.mxu0 %v1970
        %2289 = vmatprep.subr.mxu0 %v1967
        %2290 = vmatpush2.msra.mxu0 %v1966
        %2291 = vmatprep.subr.mxu0 %v1963
        %2292 = vmatpush2.msra.mxu0 %v1962
        %2293 = vmatprep.subr.mxu0 %v1959
        %2294 = vmatpush2.msra.mxu0 %v1958
        %2295 = vmatprep.subr.mxu0 %v1955
        %2296 = vmatpush2.msra.mxu0 %v1954
        %2297 = vmatprep.subr.mxu0 %v1951
        %2298 = vmatpush2.msra.mxu0 %v1950
        %2299 = vmatprep.subr.mxu0 %v1947
        %2300 = vmatpush2.msra.mxu0 %v1946
        %2301 = vmatprep.subr.mxu0 %v1943
        %2302 = vmatpush2.msra.mxu0 %v1942
        %2303 = vmatprep.mubr.f32.mxu0 %v1747
        %2304 = vmatmul.mubr.f32.gmra.mxu0 %v1746
        %v2305 = vpop.f32.mrf.mxu0
        %v2306 = vadd.f32 %v2235, %v2305
        %v2307 = vpop.f32.mrf.mxu0
        %v2308 = vadd.f32 %v2237, %v2307
        %2309 = vdwg.mxu0
        %v2310 = vmul.f32 %v2164, %v2164
        %v2311 = vmul.f32 %v2166, %v2166
        %v2312 = vmul.f32 %v2306, %v2306
        %v2313 = vmul.f32 %v2308, %v2308
        %v2314 = vadd.f32 %v2310, %v2312
        %v2315 = vadd.f32 %v2311, %v2313
        %v2316 = vadd.f32 %v2314, 1e-30
        %v2317 = vadd.f32 %v2315, 1e-30
        %v2318 = vrsqrt.pop %v2316
        %v2319 = vrsqrt.pop %v2317
        %v2320 = vmul.f32 %v2314, %v2318
        %v2321 = vmul.f32 %v2315, %v2319
        %v2322 = vmul.f32 %v2164, %v2318
        %v2323 = vmul.f32 %v2166, %v2319
        %v2324 = vmax.f32 %v2322, -1.0
        %v2325 = vmax.f32 %v2323, -1.0
        %v2326 = vmin.f32 %v2324, 1.0
        %v2327 = vmin.f32 %v2325, 1.0
        %v2328 = vand.u32 2147483647, %v2326
        %v2329 = vand.u32 2147483647, %v2327
        %v2330 = vmul.f32 %v2328, -0.0187293
        %v2331 = vmul.f32 %v2329, -0.0187293
        %v2332 = vadd.f32 %v2330, 0.074261
        %v2333 = vadd.f32 %v2331, 0.074261
        %v2334 = vmul.f32 %v2328, %v2332
        %v2335 = vmul.f32 %v2329, %v2333
        %v2336 = vadd.f32 %v2334, -0.2121144
        %v2337 = vadd.f32 %v2335, -0.2121144
        %v2338 = vmul.f32 %v2328, %v2336
        %v2339 = vmul.f32 %v2329, %v2337
        %v2340 = vadd.f32 %v2338, 1.5707288
        %v2341 = vadd.f32 %v2339, 1.5707288
        %v2342 = vsub.f32 1.0, %v2328
        %v2343 = vsub.f32 1.0, %v2329
        %v2344 = vrsqrt.pop %v2342
        %v2345 = vmul.f32 %v2342, %v2344
        %vm2346 = vcmp.eq.f32.partialorder %v2342, inf
        %v2347 = vsel %vm2346, %v2342, %v2345
        %vm2348 = vcmp.eq.f32.partialorder %v2342, 0.0
        %v2349 = vand.u32 %v2342, 2147483648
        %v2350 = vsel %vm2348, %v2349, %v2347
        %v2351 = vrsqrt.pop %v2343
        %v2352 = vmul.f32 %v2343, %v2351
        %vm2353 = vcmp.eq.f32.partialorder %v2343, inf
        %v2354 = vsel %vm2353, %v2343, %v2352
        %vm2355 = vcmp.eq.f32.partialorder %v2343, 0.0
        %v2356 = vand.u32 %v2343, 2147483648
        %v2357 = vsel %vm2355, %v2356, %v2354
        %v2358 = vmul.f32 %v2350, %v2340
        %v2359 = vmul.f32 %v2357, %v2341
        %vm2360 = vcmp.lt.f32.partialorder %v2326, 0.0
        %vm2361 = vcmp.lt.f32.partialorder %v2327, 0.0
        %v2362 = vsub.f32 3.1415927, %v2358
        %v2363 = vsub.f32 3.1415927, %v2359
        %v2364 = vsel %vm2360, %v2362, %v2358
        %v2365 = vsel %vm2361, %v2363, %v2359
        %v2366 = vmul.f32 %v2364, -0.05
        %v2367 = vmul.f32 %v2365, -0.05
        %v2368 = vmul.f32 %v2366, %v2366
        %v2369 = vmul.f32 %v2367, %v2367
        %v2370 = vmul.f32 %v2368, 0.041666668
        %v2371 = vmul.f32 %v2369, 0.041666668
        %v2372 = vadd.f32 %v2370, -0.5
        %v2373 = vadd.f32 %v2371, -0.5
        %v2374 = vmul.f32 %v2368, %v2372
        %v2375 = vmul.f32 %v2369, %v2373
        %v2376 = vadd.f32 %v2374, 1.0
        %v2377 = vadd.f32 %v2375, 1.0
        %v2378 = vmul.f32 %v2368, -0.16666667
        %v2379 = vmul.f32 %v2369, -0.16666667
        %v2380 = vadd.f32 %v2378, 1.0
        %v2381 = vadd.f32 %v2379, 1.0
        %v2382 = vmul.f32 %v2366, %v2380
        %v2383 = vmul.f32 %v2367, %v2381
        %v2384 = vmul.f32 %v2320, %v2376
        %v2385 = vmul.f32 %v2321, %v2377
        %v2386 = vmul.f32 %v2320, %v2382
        %v2387 = vmul.f32 %v2321, %v2383
        %vm2388 = vcmp.lt.f32.partialorder %v2306, 0.0
        %vm2389 = vcmp.lt.f32.partialorder %v2308, 0.0
        %v2390 = vsel %vm2388, %v2384, %v2164
        %v2391 = vsel %vm2389, %v2385, %v2166
        %v2392 = vsel %vm2388, %v2386, %v2306
        %v2393 = vsel %vm2389, %v2387, %v2308
        %v2394 = vld [vmem:[#allocation11] sm:$0xff]
        %v2395 = vld [vmem:[#allocation11 + $0x8] sm:$0xff]
        %v2396 = vld [vmem:[#allocation11 + $0x10] sm:$0xff]
        %v2397 = vld [vmem:[#allocation11 + $0x18] sm:$0xff]
        %v2398 = vld [vmem:[#allocation11 + $0x20] sm:$0xff]
        %v2399 = vld [vmem:[#allocation11 + $0x28] sm:$0xff]
        %v2400 = vld [vmem:[#allocation11 + $0x30] sm:$0xff]
        %v2401 = vld [vmem:[#allocation11 + $0x38] sm:$0xff]
        %v2402 = vld [vmem:[#allocation11 + $0x40] sm:$0xff]
        %v2403 = vld [vmem:[#allocation11 + $0x48] sm:$0xff]
        %v2404 = vld [vmem:[#allocation11 + $0x50] sm:$0xff]
        %v2405 = vld [vmem:[#allocation11 + $0x58] sm:$0xff]
        %v2406 = vld [vmem:[#allocation11 + $0x60] sm:$0xff]
        %v2407 = vld [vmem:[#allocation11 + $0x68] sm:$0xff]
        %v2408 = vld [vmem:[#allocation11 + $0x70] sm:$0xff]
        %v2409 = vld [vmem:[#allocation11 + $0x78] sm:$0xff]
        %v2410 = vld [vmem:[#allocation11 + $0x80] sm:$0xff]
        %v2411 = vld [vmem:[#allocation11 + $0x88] sm:$0xff]
        %v2412 = vld [vmem:[#allocation11 + $0x90] sm:$0xff]
        %v2413 = vld [vmem:[#allocation11 + $0x98] sm:$0xff]
        %v2414 = vld [vmem:[#allocation11 + $0xa0] sm:$0xff]
        %v2415 = vld [vmem:[#allocation11 + $0xa8] sm:$0xff]
        %v2416 = vld [vmem:[#allocation11 + $0xb0] sm:$0xff]
        %v2417 = vld [vmem:[#allocation11 + $0xb8] sm:$0xff]
        %v2418 = vld [vmem:[#allocation11 + $0xc0] sm:$0xff]
        %v2419 = vld [vmem:[#allocation11 + $0xc8] sm:$0xff]
        %v2420 = vld [vmem:[#allocation11 + $0xd0] sm:$0xff]
        %v2421 = vld [vmem:[#allocation11 + $0xd8] sm:$0xff]
        %v2422 = vld [vmem:[#allocation11 + $0xe0] sm:$0xff]
        %v2423 = vld [vmem:[#allocation11 + $0xe8] sm:$0xff]
        %v2424 = vld [vmem:[#allocation11 + $0xf0] sm:$0xff]
        %v2425 = vld [vmem:[#allocation11 + $0xf8] sm:$0xff]
        %v2426 = vld [vmem:[#allocation11 + $0x100] sm:$0xff]
        %v2427 = vld [vmem:[#allocation11 + $0x108] sm:$0xff]
        %v2428 = vld [vmem:[#allocation11 + $0x110] sm:$0xff]
        %v2429 = vld [vmem:[#allocation11 + $0x118] sm:$0xff]
        %v2430 = vld [vmem:[#allocation11 + $0x120] sm:$0xff]
        %v2431 = vld [vmem:[#allocation11 + $0x128] sm:$0xff]
        %v2432 = vld [vmem:[#allocation11 + $0x130] sm:$0xff]
        %v2433 = vld [vmem:[#allocation11 + $0x138] sm:$0xff]
        %v2434 = vld [vmem:[#allocation11 + $0x140] sm:$0xff]
        %v2435 = vld [vmem:[#allocation11 + $0x148] sm:$0xff]
        %v2436 = vld [vmem:[#allocation11 + $0x150] sm:$0xff]
        %v2437 = vld [vmem:[#allocation11 + $0x158] sm:$0xff]
        %v2438 = vld [vmem:[#allocation11 + $0x160] sm:$0xff]
        %v2439 = vld [vmem:[#allocation11 + $0x168] sm:$0xff]
        %v2440 = vld [vmem:[#allocation11 + $0x170] sm:$0xff]
        %v2441 = vld [vmem:[#allocation11 + $0x178] sm:$0xff]
        %v2442 = vld [vmem:[#allocation11 + $0x180] sm:$0xff]
        %v2443 = vld [vmem:[#allocation11 + $0x188] sm:$0xff]
        %v2444 = vld [vmem:[#allocation11 + $0x190] sm:$0xff]
        %v2445 = vld [vmem:[#allocation11 + $0x198] sm:$0xff]
        %v2446 = vld [vmem:[#allocation11 + $0x1a0] sm:$0xff]
        %v2447 = vld [vmem:[#allocation11 + $0x1a8] sm:$0xff]
        %v2448 = vld [vmem:[#allocation11 + $0x1b0] sm:$0xff]
        %v2449 = vld [vmem:[#allocation11 + $0x1b8] sm:$0xff]
        %v2450 = vld [vmem:[#allocation11 + $0x1c0] sm:$0xff]
        %v2451 = vld [vmem:[#allocation11 + $0x1c8] sm:$0xff]
        %v2452 = vld [vmem:[#allocation11 + $0x1d0] sm:$0xff]
        %v2453 = vld [vmem:[#allocation11 + $0x1d8] sm:$0xff]
        %v2454 = vld [vmem:[#allocation11 + $0x1e0] sm:$0xff]
        %v2455 = vld [vmem:[#allocation11 + $0x1e8] sm:$0xff]
        %v2456 = vld [vmem:[#allocation11 + $0x1f0] sm:$0xff]
        %v2457 = vld [vmem:[#allocation11 + $0x1f8] sm:$0xff]
        %v2458 = vld [vmem:[#allocation11 + $0x200] sm:$0xff]
        %v2459 = vld [vmem:[#allocation11 + $0x208] sm:$0xff]
        %v2460 = vld [vmem:[#allocation11 + $0x210] sm:$0xff]
        %v2461 = vld [vmem:[#allocation11 + $0x218] sm:$0xff]
        %v2462 = vld [vmem:[#allocation11 + $0x220] sm:$0xff]
        %v2463 = vld [vmem:[#allocation11 + $0x228] sm:$0xff]
        %v2464 = vld [vmem:[#allocation11 + $0x230] sm:$0xff]
        %v2465 = vld [vmem:[#allocation11 + $0x238] sm:$0xff]
        %v2466 = vld [vmem:[#allocation11 + $0x240] sm:$0xff]
        %v2467 = vld [vmem:[#allocation11 + $0x248] sm:$0xff]
        %v2468 = vld [vmem:[#allocation11 + $0x250] sm:$0xff]
        %v2469 = vld [vmem:[#allocation11 + $0x258] sm:$0xff]
        %v2470 = vld [vmem:[#allocation11 + $0x260] sm:$0xff]
        %v2471 = vld [vmem:[#allocation11 + $0x268] sm:$0xff]
        %v2472 = vld [vmem:[#allocation11 + $0x270] sm:$0xff]
        %v2473 = vld [vmem:[#allocation11 + $0x278] sm:$0xff]
        %v2474 = vld [vmem:[#allocation11 + $0x280] sm:$0xff]
        %v2475 = vld [vmem:[#allocation11 + $0x288] sm:$0xff]
        %v2476 = vld [vmem:[#allocation11 + $0x290] sm:$0xff]
        %v2477 = vld [vmem:[#allocation11 + $0x298] sm:$0xff]
        %v2478 = vld [vmem:[#allocation11 + $0x2a0] sm:$0xff]
        %v2479 = vld [vmem:[#allocation11 + $0x2a8] sm:$0xff]
        %v2480 = vld [vmem:[#allocation11 + $0x2b0] sm:$0xff]
        %v2481 = vld [vmem:[#allocation11 + $0x2b8] sm:$0xff]
        %v2482 = vld [vmem:[#allocation11 + $0x2c0] sm:$0xff]
        %v2483 = vld [vmem:[#allocation11 + $0x2c8] sm:$0xff]
        %v2484 = vld [vmem:[#allocation11 + $0x2d0] sm:$0xff]
        %v2485 = vld [vmem:[#allocation11 + $0x2d8] sm:$0xff]
        %v2486 = vld [vmem:[#allocation11 + $0x2e0] sm:$0xff]
        %v2487 = vld [vmem:[#allocation11 + $0x2e8] sm:$0xff]
        %v2488 = vld [vmem:[#allocation11 + $0x2f0] sm:$0xff]
        %v2489 = vld [vmem:[#allocation11 + $0x2f8] sm:$0xff]
        %v2490 = vld [vmem:[#allocation11 + $0x300] sm:$0xff]
        %v2491 = vld [vmem:[#allocation11 + $0x308] sm:$0xff]
        %v2492 = vld [vmem:[#allocation11 + $0x310] sm:$0xff]
        %v2493 = vld [vmem:[#allocation11 + $0x318] sm:$0xff]
        %v2494 = vld [vmem:[#allocation11 + $0x320] sm:$0xff]
        %v2495 = vld [vmem:[#allocation11 + $0x328] sm:$0xff]
        %v2496 = vld [vmem:[#allocation11 + $0x330] sm:$0xff]
        %v2497 = vld [vmem:[#allocation11 + $0x338] sm:$0xff]
        %v2498 = vld [vmem:[#allocation11 + $0x340] sm:$0xff]
        %v2499 = vld [vmem:[#allocation11 + $0x348] sm:$0xff]
        %v2500 = vld [vmem:[#allocation11 + $0x350] sm:$0xff]
        %v2501 = vld [vmem:[#allocation11 + $0x358] sm:$0xff]
        %v2502 = vld [vmem:[#allocation11 + $0x360] sm:$0xff]
        %v2503 = vld [vmem:[#allocation11 + $0x368] sm:$0xff]
        %v2504 = vld [vmem:[#allocation11 + $0x370] sm:$0xff]
        %v2505 = vld [vmem:[#allocation11 + $0x378] sm:$0xff]
        %v2506 = vld [vmem:[#allocation11 + $0x380] sm:$0xff]
        %v2507 = vld [vmem:[#allocation11 + $0x388] sm:$0xff]
        %v2508 = vld [vmem:[#allocation11 + $0x390] sm:$0xff]
        %v2509 = vld [vmem:[#allocation11 + $0x398] sm:$0xff]
        %v2510 = vld [vmem:[#allocation11 + $0x3a0] sm:$0xff]
        %v2511 = vld [vmem:[#allocation11 + $0x3a8] sm:$0xff]
        %v2512 = vld [vmem:[#allocation11 + $0x3b0] sm:$0xff]
        %v2513 = vld [vmem:[#allocation11 + $0x3b8] sm:$0xff]
        %v2514 = vld [vmem:[#allocation11 + $0x3c0] sm:$0xff]
        %v2515 = vld [vmem:[#allocation11 + $0x3c8] sm:$0xff]
        %v2516 = vld [vmem:[#allocation11 + $0x3d0] sm:$0xff]
        %v2517 = vld [vmem:[#allocation11 + $0x3d8] sm:$0xff]
        %v2518 = vld [vmem:[#allocation11 + $0x3e0] sm:$0xff]
        %v2519 = vld [vmem:[#allocation11 + $0x3e8] sm:$0xff]
        %v2520 = vld [vmem:[#allocation11 + $0x3f0] sm:$0xff]
        %v2521 = vld [vmem:[#allocation11 + $0x3f8] sm:$0xff]
        %v2522 = vld [vmem:[#allocation13] sm:$0x3]
        %v2524 = vlaneseq
        %v2525 = vshrl.u32 %v2524, 7
        %v2526 = vsub.s32 0, %v2525
        %v2527 = vrot.slane %v2522, %v2526
        %v2528 = vlaneseq
        %v2529 = vshrl.u32 %v2528, 7
        %v2530 = vsub.s32 1, %v2529
        %v2531 = vrot.slane %v2522, %v2530
        %2534 = vmatprep.subr.mxu0 %v2425
        %2535 = vmatpush1.msra.mxu0 %v2424
        %2536 = vmatprep.subr.mxu0 %v2423
        %2537 = vmatpush1.msra.mxu0 %v2422
        %2538 = vmatprep.subr.mxu0 %v2421
        %2539 = vmatpush1.msra.mxu0 %v2420
        %2540 = vmatprep.subr.mxu0 %v2419
        %2541 = vmatpush1.msra.mxu0 %v2418
        %2542 = vmatprep.subr.mxu0 %v2417
        %2543 = vmatpush1.msra.mxu0 %v2416
        %2544 = vmatprep.subr.mxu0 %v2415
        %2545 = vmatpush1.msra.mxu0 %v2414
        %2546 = vmatprep.subr.mxu0 %v2413
        %2547 = vmatpush1.msra.mxu0 %v2412
        %2548 = vmatprep.subr.mxu0 %v2411
        %2549 = vmatpush1.msra.mxu0 %v2410
        %2550 = vmatprep.subr.mxu0 %v2409
        %2551 = vmatpush1.msra.mxu0 %v2408
        %2552 = vmatprep.subr.mxu0 %v2407
        %2553 = vmatpush1.msra.mxu0 %v2406
        %2554 = vmatprep.subr.mxu0 %v2405
        %2555 = vmatpush1.msra.mxu0 %v2404
        %2556 = vmatprep.subr.mxu0 %v2403
        %2557 = vmatpush1.msra.mxu0 %v2402
        %2558 = vmatprep.subr.mxu0 %v2401
        %2559 = vmatpush1.msra.mxu0 %v2400
        %2560 = vmatprep.subr.mxu0 %v2399
        %2561 = vmatpush1.msra.mxu0 %v2398
        %2562 = vmatprep.subr.mxu0 %v2397
        %2563 = vmatpush1.msra.mxu0 %v2396
        %2564 = vmatprep.subr.mxu0 %v2395
        %2565 = vmatpush1.msra.mxu0 %v2394
        %2566 = vmatprep.subr.mxu0 %v2457
        %2567 = vmatpush2.msra.mxu0 %v2456
        %2568 = vmatprep.subr.mxu0 %v2455
        %2569 = vmatpush2.msra.mxu0 %v2454
        %2570 = vmatprep.subr.mxu0 %v2453
        %2571 = vmatpush2.msra.mxu0 %v2452
        %2572 = vmatprep.subr.mxu0 %v2451
        %2573 = vmatpush2.msra.mxu0 %v2450
        %2574 = vmatprep.subr.mxu0 %v2449
        %2575 = vmatpush2.msra.mxu0 %v2448
        %2576 = vmatprep.subr.mxu0 %v2447
        %2577 = vmatpush2.msra.mxu0 %v2446
        %2578 = vmatprep.subr.mxu0 %v2445
        %2579 = vmatpush2.msra.mxu0 %v2444
        %2580 = vmatprep.subr.mxu0 %v2443
        %2581 = vmatpush2.msra.mxu0 %v2442
        %2582 = vmatprep.subr.mxu0 %v2441
        %2583 = vmatpush2.msra.mxu0 %v2440
        %2584 = vmatprep.subr.mxu0 %v2439
        %2585 = vmatpush2.msra.mxu0 %v2438
        %2586 = vmatprep.subr.mxu0 %v2437
        %2587 = vmatpush2.msra.mxu0 %v2436
        %2588 = vmatprep.subr.mxu0 %v2435
        %2589 = vmatpush2.msra.mxu0 %v2434
        %2590 = vmatprep.subr.mxu0 %v2433
        %2591 = vmatpush2.msra.mxu0 %v2432
        %2592 = vmatprep.subr.mxu0 %v2431
        %2593 = vmatpush2.msra.mxu0 %v2430
        %2594 = vmatprep.subr.mxu0 %v2429
        %2595 = vmatpush2.msra.mxu0 %v2428
        %2596 = vmatprep.subr.mxu0 %v2427
        %2597 = vmatpush2.msra.mxu0 %v2426
        %2598 = vmatprep.mubr.f32.mxu0 %v2391
        %2599 = vmatmul.mubr.f32.gmra.mxu0 %v2390
        %v2600 = vpop.f32.mrf.mxu0
        %v2601 = vadd.f32 %v2527, %v2600
        %v2602 = vpop.f32.mrf.mxu0
        %v2603 = vadd.f32 %v2531, %v2602
        %2604 = vdwg.mxu0
        %2605 = vmatprep.subr.mxu0 %v2489
        %2606 = vmatpush1.msra.mxu0 %v2488
        %2607 = vmatprep.subr.mxu0 %v2487
        %2608 = vmatpush1.msra.mxu0 %v2486
        %2609 = vmatprep.subr.mxu0 %v2485
        %2610 = vmatpush1.msra.mxu0 %v2484
        %2611 = vmatprep.subr.mxu0 %v2483
        %2612 = vmatpush1.msra.mxu0 %v2482
        %2613 = vmatprep.subr.mxu0 %v2481
        %2614 = vmatpush1.msra.mxu0 %v2480
        %2615 = vmatprep.subr.mxu0 %v2479
        %2616 = vmatpush1.msra.mxu0 %v2478
        %2617 = vmatprep.subr.mxu0 %v2477
        %2618 = vmatpush1.msra.mxu0 %v2476
        %2619 = vmatprep.subr.mxu0 %v2475
        %2620 = vmatpush1.msra.mxu0 %v2474
        %2621 = vmatprep.subr.mxu0 %v2473
        %2622 = vmatpush1.msra.mxu0 %v2472
        %2623 = vmatprep.subr.mxu0 %v2471
        %2624 = vmatpush1.msra.mxu0 %v2470
        %2625 = vmatprep.subr.mxu0 %v2469
        %2626 = vmatpush1.msra.mxu0 %v2468
        %2627 = vmatprep.subr.mxu0 %v2467
        %2628 = vmatpush1.msra.mxu0 %v2466
        %2629 = vmatprep.subr.mxu0 %v2465
        %2630 = vmatpush1.msra.mxu0 %v2464
        %2631 = vmatprep.subr.mxu0 %v2463
        %2632 = vmatpush1.msra.mxu0 %v2462
        %2633 = vmatprep.subr.mxu0 %v2461
        %2634 = vmatpush1.msra.mxu0 %v2460
        %2635 = vmatprep.subr.mxu0 %v2459
        %2636 = vmatpush1.msra.mxu0 %v2458
        %2637 = vmatprep.subr.mxu0 %v2521
        %2638 = vmatpush2.msra.mxu0 %v2520
        %2639 = vmatprep.subr.mxu0 %v2519
        %2640 = vmatpush2.msra.mxu0 %v2518
        %2641 = vmatprep.subr.mxu0 %v2517
        %2642 = vmatpush2.msra.mxu0 %v2516
        %2643 = vmatprep.subr.mxu0 %v2515
        %2644 = vmatpush2.msra.mxu0 %v2514
        %2645 = vmatprep.subr.mxu0 %v2513
        %2646 = vmatpush2.msra.mxu0 %v2512
        %2647 = vmatprep.subr.mxu0 %v2511
        %2648 = vmatpush2.msra.mxu0 %v2510
        %2649 = vmatprep.subr.mxu0 %v2509
        %2650 = vmatpush2.msra.mxu0 %v2508
        %2651 = vmatprep.subr.mxu0 %v2507
        %2652 = vmatpush2.msra.mxu0 %v2506
        %2653 = vmatprep.subr.mxu0 %v2505
        %2654 = vmatpush2.msra.mxu0 %v2504
        %2655 = vmatprep.subr.mxu0 %v2503
        %2656 = vmatpush2.msra.mxu0 %v2502
        %2657 = vmatprep.subr.mxu0 %v2501
        %2658 = vmatpush2.msra.mxu0 %v2500
        %2659 = vmatprep.subr.mxu0 %v2499
        %2660 = vmatpush2.msra.mxu0 %v2498
        %2661 = vmatprep.subr.mxu0 %v2497
        %2662 = vmatpush2.msra.mxu0 %v2496
        %2663 = vmatprep.subr.mxu0 %v2495
        %2664 = vmatpush2.msra.mxu0 %v2494
        %2665 = vmatprep.subr.mxu0 %v2493
        %2666 = vmatpush2.msra.mxu0 %v2492
        %2667 = vmatprep.subr.mxu0 %v2491
        %2668 = vmatpush2.msra.mxu0 %v2490
        %2669 = vmatprep.mubr.f32.mxu0 %v2393
        %2670 = vmatmul.mubr.f32.gmra.mxu0 %v2392
        %v2671 = vpop.f32.mrf.mxu0
        %v2672 = vadd.f32 %v2601, %v2671
        %v2673 = vpop.f32.mrf.mxu0
        %v2674 = vadd.f32 %v2603, %v2673
        %2675 = vdwg.mxu0
        %v2676 = vmul.f32 %v2672, %v2672
        %v2677 = vmul.f32 %v2674, %v2674
        %v2678 = vadd.f32 %v2676, %v2677
        %v2679 = vadd.f32 %v2678, 1e-30
        %v2680 = vrsqrt.pop %v2679
        %v2681 = vmul.f32 %v2678, %v2680
        %v2682 = vmul.f32 %v2672, %v2680
        %v2683 = vmax.f32 %v2682, -1.0
        %v2684 = vmin.f32 %v2683, 1.0
        %v2685 = vand.u32 2147483647, %v2684
        %v2686 = vmul.f32 %v2685, -0.0187293
        %v2687 = vadd.f32 %v2686, 0.074261
        %v2688 = vmul.f32 %v2685, %v2687
        %v2689 = vadd.f32 %v2688, -0.2121144
        %v2690 = vmul.f32 %v2685, %v2689
        %v2691 = vadd.f32 %v2690, 1.5707288
        %v2692 = vsub.f32 1.0, %v2685
        %v2693 = vrsqrt.pop %v2692
        %v2694 = vmul.f32 %v2692, %v2693
        %vm2695 = vcmp.eq.f32.partialorder %v2692, inf
        %v2696 = vsel %vm2695, %v2692, %v2694
        %vm2697 = vcmp.eq.f32.partialorder %v2692, 0.0
        %v2698 = vand.u32 %v2692, 2147483648
        %v2699 = vsel %vm2697, %v2698, %v2696
        %v2700 = vmul.f32 %v2699, %v2691
        %vm2701 = vcmp.lt.f32.partialorder %v2684, 0.0
        %v2702 = vsub.f32 3.1415927, %v2700
        %v2703 = vsel %vm2701, %v2702, %v2700
        %v2704 = vmul.f32 %v2703, -0.05
        %v2705 = vmul.f32 %v2704, %v2704
        %v2706 = vmul.f32 %v2705, 0.041666668
        %v2707 = vadd.f32 %v2706, -0.5
        %v2708 = vmul.f32 %v2705, %v2707
        %v2709 = vadd.f32 %v2708, 1.0
        %v2710 = vmul.f32 %v2705, -0.16666667
        %v2711 = vadd.f32 %v2710, 1.0
        %v2712 = vmul.f32 %v2704, %v2711
        %v2713 = vmul.f32 %v2681, %v2709
        %v2714 = vmul.f32 %v2681, %v2712
        %vm2715 = vcmp.lt.f32.partialorder %v2674, 0.0
        %v2716 = vsel %vm2715, %v2713, %v2672
        %v2717 = vsel %vm2715, %v2714, %v2674
        %v2718 = vld [vmem:[#allocation14] sm:$0xff]
        %v2719 = vld [vmem:[#allocation14 + $0x8] sm:$0xff]
        %v2720 = vld [vmem:[#allocation14 + $0x10] sm:$0xff]
        %v2721 = vld [vmem:[#allocation14 + $0x18] sm:$0xff]
        %v2722 = vld [vmem:[#allocation14 + $0x20] sm:$0xff]
        %v2723 = vld [vmem:[#allocation14 + $0x28] sm:$0xff]
        %v2724 = vld [vmem:[#allocation14 + $0x30] sm:$0xff]
        %v2725 = vld [vmem:[#allocation14 + $0x38] sm:$0xff]
        %v2726 = vld [vmem:[#allocation14 + $0x40] sm:$0xff]
        %v2727 = vld [vmem:[#allocation14 + $0x48] sm:$0xff]
        %v2728 = vld [vmem:[#allocation14 + $0x50] sm:$0xff]
        %v2729 = vld [vmem:[#allocation14 + $0x58] sm:$0xff]
        %v2730 = vld [vmem:[#allocation14 + $0x60] sm:$0xff]
        %v2731 = vld [vmem:[#allocation14 + $0x68] sm:$0xff]
        %v2732 = vld [vmem:[#allocation14 + $0x70] sm:$0xff]
        %v2733 = vld [vmem:[#allocation14 + $0x78] sm:$0xff]
        %v2734 = vld [vmem:[#allocation14 + $0x80] sm:$0xff]
        %v2735 = vld [vmem:[#allocation14 + $0x88] sm:$0xff]
        %v2736 = vld [vmem:[#allocation14 + $0x90] sm:$0xff]
        %v2737 = vld [vmem:[#allocation14 + $0x98] sm:$0xff]
        %v2738 = vld [vmem:[#allocation14 + $0xa0] sm:$0xff]
        %v2739 = vld [vmem:[#allocation14 + $0xa8] sm:$0xff]
        %v2740 = vld [vmem:[#allocation14 + $0xb0] sm:$0xff]
        %v2741 = vld [vmem:[#allocation14 + $0xb8] sm:$0xff]
        %v2742 = vld [vmem:[#allocation14 + $0xc0] sm:$0xff]
        %v2743 = vld [vmem:[#allocation14 + $0xc8] sm:$0xff]
        %v2744 = vld [vmem:[#allocation14 + $0xd0] sm:$0xff]
        %v2745 = vld [vmem:[#allocation14 + $0xd8] sm:$0xff]
        %v2746 = vld [vmem:[#allocation14 + $0xe0] sm:$0xff]
        %v2747 = vld [vmem:[#allocation14 + $0xe8] sm:$0xff]
        %v2748 = vld [vmem:[#allocation14 + $0xf0] sm:$0xff]
        %v2749 = vld [vmem:[#allocation14 + $0xf8] sm:$0xff]
        %v2750 = vld [vmem:[#allocation14 + $0x100] sm:$0xff]
        %v2751 = vld [vmem:[#allocation14 + $0x108] sm:$0xff]
        %v2752 = vld [vmem:[#allocation14 + $0x110] sm:$0xff]
        %v2753 = vld [vmem:[#allocation14 + $0x118] sm:$0xff]
        %v2754 = vld [vmem:[#allocation14 + $0x120] sm:$0xff]
        %v2755 = vld [vmem:[#allocation14 + $0x128] sm:$0xff]
        %v2756 = vld [vmem:[#allocation14 + $0x130] sm:$0xff]
        %v2757 = vld [vmem:[#allocation14 + $0x138] sm:$0xff]
        %v2758 = vld [vmem:[#allocation14 + $0x140] sm:$0xff]
        %v2759 = vld [vmem:[#allocation14 + $0x148] sm:$0xff]
        %v2760 = vld [vmem:[#allocation14 + $0x150] sm:$0xff]
        %v2761 = vld [vmem:[#allocation14 + $0x158] sm:$0xff]
        %v2762 = vld [vmem:[#allocation14 + $0x160] sm:$0xff]
        %v2763 = vld [vmem:[#allocation14 + $0x168] sm:$0xff]
        %v2764 = vld [vmem:[#allocation14 + $0x170] sm:$0xff]
        %v2765 = vld [vmem:[#allocation14 + $0x178] sm:$0xff]
        %v2766 = vld [vmem:[#allocation14 + $0x180] sm:$0xff]
        %v2767 = vld [vmem:[#allocation14 + $0x188] sm:$0xff]
        %v2768 = vld [vmem:[#allocation14 + $0x190] sm:$0xff]
        %v2769 = vld [vmem:[#allocation14 + $0x198] sm:$0xff]
        %v2770 = vld [vmem:[#allocation14 + $0x1a0] sm:$0xff]
        %v2771 = vld [vmem:[#allocation14 + $0x1a8] sm:$0xff]
        %v2772 = vld [vmem:[#allocation14 + $0x1b0] sm:$0xff]
        %v2773 = vld [vmem:[#allocation14 + $0x1b8] sm:$0xff]
        %v2774 = vld [vmem:[#allocation14 + $0x1c0] sm:$0xff]
        %v2775 = vld [vmem:[#allocation14 + $0x1c8] sm:$0xff]
        %v2776 = vld [vmem:[#allocation14 + $0x1d0] sm:$0xff]
        %v2777 = vld [vmem:[#allocation14 + $0x1d8] sm:$0xff]
        %v2778 = vld [vmem:[#allocation14 + $0x1e0] sm:$0xff]
        %v2779 = vld [vmem:[#allocation14 + $0x1e8] sm:$0xff]
        %v2780 = vld [vmem:[#allocation14 + $0x1f0] sm:$0xff]
        %v2781 = vld [vmem:[#allocation14 + $0x1f8] sm:$0xff]
        %v2782 = vld [vmem:[#allocation16] sm:$0x3]
        %v2784 = vlaneseq
        %v2785 = vshrl.u32 %v2784, 7
        %v2786 = vsub.s32 0, %v2785
        %v2787 = vrot.slane %v2782, %v2786
        %v2788 = vlaneseq
        %v2789 = vshrl.u32 %v2788, 7
        %v2790 = vsub.s32 1, %v2789
        %v2791 = vrot.slane %v2782, %v2790
        %2794 = vmatprep.subr.mxu0 %v2749
        %2795 = vmatpush1.msra.mxu0 %v2748
        %2796 = vmatprep.subr.mxu0 %v2747
        %2797 = vmatpush1.msra.mxu0 %v2746
        %2798 = vmatprep.subr.mxu0 %v2745
        %2799 = vmatpush1.msra.mxu0 %v2744
        %2800 = vmatprep.subr.mxu0 %v2743
        %2801 = vmatpush1.msra.mxu0 %v2742
        %2802 = vmatprep.subr.mxu0 %v2741
        %2803 = vmatpush1.msra.mxu0 %v2740
        %2804 = vmatprep.subr.mxu0 %v2739
        %2805 = vmatpush1.msra.mxu0 %v2738
        %2806 = vmatprep.subr.mxu0 %v2737
        %2807 = vmatpush1.msra.mxu0 %v2736
        %2808 = vmatprep.subr.mxu0 %v2735
        %2809 = vmatpush1.msra.mxu0 %v2734
        %2810 = vmatprep.subr.mxu0 %v2733
        %2811 = vmatpush1.msra.mxu0 %v2732
        %2812 = vmatprep.subr.mxu0 %v2731
        %2813 = vmatpush1.msra.mxu0 %v2730
        %2814 = vmatprep.subr.mxu0 %v2729
        %2815 = vmatpush1.msra.mxu0 %v2728
        %2816 = vmatprep.subr.mxu0 %v2727
        %2817 = vmatpush1.msra.mxu0 %v2726
        %2818 = vmatprep.subr.mxu0 %v2725
        %2819 = vmatpush1.msra.mxu0 %v2724
        %2820 = vmatprep.subr.mxu0 %v2723
        %2821 = vmatpush1.msra.mxu0 %v2722
        %2822 = vmatprep.subr.mxu0 %v2721
        %2823 = vmatpush1.msra.mxu0 %v2720
        %2824 = vmatprep.subr.mxu0 %v2719
        %2825 = vmatpush1.msra.mxu0 %v2718
        %2826 = vmatprep.subr.mxu0 %v2781
        %2827 = vmatpush2.msra.mxu0 %v2780
        %2828 = vmatprep.subr.mxu0 %v2779
        %2829 = vmatpush2.msra.mxu0 %v2778
        %2830 = vmatprep.subr.mxu0 %v2777
        %2831 = vmatpush2.msra.mxu0 %v2776
        %2832 = vmatprep.subr.mxu0 %v2775
        %2833 = vmatpush2.msra.mxu0 %v2774
        %2834 = vmatprep.subr.mxu0 %v2773
        %2835 = vmatpush2.msra.mxu0 %v2772
        %2836 = vmatprep.subr.mxu0 %v2771
        %2837 = vmatpush2.msra.mxu0 %v2770
        %2838 = vmatprep.subr.mxu0 %v2769
        %2839 = vmatpush2.msra.mxu0 %v2768
        %2840 = vmatprep.subr.mxu0 %v2767
        %2841 = vmatpush2.msra.mxu0 %v2766
        %2842 = vmatprep.subr.mxu0 %v2765
        %2843 = vmatpush2.msra.mxu0 %v2764
        %2844 = vmatprep.subr.mxu0 %v2763
        %2845 = vmatpush2.msra.mxu0 %v2762
        %2846 = vmatprep.subr.mxu0 %v2761
        %2847 = vmatpush2.msra.mxu0 %v2760
        %2848 = vmatprep.subr.mxu0 %v2759
        %2849 = vmatpush2.msra.mxu0 %v2758
        %2850 = vmatprep.subr.mxu0 %v2757
        %2851 = vmatpush2.msra.mxu0 %v2756
        %2852 = vmatprep.subr.mxu0 %v2755
        %2853 = vmatpush2.msra.mxu0 %v2754
        %2854 = vmatprep.subr.mxu0 %v2753
        %2855 = vmatpush2.msra.mxu0 %v2752
        %2856 = vmatprep.subr.mxu0 %v2751
        %2857 = vmatpush2.msra.mxu0 %v2750
        %2858 = vmatprep.mubr.f32.mxu0 %v2717
        %2859 = vmatmul.mubr.f32.gmra.mxu0 %v2716
        %v2860 = vpop.f32.mrf.mxu0
        %v2861 = vadd.f32 %v2787, %v2860
        %v2862 = vpop.f32.mrf.mxu0
        %v2863 = vadd.f32 %v2791, %v2862
        %2864 = vdwg.mxu0
        %v2865 = vmul.f32 %v2861, %v2861
        %v2866 = vmul.f32 %v2863, %v2863
        %v2867 = vadd.f32 %v2865, %v2866
        %v2868 = vadd.f32 %v2867, 1e-30
        %v2869 = vrsqrt.pop %v2868
        %v2870 = vmul.f32 %v2867, %v2869
        %v2871 = vmul.f32 %v2861, %v2869
        %v2872 = vmax.f32 %v2871, -1.0
        %v2873 = vmin.f32 %v2872, 1.0
        %v2874 = vand.u32 2147483647, %v2873
        %v2875 = vmul.f32 %v2874, -0.0187293
        %v2876 = vadd.f32 %v2875, 0.074261
        %v2877 = vmul.f32 %v2874, %v2876
        %v2878 = vadd.f32 %v2877, -0.2121144
        %v2879 = vmul.f32 %v2874, %v2878
        %v2880 = vadd.f32 %v2879, 1.5707288
        %v2881 = vsub.f32 1.0, %v2874
        %v2882 = vrsqrt.pop %v2881
        %v2883 = vmul.f32 %v2881, %v2882
        %vm2884 = vcmp.eq.f32.partialorder %v2881, inf
        %v2885 = vsel %vm2884, %v2881, %v2883
        %vm2886 = vcmp.eq.f32.partialorder %v2881, 0.0
        %v2887 = vand.u32 %v2881, 2147483648
        %v2888 = vsel %vm2886, %v2887, %v2885
        %v2889 = vmul.f32 %v2888, %v2880
        %vm2890 = vcmp.lt.f32.partialorder %v2873, 0.0
        %v2891 = vsub.f32 3.1415927, %v2889
        %v2892 = vsel %vm2890, %v2891, %v2889
        %v2893 = vmul.f32 %v2892, -0.05
        %v2894 = vmul.f32 %v2893, %v2893
        %v2895 = vmul.f32 %v2894, 0.041666668
        %v2896 = vadd.f32 %v2895, -0.5
        %v2897 = vmul.f32 %v2894, %v2896
        %v2898 = vadd.f32 %v2897, 1.0
        %v2899 = vmul.f32 %v2894, -0.16666667
        %v2900 = vadd.f32 %v2899, 1.0
        %v2901 = vmul.f32 %v2893, %v2900
        %v2902 = vmul.f32 %v2870, %v2898
        %v2903 = vmul.f32 %v2870, %v2901
        %vm2904 = vcmp.lt.f32.partialorder %v2863, 0.0
        %v2905 = vsel %vm2904, %v2902, %v2861
        %v2906 = vsel %vm2904, %v2903, %v2863
        %v2907 = vld [vmem:[#allocation17] sm:$0xff]
        %v2908 = vld [vmem:[#allocation17 + $0x8] sm:$0xff]
        %v2909 = vld [vmem:[#allocation17 + $0x10] sm:$0xff]
        %v2910 = vld [vmem:[#allocation17 + $0x18] sm:$0xff]
        %v2911 = vld [vmem:[#allocation17 + $0x20] sm:$0xff]
        %v2912 = vld [vmem:[#allocation17 + $0x28] sm:$0xff]
        %v2913 = vld [vmem:[#allocation17 + $0x30] sm:$0xff]
        %v2914 = vld [vmem:[#allocation17 + $0x38] sm:$0xff]
        %v2915 = vld [vmem:[#allocation17 + $0x40] sm:$0xff]
        %v2916 = vld [vmem:[#allocation17 + $0x48] sm:$0xff]
        %v2917 = vld [vmem:[#allocation17 + $0x50] sm:$0xff]
        %v2918 = vld [vmem:[#allocation17 + $0x58] sm:$0xff]
        %v2919 = vld [vmem:[#allocation17 + $0x60] sm:$0xff]
        %v2920 = vld [vmem:[#allocation17 + $0x68] sm:$0xff]
        %v2921 = vld [vmem:[#allocation17 + $0x70] sm:$0xff]
        %v2922 = vld [vmem:[#allocation17 + $0x78] sm:$0xff]
        %v2923 = vld [vmem:[#allocation17 + $0x80] sm:$0xff]
        %v2924 = vld [vmem:[#allocation17 + $0x88] sm:$0xff]
        %v2925 = vld [vmem:[#allocation17 + $0x90] sm:$0xff]
        %v2926 = vld [vmem:[#allocation17 + $0x98] sm:$0xff]
        %v2927 = vld [vmem:[#allocation17 + $0xa0] sm:$0xff]
        %v2928 = vld [vmem:[#allocation17 + $0xa8] sm:$0xff]
        %v2929 = vld [vmem:[#allocation17 + $0xb0] sm:$0xff]
        %v2930 = vld [vmem:[#allocation17 + $0xb8] sm:$0xff]
        %v2931 = vld [vmem:[#allocation17 + $0xc0] sm:$0xff]
        %v2932 = vld [vmem:[#allocation17 + $0xc8] sm:$0xff]
        %v2933 = vld [vmem:[#allocation17 + $0xd0] sm:$0xff]
        %v2934 = vld [vmem:[#allocation17 + $0xd8] sm:$0xff]
        %v2935 = vld [vmem:[#allocation17 + $0xe0] sm:$0xff]
        %v2936 = vld [vmem:[#allocation17 + $0xe8] sm:$0xff]
        %v2937 = vld [vmem:[#allocation17 + $0xf0] sm:$0xff]
        %v2938 = vld [vmem:[#allocation17 + $0xf8] sm:$0xff]
        %v2939 = vld [vmem:[#allocation17 + $0x100] sm:$0xff]
        %v2940 = vld [vmem:[#allocation17 + $0x108] sm:$0xff]
        %v2941 = vld [vmem:[#allocation17 + $0x110] sm:$0xff]
        %v2942 = vld [vmem:[#allocation17 + $0x118] sm:$0xff]
        %v2943 = vld [vmem:[#allocation17 + $0x120] sm:$0xff]
        %v2944 = vld [vmem:[#allocation17 + $0x128] sm:$0xff]
        %v2945 = vld [vmem:[#allocation17 + $0x130] sm:$0xff]
        %v2946 = vld [vmem:[#allocation17 + $0x138] sm:$0xff]
        %v2947 = vld [vmem:[#allocation17 + $0x140] sm:$0xff]
        %v2948 = vld [vmem:[#allocation17 + $0x148] sm:$0xff]
        %v2949 = vld [vmem:[#allocation17 + $0x150] sm:$0xff]
        %v2950 = vld [vmem:[#allocation17 + $0x158] sm:$0xff]
        %v2951 = vld [vmem:[#allocation17 + $0x160] sm:$0xff]
        %v2952 = vld [vmem:[#allocation17 + $0x168] sm:$0xff]
        %v2953 = vld [vmem:[#allocation17 + $0x170] sm:$0xff]
        %v2954 = vld [vmem:[#allocation17 + $0x178] sm:$0xff]
        %v2955 = vld [vmem:[#allocation17 + $0x180] sm:$0xff]
        %v2956 = vld [vmem:[#allocation17 + $0x188] sm:$0xff]
        %v2957 = vld [vmem:[#allocation17 + $0x190] sm:$0xff]
        %v2958 = vld [vmem:[#allocation17 + $0x198] sm:$0xff]
        %v2959 = vld [vmem:[#allocation17 + $0x1a0] sm:$0xff]
        %v2960 = vld [vmem:[#allocation17 + $0x1a8] sm:$0xff]
        %v2961 = vld [vmem:[#allocation17 + $0x1b0] sm:$0xff]
        %v2962 = vld [vmem:[#allocation17 + $0x1b8] sm:$0xff]
        %v2963 = vld [vmem:[#allocation17 + $0x1c0] sm:$0xff]
        %v2964 = vld [vmem:[#allocation17 + $0x1c8] sm:$0xff]
        %v2965 = vld [vmem:[#allocation17 + $0x1d0] sm:$0xff]
        %v2966 = vld [vmem:[#allocation17 + $0x1d8] sm:$0xff]
        %v2967 = vld [vmem:[#allocation17 + $0x1e0] sm:$0xff]
        %v2968 = vld [vmem:[#allocation17 + $0x1e8] sm:$0xff]
        %v2969 = vld [vmem:[#allocation17 + $0x1f0] sm:$0xff]
        %v2970 = vld [vmem:[#allocation17 + $0x1f8] sm:$0xff]
        %v2971 = vld [vmem:[#allocation19] sm:$0x3]
        %v2973 = vlaneseq
        %v2974 = vshrl.u32 %v2973, 7
        %v2975 = vsub.s32 0, %v2974
        %v2976 = vrot.slane %v2971, %v2975
        %v2977 = vlaneseq
        %v2978 = vshrl.u32 %v2977, 7
        %v2979 = vsub.s32 1, %v2978
        %v2980 = vrot.slane %v2971, %v2979
        %2983 = vmatprep.subr.mxu0 %v2938
        %2984 = vmatpush1.msra.mxu0 %v2937
        %2985 = vmatprep.subr.mxu0 %v2936
        %2986 = vmatpush1.msra.mxu0 %v2935
        %2987 = vmatprep.subr.mxu0 %v2934
        %2988 = vmatpush1.msra.mxu0 %v2933
        %2989 = vmatprep.subr.mxu0 %v2932
        %2990 = vmatpush1.msra.mxu0 %v2931
        %2991 = vmatprep.subr.mxu0 %v2930
        %2992 = vmatpush1.msra.mxu0 %v2929
        %2993 = vmatprep.subr.mxu0 %v2928
        %2994 = vmatpush1.msra.mxu0 %v2927
        %2995 = vmatprep.subr.mxu0 %v2926
        %2996 = vmatpush1.msra.mxu0 %v2925
        %2997 = vmatprep.subr.mxu0 %v2924
        %2998 = vmatpush1.msra.mxu0 %v2923
        %2999 = vmatprep.subr.mxu0 %v2922
        %3000 = vmatpush1.msra.mxu0 %v2921
        %3001 = vmatprep.subr.mxu0 %v2920
        %3002 = vmatpush1.msra.mxu0 %v2919
        %3003 = vmatprep.subr.mxu0 %v2918
        %3004 = vmatpush1.msra.mxu0 %v2917
        %3005 = vmatprep.subr.mxu0 %v2916
        %3006 = vmatpush1.msra.mxu0 %v2915
        %3007 = vmatprep.subr.mxu0 %v2914
        %3008 = vmatpush1.msra.mxu0 %v2913
        %3009 = vmatprep.subr.mxu0 %v2912
        %3010 = vmatpush1.msra.mxu0 %v2911
        %3011 = vmatprep.subr.mxu0 %v2910
        %3012 = vmatpush1.msra.mxu0 %v2909
        %3013 = vmatprep.subr.mxu0 %v2908
        %3014 = vmatpush1.msra.mxu0 %v2907
        %3015 = vmatprep.subr.mxu0 %v2970
        %3016 = vmatpush2.msra.mxu0 %v2969
        %3017 = vmatprep.subr.mxu0 %v2968
        %3018 = vmatpush2.msra.mxu0 %v2967
        %3019 = vmatprep.subr.mxu0 %v2966
        %3020 = vmatpush2.msra.mxu0 %v2965
        %3021 = vmatprep.subr.mxu0 %v2964
        %3022 = vmatpush2.msra.mxu0 %v2963
        %3023 = vmatprep.subr.mxu0 %v2962
        %3024 = vmatpush2.msra.mxu0 %v2961
        %3025 = vmatprep.subr.mxu0 %v2960
        %3026 = vmatpush2.msra.mxu0 %v2959
        %3027 = vmatprep.subr.mxu0 %v2958
        %3028 = vmatpush2.msra.mxu0 %v2957
        %3029 = vmatprep.subr.mxu0 %v2956
        %3030 = vmatpush2.msra.mxu0 %v2955
        %3031 = vmatprep.subr.mxu0 %v2954
        %3032 = vmatpush2.msra.mxu0 %v2953
        %3033 = vmatprep.subr.mxu0 %v2952
        %3034 = vmatpush2.msra.mxu0 %v2951
        %3035 = vmatprep.subr.mxu0 %v2950
        %3036 = vmatpush2.msra.mxu0 %v2949
        %3037 = vmatprep.subr.mxu0 %v2948
        %3038 = vmatpush2.msra.mxu0 %v2947
        %3039 = vmatprep.subr.mxu0 %v2946
        %3040 = vmatpush2.msra.mxu0 %v2945
        %3041 = vmatprep.subr.mxu0 %v2944
        %3042 = vmatpush2.msra.mxu0 %v2943
        %3043 = vmatprep.subr.mxu0 %v2942
        %3044 = vmatpush2.msra.mxu0 %v2941
        %3045 = vmatprep.subr.mxu0 %v2940
        %3046 = vmatpush2.msra.mxu0 %v2939
        %3047 = vmatprep.mubr.f32.mxu0 %v2906
        %3048 = vmatmul.mubr.f32.gmra.mxu0 %v2905
        %v3049 = vpop.f32.mrf.mxu0
        %v3050 = vadd.f32 %v2976, %v3049
        %v3051 = vpop.f32.mrf.mxu0
        %v3052 = vadd.f32 %v2980, %v3051
        %3053 = vdwg.mxu0
        %v3054 = vmul.f32 %v3050, %v3050
        %v3055 = vmul.f32 %v3052, %v3052
        %v3056 = vadd.f32 %v3054, %v3055
        %v3057 = vadd.f32 %v3056, 1e-30
        %v3058 = vrsqrt.pop %v3057
        %v3059 = vmul.f32 %v3056, %v3058
        %v3060 = vmul.f32 %v3050, %v3058
        %v3061 = vmax.f32 %v3060, -1.0
        %v3062 = vmin.f32 %v3061, 1.0
        %v3063 = vand.u32 2147483647, %v3062
        %v3064 = vmul.f32 %v3063, -0.0187293
        %v3065 = vadd.f32 %v3064, 0.074261
        %v3066 = vmul.f32 %v3063, %v3065
        %v3067 = vadd.f32 %v3066, -0.2121144
        %v3068 = vmul.f32 %v3063, %v3067
        %v3069 = vadd.f32 %v3068, 1.5707288
        %v3070 = vsub.f32 1.0, %v3063
        %v3071 = vrsqrt.pop %v3070
        %v3072 = vmul.f32 %v3070, %v3071
        %vm3073 = vcmp.eq.f32.partialorder %v3070, inf
        %v3074 = vsel %vm3073, %v3070, %v3072
        %vm3075 = vcmp.eq.f32.partialorder %v3070, 0.0
        %v3076 = vand.u32 %v3070, 2147483648
        %v3077 = vsel %vm3075, %v3076, %v3074
        %v3078 = vmul.f32 %v3077, %v3069
        %vm3079 = vcmp.lt.f32.partialorder %v3062, 0.0
        %v3080 = vsub.f32 3.1415927, %v3078
        %v3081 = vsel %vm3079, %v3080, %v3078
        %v3082 = vmul.f32 %v3081, -0.05
        %v3083 = vmul.f32 %v3082, %v3082
        %v3084 = vmul.f32 %v3083, 0.041666668
        %v3085 = vadd.f32 %v3084, -0.5
        %v3086 = vmul.f32 %v3083, %v3085
        %v3087 = vadd.f32 %v3086, 1.0
        %v3088 = vmul.f32 %v3083, -0.16666667
        %v3089 = vadd.f32 %v3088, 1.0
        %v3090 = vmul.f32 %v3082, %v3089
        %v3091 = vmul.f32 %v3059, %v3087
        %v3092 = vmul.f32 %v3059, %v3090
        %vm3093 = vcmp.lt.f32.partialorder %v3052, 0.0
        %v3094 = vsel %vm3093, %v3091, %v3050
        %v3095 = vsel %vm3093, %v3092, %v3052
        %v3096 = vld [vmem:[#allocation20] sm:$0xff]
        %v3097 = vld [vmem:[#allocation20 + $0x8] sm:$0xff]
        %v3098 = vld [vmem:[#allocation20 + $0x10] sm:$0xff]
        %v3099 = vld [vmem:[#allocation20 + $0x18] sm:$0xff]
        %v3100 = vld [vmem:[#allocation20 + $0x20] sm:$0xff]
        %v3101 = vld [vmem:[#allocation20 + $0x28] sm:$0xff]
        %v3102 = vld [vmem:[#allocation20 + $0x30] sm:$0xff]
        %v3103 = vld [vmem:[#allocation20 + $0x38] sm:$0xff]
        %v3104 = vld [vmem:[#allocation20 + $0x40] sm:$0xff]
        %v3105 = vld [vmem:[#allocation20 + $0x48] sm:$0xff]
        %v3106 = vld [vmem:[#allocation20 + $0x50] sm:$0xff]
        %v3107 = vld [vmem:[#allocation20 + $0x58] sm:$0xff]
        %v3108 = vld [vmem:[#allocation20 + $0x60] sm:$0xff]
        %v3109 = vld [vmem:[#allocation20 + $0x68] sm:$0xff]
        %v3110 = vld [vmem:[#allocation20 + $0x70] sm:$0xff]
        %v3111 = vld [vmem:[#allocation20 + $0x78] sm:$0xff]
        %v3112 = vld [vmem:[#allocation20 + $0x80] sm:$0xff]
        %v3113 = vld [vmem:[#allocation20 + $0x88] sm:$0xff]
        %v3114 = vld [vmem:[#allocation20 + $0x90] sm:$0xff]
        %v3115 = vld [vmem:[#allocation20 + $0x98] sm:$0xff]
        %v3116 = vld [vmem:[#allocation20 + $0xa0] sm:$0xff]
        %v3117 = vld [vmem:[#allocation20 + $0xa8] sm:$0xff]
        %v3118 = vld [vmem:[#allocation20 + $0xb0] sm:$0xff]
        %v3119 = vld [vmem:[#allocation20 + $0xb8] sm:$0xff]
        %v3120 = vld [vmem:[#allocation20 + $0xc0] sm:$0xff]
        %v3121 = vld [vmem:[#allocation20 + $0xc8] sm:$0xff]
        %v3122 = vld [vmem:[#allocation20 + $0xd0] sm:$0xff]
        %v3123 = vld [vmem:[#allocation20 + $0xd8] sm:$0xff]
        %v3124 = vld [vmem:[#allocation20 + $0xe0] sm:$0xff]
        %v3125 = vld [vmem:[#allocation20 + $0xe8] sm:$0xff]
        %v3126 = vld [vmem:[#allocation20 + $0xf0] sm:$0xff]
        %v3127 = vld [vmem:[#allocation20 + $0xf8] sm:$0xff]
        %v3128 = vld [vmem:[#allocation22] sm:$0x1]
        %v3130 = vlaneseq
        %v3131 = vshrl.u32 %v3130, 7
        %v3132 = vsub.s32 0, %v3131
        %v3133 = vrot.slane %v3128, %v3132
        %3135 = vmatprep.subr.mxu0 0.0
        %3136 = vmatpush1.msra.mxu0 %v3111
        %3137 = vmatprep.subr.mxu0 0.0
        %3138 = vmatpush1.msra.mxu0 %v3110
        %3139 = vmatprep.subr.mxu0 0.0
        %3140 = vmatpush1.msra.mxu0 %v3109
        %3141 = vmatprep.subr.mxu0 0.0
        %3142 = vmatpush1.msra.mxu0 %v3108
        %3143 = vmatprep.subr.mxu0 0.0
        %3144 = vmatpush1.msra.mxu0 %v3107
        %3145 = vmatprep.subr.mxu0 0.0
        %3146 = vmatpush1.msra.mxu0 %v3106
        %3147 = vmatprep.subr.mxu0 0.0
        %3148 = vmatpush1.msra.mxu0 %v3105
        %3149 = vmatprep.subr.mxu0 0.0
        %3150 = vmatpush1.msra.mxu0 %v3104
        %3151 = vmatprep.subr.mxu0 0.0
        %3152 = vmatpush1.msra.mxu0 %v3103
        %3153 = vmatprep.subr.mxu0 0.0
        %3154 = vmatpush1.msra.mxu0 %v3102
        %3155 = vmatprep.subr.mxu0 0.0
        %3156 = vmatpush1.msra.mxu0 %v3101
        %3157 = vmatprep.subr.mxu0 0.0
        %3158 = vmatpush1.msra.mxu0 %v3100
        %3159 = vmatprep.subr.mxu0 0.0
        %3160 = vmatpush1.msra.mxu0 %v3099
        %3161 = vmatprep.subr.mxu0 0.0
        %3162 = vmatpush1.msra.mxu0 %v3098
        %3163 = vmatprep.subr.mxu0 0.0
        %3164 = vmatpush1.msra.mxu0 %v3097
        %3165 = vmatprep.subr.mxu0 0.0
        %3166 = vmatpush1.msra.mxu0 %v3096
        %3167 = vmatprep.subr.mxu0 0.0
        %3168 = vmatpush2.msra.mxu0 %v3127
        %3169 = vmatprep.subr.mxu0 0.0
        %3170 = vmatpush2.msra.mxu0 %v3126
        %3171 = vmatprep.subr.mxu0 0.0
        %3172 = vmatpush2.msra.mxu0 %v3125
        %3173 = vmatprep.subr.mxu0 0.0
        %3174 = vmatpush2.msra.mxu0 %v3124
        %3175 = vmatprep.subr.mxu0 0.0
        %3176 = vmatpush2.msra.mxu0 %v3123
        %3177 = vmatprep.subr.mxu0 0.0
        %3178 = vmatpush2.msra.mxu0 %v3122
        %3179 = vmatprep.subr.mxu0 0.0
        %3180 = vmatpush2.msra.mxu0 %v3121
        %3181 = vmatprep.subr.mxu0 0.0
        %3182 = vmatpush2.msra.mxu0 %v3120
        %3183 = vmatprep.subr.mxu0 0.0
        %3184 = vmatpush2.msra.mxu0 %v3119
        %3185 = vmatprep.subr.mxu0 0.0
        %3186 = vmatpush2.msra.mxu0 %v3118
        %3187 = vmatprep.subr.mxu0 0.0
        %3188 = vmatpush2.msra.mxu0 %v3117
        %3189 = vmatprep.subr.mxu0 0.0
        %3190 = vmatpush2.msra.mxu0 %v3116
        %3191 = vmatprep.subr.mxu0 0.0
        %3192 = vmatpush2.msra.mxu0 %v3115
        %3193 = vmatprep.subr.mxu0 0.0
        %3194 = vmatpush2.msra.mxu0 %v3114
        %3195 = vmatprep.subr.mxu0 0.0
        %3196 = vmatpush2.msra.mxu0 %v3113
        %3197 = vmatprep.subr.mxu0 0.0
        %3198 = vmatpush2.msra.mxu0 %v3112
        %3199 = vmatprep.mubr.f32.mxu0 %v3095
        %3200 = vmatmul.mubr.f32.gmra.mxu0 %v3094
        %v3201 = vpop.f32.mrf.mxu0
        %v3202 = vadd.f32 %v3133, %v3201
        %v3203 = vpop.f32.mrf.mxu0
        %3204 = vdwg.mxu0
        %v3205 = vxor.u32 %v3202, 2147483648
        %v3206 = vmul.f32 %v3205, 1.442695
        %v3207 = vpow.pop %v3206
        %v3208 = vadd.f32 %v3207, 1.0
        %v3209 = vrcp.pop %v3208
        %v3210 = vmul.f32 1.0, %v3209
        %3211 = vst [vmem:[%s618] sm:$0xff] %v3210
        %s3212 = sand.u32 %s322, 1
        %s3213 = scalar_lea.sflag [#allocation4], %s3212
        %s3214 = sand.u32 %s322, 1
        %s3215 = smul.addr %s3214, 8
        %s3216 = scalar_lea.vmem [#allocation23], %s3215
        // Predicated region
        $region125: #{tpu_custom_call.1} parent=71 // pred_check
          %p3217 = pneg %p332
        $region126: #{tpu_custom_call.1} parent=71 // pred_check_branch
          %3219 = sbr.rel (%p3217) target = $region128
        $region127: #{tpu_custom_call.1} parent=71 // pred_region
          %s3221 = ssub.s32 128, 128
          %3222 = vsyncadd %s3213, %s3221
          %s3223 = smul.addr %s36, 128
          %s3224 = scalar_lea.hbm %s13, %s3223
          %s3226 = sshll.u32 %s3216, 4
          %s3227 = int_to_ptr.vmem [resolvable:$true] %s3226
          %3229 = dma.vmem_to_hbm [thread:$0]  %s3227, 128, %s3224, %s3213
        $region128: #{tpu_custom_call.1} parent=71 // pred_fallthru
          _
      $region72: #{tpu_custom_call.1} parent=5 // pred_fallthru
        _
      %p3230 = scmp.le.s32.totalorder 2, %s31
      // Predicated region
      $region129: #{tpu_custom_call.1} parent=5 // pred_check
        %p3231 = pneg %p3230
      $region130: #{tpu_custom_call.1} parent=5 // pred_check_branch
        %3233 = sbr.rel (%p3231) target = $region132
      $region131: #{tpu_custom_call.1} parent=5 // pred_region
        %s3234 = ssub.s32 %s31, 2
        // Predicated region
        $region133: #{tpu_custom_call.1} parent=131 // pred_check
          %p3235 = pneg %p338
        $region134: #{tpu_custom_call.1} parent=131 // pred_check_branch
          %3237 = sbr.rel (%p3235) target = $region136
        $region135: #{tpu_custom_call.1} parent=131 // pred_region
          %s3238 = sand.u32 %s323, 1
          %s3239 = scalar_lea.sflag [#allocation4], %s3238
          %s3240 = sand.u32 %s323, 1
          %s3241 = smul.addr %s3240, 8
          %s3242 = scalar_lea.vmem [#allocation23], %s3241
          %3243 = dma.done %s3239, 128
        $region136: #{tpu_custom_call.1} parent=131 // pred_fallthru
          _
      $region132: #{tpu_custom_call.1} parent=5 // pred_fallthru
        _
    $region6: #{tpu_custom_call.1} parent=1 // loop_footer
      %s35 = sadd.s32 1, %s31
    $region7: #{tpu_custom_call.1} parent=1 // loop_footer_branch
      %30 = sbr.rel target = $region3
    $region8: #{tpu_custom_call.1} parent=1 // loop_exit
      _
    %3244 = vsyncpa [#allocation3], 1
    %s3245 = scalar_lea.sflag [#allocation3], 1
    %3246 = vsyncpa %s3245, 1
    %3247 = vsyncpa [#allocation6], 1
    %3248 = vsyncpa [#allocation9], 1
    %3249 = vsyncpa [#allocation12], 1
    %3250 = vsyncpa [#allocation15], 1
    %3251 = vsyncpa [#allocation18], 1
    %3252 = vsyncpa [#allocation21], 1
    %3253 = vsyncpa [#allocation4], 1
    %s3254 = scalar_lea.sflag [#allocation4], 1
    %3255 = vsyncpa %s3254, 1

</llo_original>
